<compile_context>
chip_gen: v6e
topology: v6e:2x2x1
jax: 0.10.0
libtpu: 0.0.40
codegen_flags: <defaults>
</compile_context>

<pallas_src>
import functools
import math

import numpy as np
import jax
import jax.numpy as jnp
from jax.experimental import pallas as pl
from jax.experimental.pallas import tpu as pltpu

EPS = 1e-5  # PyTorch BatchNorm default eps


def _round_up(v, m):
    return (v + m - 1) // m * m


# ----------------------------- fused Pallas kernel -----------------------------

def basic_block_kernel(phases_ref, mask_ref, s1_ref, b1_ref, w1_ref,
                       s2_ref, b2_ref, w2_ref, res_ref, o_ref,
                       act_ref, pad_ref,
                       *, stride, hps, oh, ow, equal_in_out):
    """One image of the WideResNet BasicBlock.

    phases_ref : (1, s*s*hps, wps, cin)  padded input, phase-decomposed so every
                 (tap, stride) access is a contiguous static slice.
    mask_ref   : (s*s*hps, wps, 1)  1 inside the original HxW image, 0 on padding.
    w1_ref     : (9, cin, cp) bf16  conv1 taps (kh*kw major).
    w2_ref     : (9, cp, cp)  bf16  conv2 taps.
    res_ref    : equal_in_out -> (1, oh*ow, cp) f32 raw-x residual
                 else         -> (cin, cp) bf16 1x1 shortcut weight.
    o_ref      : (1, oh*ow, cp) f32 output block.
    act_ref    : VMEM scratch for the bn1+relu activations (phase layout).
    pad_ref    : VMEM scratch, zero-padded conv2 input (oh+2, ow+2, cp).
    """
    s = stride
    cin = phases_ref.shape[-1]
    cp = o_ref.shape[-1]

    # ---- bn1 + relu fused prologue; zero conv-padding / phase-padding ----
    act_ref[...] = (jnp.maximum(phases_ref[0] * s1_ref[...] + b1_ref[...], 0.0)
                    * mask_ref[...])

    # ---- conv1: 9-tap accumulation on the MXU (bf16 x bf16 -> f32) ----
    acc1 = jnp.zeros((oh * ow, cp), jnp.float32)
    for t in range(9):
        i, j = t // 3, t % 3
        base = ((i % s) * s + (j % s)) * hps + i // s
        dj = j // s
        win = act_ref[base:base + oh, dj:dj + ow, :].reshape(oh * ow, cin)
        acc1 = acc1 + jnp.dot(win.astype(jnp.bfloat16), w1_ref[t],
                              preferred_element_type=jnp.float32)

    # ---- bn2 + relu, written into a zero-padded scratch for conv2 taps ----
    h1 = jnp.maximum(acc1 * s2_ref[...] + b2_ref[...], 0.0)
    pad_ref[...] = jnp.zeros_like(pad_ref)
    pad_ref[1:oh + 1, 1:ow + 1, :] = h1.reshape(oh, ow, cp)

    # ---- residual branch (fused): identity or 1x1 shortcut conv on bn1+relu(x) ----
    if equal_in_out:
        acc2 = res_ref[0]
    else:
        p = 1 % s
        st = (1 - p) // s
        base = (p * s + p) * hps + st
        xs = act_ref[base:base + oh, st:st + ow, :].reshape(oh * ow, cin)
        acc2 = jnp.dot(xs.astype(jnp.bfloat16), res_ref[...],
                       preferred_element_type=jnp.float32)

    # ---- conv2: 9-tap accumulation + residual add ----
    for t in range(9):
        i, j = t // 3, t % 3
        win = pad_ref[i:i + oh, j:j + ow, :].reshape(oh * ow, cp)
        acc2 = acc2 + jnp.dot(win.astype(jnp.bfloat16), w2_ref[t],
                              preferred_element_type=jnp.float32)

    o_ref[...] = acc2.reshape(1, oh * ow, cp)


# ----------------------------- wrapper -----------------------------

def basic_block_forward(x_nchw, params, *, stride, equal_in_out, drop_rate=0.0):
    # TODO(synk): F.dropout (drop_rate > 0 in training mode) is not implemented;
    # it is an identity for dropRate=0.0 / eval mode as exercised here.
    s = int(stride)
    if equal_in_out and s != 1:
        raise ValueError("equal_in_out path requires stride == 1")

    x = jnp.transpose(x_nchw, (0, 2, 3, 1)).astype(jnp.float32)  # NHWC
    n, h, w, cin = x.shape
    cout = params['conv1_w'].shape[0]
    cp = _round_up(cout, 128)               # lane-dense (unmasked-store) channels
    oh = (h + 2 - 3) // s + 1
    ow = (w + 2 - 3) // s + 1

    # fold BN (inference) into per-channel scale/shift
    scale1 = params['bn1_gamma'] / jnp.sqrt(params['bn1_var'] + EPS)
    shift1 = params['bn1_beta'] - params['bn1_mean'] * scale1
    scale2 = params['bn2_gamma'] / jnp.sqrt(params['bn2_var'] + EPS)
    shift2 = params['bn2_beta'] - params['bn2_mean'] * scale2
    scale2 = jnp.pad(scale2, (0, cp - cout))
    shift2 = jnp.pad(shift2, (0, cp - cout))

    # phase-decomposed, spatially padded input: a single 1x copy of x arranged so
    # every (tap, stride) access in-kernel is a contiguous static slice.
    hp, wp = h + 2, w + 2
    hps, wps = -(-hp // s), -(-wp // s)
    xpad = jnp.pad(x, ((0, 0), (1, 1), (1, 1), (0, 0)))
    xpad = jnp.pad(xpad, ((0, 0), (0, hps * s - hp), (0, wps * s - wp), (0, 0)))
    phases = xpad.reshape(n, hps, s, wps, s, cin).transpose(0, 2, 4, 1, 3, 5)
    phases = phases.reshape(n, s * s * hps, wps, cin)

    # validity mask: 1 where a phase element maps inside the original HxW image.
    pq = np.arange(s * s)
    rr = np.arange(hps)
    cc = np.arange(wps)
    row = (pq[:, None, None] // s) + s * rr[None, :, None]
    col = (pq[:, None, None] % s) + s * cc[None, None, :]
    mask = ((row >= 1) & (row <= h) & (col >= 1) & (col <= w)).astype(np.float32)
    mask = jnp.asarray(mask.reshape(s * s * hps, wps, 1))

    # weights: per-tap (kh*kw, cin, cout) layout, cout zero-padded to cp, bf16.
    w1 = jnp.transpose(params['conv1_w'], (2, 3, 1, 0)).reshape(9, cin, cout)
    w1 = jnp.pad(w1, ((0, 0), (0, 0), (0, cp - cout))).astype(jnp.bfloat16)
    w2 = jnp.transpose(params['conv2_w'], (2, 3, 1, 0)).reshape(9, cout, cout)
    w2 = jnp.pad(w2, ((0, 0), (0, cp - cout), (0, cp - cout))).astype(jnp.bfloat16)

    if equal_in_out:
        res_arr = jnp.pad(x, ((0, 0), (0, 0), (0, 0), (0, cp - cin)))
        res_arr = res_arr.reshape(n, h * w, cp)
        res_spec = pl.BlockSpec((1, oh * ow, cp), lambda i: (i, 0, 0))
    else:
        wsc = jnp.transpose(params['convsc_w'], (2, 3, 1, 0)).reshape(cin, cout)
        res_arr = jnp.pad(wsc, ((0, 0), (0, cp - cout))).astype(jnp.bfloat16)
        res_spec = pl.BlockSpec((cin, cp), lambda i: (0, 0))

    kernel = functools.partial(basic_block_kernel, stride=s, hps=hps,
                               oh=oh, ow=ow, equal_in_out=equal_in_out)

    out = pl.pallas_call(
        kernel,
        out_shape=jax.ShapeDtypeStruct((n, oh * ow, cp), jnp.float32),
        grid=(n,),
        in_specs=[
            pl.BlockSpec((1, s * s * hps, wps, cin), lambda i: (i, 0, 0, 0)),
            pl.BlockSpec((s * s * hps, wps, 1), lambda i: (0, 0, 0)),
            pl.BlockSpec((1, cin), lambda i: (0, 0)),
            pl.BlockSpec((1, cin), lambda i: (0, 0)),
            pl.BlockSpec((9, cin, cp), lambda i: (0, 0, 0)),
            pl.BlockSpec((1, cp), lambda i: (0, 0)),
            pl.BlockSpec((1, cp), lambda i: (0, 0)),
            pl.BlockSpec((9, cp, cp), lambda i: (0, 0, 0)),
            res_spec,
        ],
        out_specs=pl.BlockSpec((1, oh * ow, cp), lambda i: (i, 0, 0)),
        scratch_shapes=[
            pltpu.VMEM((s * s * hps, wps, cin), jnp.float32),
            pltpu.VMEM((oh + 2, ow + 2, cp), jnp.float32),
        ],
        compiler_params=pltpu.CompilerParams(
            dimension_semantics=("parallel",)),
    )(phases, mask, scale1.reshape(1, cin), shift1.reshape(1, cin), w1,
      scale2.reshape(1, cp), shift2.reshape(1, cp), w2, res_arr)

    y = out.reshape(n, oh, ow, cp)[:, :, :, :cout]
    return jnp.transpose(y, (0, 3, 1, 2))  # back to NCHW


# ----------------------------- reference (plain JAX) -----------------------------

def ref_forward(x, p, stride, equal_in_out):
    def bn(z, g, b, m, v):
        return ((z - m[None, :, None, None]) / jnp.sqrt(v[None, :, None, None] + EPS)
                * g[None, :, None, None] + b[None, :, None, None])

    def conv(z, wt, s, pad):
        return jax.lax.conv_general_dilated(
            z, wt, (s, s), [(pad, pad), (pad, pad)],
            dimension_numbers=('NCHW', 'OIHW', 'NCHW'),
            precision=jax.lax.Precision.HIGHEST)

    act = jax.nn.relu(bn(x, p['bn1_gamma'], p['bn1_beta'], p['bn1_mean'], p['bn1_var']))
    out = jax.nn.relu(bn(conv(act, p['conv1_w'], stride, 1),
                         p['bn2_gamma'], p['bn2_beta'], p['bn2_mean'], p['bn2_var']))
    out = conv(out, p['conv2_w'], 1, 1)
    if equal_in_out:
        return x + out
    return conv(act, p['convsc_w'], stride, 0) + out


# ----------------------------- param init -----------------------------

def init_params(key, in_planes, out_planes, equal_in_out):
    ks = jax.random.split(key, 11)

    def kaiming(k, shape):
        fan = shape[1] * shape[2] * shape[3]
        return jax.random.normal(k, shape, jnp.float32) * math.sqrt(2.0 / fan)

    p = {
        'bn1_gamma': jax.random.uniform(ks[0], (in_planes,), jnp.float32, 0.5, 1.5),
        'bn1_beta': 0.1 * jax.random.normal(ks[1], (in_planes,), jnp.float32),
        'bn1_mean': 0.1 * jax.random.normal(ks[2], (in_planes,), jnp.float32),
        'bn1_var': jax.random.uniform(ks[3], (in_planes,), jnp.float32, 0.5, 1.5),
        'conv1_w': kaiming(ks[4], (out_planes, in_planes, 3, 3)),
        'bn2_gamma': jax.random.uniform(ks[5], (out_planes,), jnp.float32, 0.5, 1.5),
        'bn2_beta': 0.1 * jax.random.normal(ks[6], (out_planes,), jnp.float32),
        'bn2_mean': 0.1 * jax.random.normal(ks[7], (out_planes,), jnp.float32),
        'bn2_var': jax.random.uniform(ks[8], (out_planes,), jnp.float32, 0.5, 1.5),
        'conv2_w': kaiming(ks[9], (out_planes, out_planes, 3, 3)),
    }
    if not equal_in_out:
        p['convsc_w'] = kaiming(ks[10], (out_planes, in_planes, 1, 1))
    return p


if __name__ == "__main__":
    key = jax.random.PRNGKey(0)
    k1, k2, k3, k4 = jax.random.split(key, 4)

    fwd = jax.jit(basic_block_forward,
                  static_argnames=("stride", "equal_in_out", "drop_rate"))

    # Case 1: in_planes != out_planes, stride 2 -> fused 1x1-conv shortcut path.
    in_planes, out_planes, stride = 4, 8, 2
    x = jax.random.normal(k1, (2, in_planes, 16, 16), jnp.float32)
    params = init_params(k2, in_planes, out_planes, equal_in_out=False)
    out = jax.block_until_ready(fwd(x, params, stride=stride, equal_in_out=False))
    ref = jax.block_until_ready(ref_forward(x, params, stride, False))
    assert out.shape == (2, out_planes, 16 // stride, 16 // stride), out.shape
    np.testing.assert_allclose(np.asarray(out), np.asarray(ref), rtol=5e-2, atol=5e-2)

    # Case 2: in_planes == out_planes, stride 1 -> identity shortcut path.
    in_planes = out_planes = 8
    x2 = jax.random.normal(k3, (2, in_planes, 16, 16), jnp.float32)
    params2 = init_params(k4, in_planes, out_planes, equal_in_out=True)
    out2 = jax.block_until_ready(fwd(x2, params2, stride=1, equal_in_out=True))
    ref2 = jax.block_until_ready(ref_forward(x2, params2, 1, True))
    assert out2.shape == (2, out_planes, 16, 16), out2.shape
    np.testing.assert_allclose(np.asarray(out2), np.asarray(ref2), rtol=5e-2, atol=5e-2)

    print("KERNEL_OK")
</pallas_src>

<mosaic_0001>
module attributes {stable_mosaic.version = 11 : i64} {
  func.func @basic_block_kernel(%arg0: i32, %arg1: memref<1x36x9x4xf32, #tpu.memory_space<vmem>>, %arg2: memref<36x9x1xf32, #tpu.memory_space<vmem>>, %arg3: memref<1x4xf32, #tpu.memory_space<vmem>>, %arg4: memref<1x4xf32, #tpu.memory_space<vmem>>, %arg5: memref<9x4x128xbf16, #tpu.memory_space<vmem>>, %arg6: memref<1x128xf32, #tpu.memory_space<vmem>>, %arg7: memref<1x128xf32, #tpu.memory_space<vmem>>, %arg8: memref<9x128x128xbf16, #tpu.memory_space<vmem>>, %arg9: memref<4x128xbf16, #tpu.memory_space<vmem>>, %arg10: memref<1x64x128xf32, #tpu.memory_space<vmem>>, %arg11: memref<36x9x4xf32, #tpu.memory_space<vmem>>, %arg12: memref<10x10x128xf32, #tpu.memory_space<vmem>>) attributes {dimension_semantics = [#tpu.dimension_semantics<parallel>], iteration_bounds = array<i64: 2>, scalar_prefetch = 0 : i64, scratch_operands = 2 : i64, tpu.core_type = #tpu.core_type<tc>, window_params = [{transform_indices = @transform_0, window_bounds = array<i64: 1, 36, 9, 4>}, {pipeline_mode = #tpu.pipeline_mode<synchronous>, transform_indices = @transform_1, window_bounds = array<i64: 36, 9, 1>}, {pipeline_mode = #tpu.pipeline_mode<synchronous>, transform_indices = @transform_2, window_bounds = array<i64: 1, 4>}, {pipeline_mode = #tpu.pipeline_mode<synchronous>, transform_indices = @transform_3, window_bounds = array<i64: 1, 4>}, {pipeline_mode = #tpu.pipeline_mode<synchronous>, transform_indices = @transform_4, window_bounds = array<i64: 9, 4, 128>}, {pipeline_mode = #tpu.pipeline_mode<synchronous>, transform_indices = @transform_5, window_bounds = array<i64: 1, 128>}, {pipeline_mode = #tpu.pipeline_mode<synchronous>, transform_indices = @transform_6, window_bounds = array<i64: 1, 128>}, {pipeline_mode = #tpu.pipeline_mode<synchronous>, transform_indices = @transform_7, window_bounds = array<i64: 9, 128, 128>}, {pipeline_mode = #tpu.pipeline_mode<synchronous>, transform_indices = @transform_8, window_bounds = array<i64: 4, 128>}, {transform_indices = @transform_9, window_bounds = array<i64: 1, 64, 128>}]} {
    %c0 = arith.constant 0 : index
    %c0_0 = arith.constant 0 : index
    %c0_1 = arith.constant 0 : index
    %c0_2 = arith.constant 0 : index
    %0 = vector.load %arg1[%c0, %c0_0, %c0_1, %c0_2] : memref<1x36x9x4xf32, #tpu.memory_space<vmem>>, vector<1x36x9x4xf32>
    %1 = vector.shape_cast %0 : vector<1x36x9x4xf32> to vector<36x9x4xf32>
    %c0_3 = arith.constant 0 : index
    %c0_4 = arith.constant 0 : index
    %2 = vector.load %arg3[%c0_3, %c0_4] : memref<1x4xf32, #tpu.memory_space<vmem>>, vector<1x4xf32>
    %3 = vector.shape_cast %2 : vector<1x4xf32> to vector<1x1x4xf32>
    %4 = vector.broadcast %3 : vector<1x1x4xf32> to vector<36x9x4xf32>
    %5 = arith.mulf %1, %4 : vector<36x9x4xf32>
    %c0_5 = arith.constant 0 : index
    %c0_6 = arith.constant 0 : index
    %6 = vector.load %arg4[%c0_5, %c0_6] : memref<1x4xf32, #tpu.memory_space<vmem>>, vector<1x4xf32>
    %7 = vector.shape_cast %6 : vector<1x4xf32> to vector<1x1x4xf32>
    %8 = vector.broadcast %7 : vector<1x1x4xf32> to vector<36x9x4xf32>
    %9 = arith.addf %5, %8 : vector<36x9x4xf32>
    %cst = arith.constant 0.000000e+00 : f32
    %10 = vector.broadcast %cst : f32 to vector<36x9x4xf32>
    %11 = arith.maximumf %9, %10 : vector<36x9x4xf32>
    %c0_7 = arith.constant 0 : index
    %c0_8 = arith.constant 0 : index
    %c0_9 = arith.constant 0 : index
    %12 = vector.load %arg2[%c0_7, %c0_8, %c0_9] : memref<36x9x1xf32, #tpu.memory_space<vmem>>, vector<36x9x1xf32>
    %13 = vector.broadcast %12 : vector<36x9x1xf32> to vector<36x9x4xf32>
    %14 = arith.mulf %11, %13 : vector<36x9x4xf32>
    %c0_10 = arith.constant 0 : index
    %c0_11 = arith.constant 0 : index
    %c0_12 = arith.constant 0 : index
    %15 = vector.load %arg11[%c0_10, %c0_11, %c0_12] : memref<36x9x4xf32, #tpu.memory_space<vmem>>, vector<36x9x4xf32>
    tpu.vector_store %arg11[%c0_10, %c0_11, %c0_12], %14 {strides = array<i32>} : memref<36x9x4xf32, #tpu.memory_space<vmem>>, vector<36x9x4xf32>,
    %cst_13 = arith.constant 0.000000e+00 : f32
    %16 = vector.broadcast %cst_13 : f32 to vector<64x128xf32>
    %c0_14 = arith.constant 0 : index
    %c0_15 = arith.constant 0 : index
    %c0_16 = arith.constant 0 : index
    %17 = vector.load %arg11[%c0_14, %c0_15, %c0_16] : memref<36x9x4xf32, #tpu.memory_space<vmem>>, vector<8x8x4xf32>
    %18 = vector.shape_cast %17 : vector<8x8x4xf32> to vector<64x4xf32>
    %19 = arith.truncf %18 : vector<64x4xf32> to vector<64x4xbf16>
    %c0_17 = arith.constant 0 : index
    %c0_18 = arith.constant 0 : index
    %c0_19 = arith.constant 0 : index
    %20 = vector.load %arg5[%c0_17, %c0_18, %c0_19] : memref<9x4x128xbf16, #tpu.memory_space<vmem>>, vector<1x4x128xbf16>
    %21 = vector.shape_cast %20 : vector<1x4x128xbf16> to vector<4x128xbf16>
    %cst_20 = arith.constant dense<0.000000e+00> : vector<64x128xf32>
    %22 = tpu.matmul %19, %21, %cst_20 {dimension_numbers = #tpu.dot_dimension_numbers<[1], [0], [0], [1], [0, 0, 1, 1], [], []>} : vector<64x4xbf16>, vector<4x128xbf16>, vector<64x128xf32> -> vector<64x128xf32>
    %23 = arith.addf %16, %22 : vector<64x128xf32>
    %c9 = arith.constant 9 : index
    %c0_21 = arith.constant 0 : index
    %c0_22 = arith.constant 0 : index
    %24 = vector.load %arg11[%c9, %c0_21, %c0_22] : memref<36x9x4xf32, #tpu.memory_space<vmem>>, vector<8x8x4xf32>
    %25 = vector.shape_cast %24 : vector<8x8x4xf32> to vector<64x4xf32>
    %26 = arith.truncf %25 : vector<64x4xf32> to vector<64x4xbf16>
    %c1 = arith.constant 1 : index
    %c0_23 = arith.constant 0 : index
    %c0_24 = arith.constant 0 : index
    %27 = vector.load %arg5[%c1, %c0_23, %c0_24] : memref<9x4x128xbf16, #tpu.memory_space<vmem>>, vector<1x4x128xbf16>
    %28 = vector.shape_cast %27 : vector<1x4x128xbf16> to vector<4x128xbf16>
    %cst_25 = arith.constant dense<0.000000e+00> : vector<64x128xf32>
    %29 = tpu.matmul %26, %28, %cst_25 {dimension_numbers = #tpu.dot_dimension_numbers<[1], [0], [0], [1], [0, 0, 1, 1], [], []>} : vector<64x4xbf16>, vector<4x128xbf16>, vector<64x128xf32> -> vector<64x128xf32>
    %30 = arith.addf %23, %29 : vector<64x128xf32>
    %c0_26 = arith.constant 0 : index
    %c1_27 = arith.constant 1 : index
    %c0_28 = arith.constant 0 : index
    %31 = vector.load %arg11[%c0_26, %c1_27, %c0_28] : memref<36x9x4xf32, #tpu.memory_space<vmem>>, vector<8x8x4xf32>
    %32 = vector.shape_cast %31 : vector<8x8x4xf32> to vector<64x4xf32>
    %33 = arith.truncf %32 : vector<64x4xf32> to vector<64x4xbf16>
    %c2 = arith.constant 2 : index
    %c0_29 = arith.constant 0 : index
    %c0_30 = arith.constant 0 : index
    %34 = vector.load %arg5[%c2, %c0_29, %c0_30] : memref<9x4x128xbf16, #tpu.memory_space<vmem>>, vector<1x4x128xbf16>
    %35 = vector.shape_cast %34 : vector<1x4x128xbf16> to vector<4x128xbf16>
    %cst_31 = arith.constant dense<0.000000e+00> : vector<64x128xf32>
    %36 = tpu.matmul %33, %35, %cst_31 {dimension_numbers = #tpu.dot_dimension_numbers<[1], [0], [0], [1], [0, 0, 1, 1], [], []>} : vector<64x4xbf16>, vector<4x128xbf16>, vector<64x128xf32> -> vector<64x128xf32>
    %37 = arith.addf %30, %36 : vector<64x128xf32>
    %c18 = arith.constant 18 : index
    %c0_32 = arith.constant 0 : index
    %c0_33 = arith.constant 0 : index
    %38 = vector.load %arg11[%c18, %c0_32, %c0_33] : memref<36x9x4xf32, #tpu.memory_space<vmem>>, vector<8x8x4xf32>
    %39 = vector.shape_cast %38 : vector<8x8x4xf32> to vector<64x4xf32>
    %40 = arith.truncf %39 : vector<64x4xf32> to vector<64x4xbf16>
    %c3 = arith.constant 3 : index
    %c0_34 = arith.constant 0 : index
    %c0_35 = arith.constant 0 : index
    %41 = vector.load %arg5[%c3, %c0_34, %c0_35] : memref<9x4x128xbf16, #tpu.memory_space<vmem>>, vector<1x4x128xbf16>
    %42 = vector.shape_cast %41 : vector<1x4x128xbf16> to vector<4x128xbf16>
    %cst_36 = arith.constant dense<0.000000e+00> : vector<64x128xf32>
    %43 = tpu.matmul %40, %42, %cst_36 {dimension_numbers = #tpu.dot_dimension_numbers<[1], [0], [0], [1], [0, 0, 1, 1], [], []>} : vector<64x4xbf16>, vector<4x128xbf16>, vector<64x128xf32> -> vector<64x128xf32>
    %44 = arith.addf %37, %43 : vector<64x128xf32>
    %c27 = arith.constant 27 : index
    %c0_37 = arith.constant 0 : index
    %c0_38 = arith.constant 0 : index
    %45 = vector.load %arg11[%c27, %c0_37, %c0_38] : memref<36x9x4xf32, #tpu.memory_space<vmem>>, vector<8x8x4xf32>
    %46 = vector.shape_cast %45 : vector<8x8x4xf32> to vector<64x4xf32>
    %47 = arith.truncf %46 : vector<64x4xf32> to vector<64x4xbf16>
    %c4 = arith.constant 4 : index
    %c0_39 = arith.constant 0 : index
    %c0_40 = arith.constant 0 : index
    %48 = vector.load %arg5[%c4, %c0_39, %c0_40] : memref<9x4x128xbf16, #tpu.memory_space<vmem>>, vector<1x4x128xbf16>
    %49 = vector.shape_cast %48 : vector<1x4x128xbf16> to vector<4x128xbf16>
    %cst_41 = arith.constant dense<0.000000e+00> : vector<64x128xf32>
    %50 = tpu.matmul %47, %49, %cst_41 {dimension_numbers = #tpu.dot_dimension_numbers<[1], [0], [0], [1], [0, 0, 1, 1], [], []>} : vector<64x4xbf16>, vector<4x128xbf16>, vector<64x128xf32> -> vector<64x128xf32>
    %51 = arith.addf %44, %50 : vector<64x128xf32>
    %c18_42 = arith.constant 18 : index
    %c1_43 = arith.constant 1 : index
    %c0_44 = arith.constant 0 : index
    %52 = vector.load %arg11[%c18_42, %c1_43, %c0_44] : memref<36x9x4xf32, #tpu.memory_space<vmem>>, vector<8x8x4xf32>
    %53 = vector.shape_cast %52 : vector<8x8x4xf32> to vector<64x4xf32>
    %54 = arith.truncf %53 : vector<64x4xf32> to vector<64x4xbf16>
    %c5 = arith.constant 5 : index
    %c0_45 = arith.constant 0 : index
    %c0_46 = arith.constant 0 : index
    %55 = vector.load %arg5[%c5, %c0_45, %c0_46] : memref<9x4x128xbf16, #tpu.memory_space<vmem>>, vector<1x4x128xbf16>
    %56 = vector.shape_cast %55 : vector<1x4x128xbf16> to vector<4x128xbf16>
    %cst_47 = arith.constant dense<0.000000e+00> : vector<64x128xf32>
    %57 = tpu.matmul %54, %56, %cst_47 {dimension_numbers = #tpu.dot_dimension_numbers<[1], [0], [0], [1], [0, 0, 1, 1], [], []>} : vector<64x4xbf16>, vector<4x128xbf16>, vector<64x128xf32> -> vector<64x128xf32>
    %58 = arith.addf %51, %57 : vector<64x128xf32>
    %c1_48 = arith.constant 1 : index
    %c0_49 = arith.constant 0 : index
    %c0_50 = arith.constant 0 : index
    %59 = vector.load %arg11[%c1_48, %c0_49, %c0_50] : memref<36x9x4xf32, #tpu.memory_space<vmem>>, vector<8x8x4xf32>
    %60 = vector.shape_cast %59 : vector<8x8x4xf32> to vector<64x4xf32>
    %61 = arith.truncf %60 : vector<64x4xf32> to vector<64x4xbf16>
    %c6 = arith.constant 6 : index
    %c0_51 = arith.constant 0 : index
    %c0_52 = arith.constant 0 : index
    %62 = vector.load %arg5[%c6, %c0_51, %c0_52] : memref<9x4x128xbf16, #tpu.memory_space<vmem>>, vector<1x4x128xbf16>
    %63 = vector.shape_cast %62 : vector<1x4x128xbf16> to vector<4x128xbf16>
    %cst_53 = arith.constant dense<0.000000e+00> : vector<64x128xf32>
    %64 = tpu.matmul %61, %63, %cst_53 {dimension_numbers = #tpu.dot_dimension_numbers<[1], [0], [0], [1], [0, 0, 1, 1], [], []>} : vector<64x4xbf16>, vector<4x128xbf16>, vector<64x128xf32> -> vector<64x128xf32>
    %65 = arith.addf %58, %64 : vector<64x128xf32>
    %c10 = arith.constant 10 : index
    %c0_54 = arith.constant 0 : index
    %c0_55 = arith.constant 0 : index
    %66 = vector.load %arg11[%c10, %c0_54, %c0_55] : memref<36x9x4xf32, #tpu.memory_space<vmem>>, vector<8x8x4xf32>
    %67 = vector.shape_cast %66 : vector<8x8x4xf32> to vector<64x4xf32>
    %68 = arith.truncf %67 : vector<64x4xf32> to vector<64x4xbf16>
    %c7 = arith.constant 7 : index
    %c0_56 = arith.constant 0 : index
    %c0_57 = arith.constant 0 : index
    %69 = vector.load %arg5[%c7, %c0_56, %c0_57] : memref<9x4x128xbf16, #tpu.memory_space<vmem>>, vector<1x4x128xbf16>
    %70 = vector.shape_cast %69 : vector<1x4x128xbf16> to vector<4x128xbf16>
    %cst_58 = arith.constant dense<0.000000e+00> : vector<64x128xf32>
    %71 = tpu.matmul %68, %70, %cst_58 {dimension_numbers = #tpu.dot_dimension_numbers<[1], [0], [0], [1], [0, 0, 1, 1], [], []>} : vector<64x4xbf16>, vector<4x128xbf16>, vector<64x128xf32> -> vector<64x128xf32>
    %72 = arith.addf %65, %71 : vector<64x128xf32>
    %c1_59 = arith.constant 1 : index
    %c1_60 = arith.constant 1 : index
    %c0_61 = arith.constant 0 : index
    %73 = vector.load %arg11[%c1_59, %c1_60, %c0_61] : memref<36x9x4xf32, #tpu.memory_space<vmem>>, vector<8x8x4xf32>
    %74 = vector.shape_cast %73 : vector<8x8x4xf32> to vector<64x4xf32>
    %75 = arith.truncf %74 : vector<64x4xf32> to vector<64x4xbf16>
    %c8 = arith.constant 8 : index
    %c0_62 = arith.constant 0 : index
    %c0_63 = arith.constant 0 : index
    %76 = vector.load %arg5[%c8, %c0_62, %c0_63] : memref<9x4x128xbf16, #tpu.memory_space<vmem>>, vector<1x4x128xbf16>
    %77 = vector.shape_cast %76 : vector<1x4x128xbf16> to vector<4x128xbf16>
    %cst_64 = arith.constant dense<0.000000e+00> : vector<64x128xf32>
    %78 = tpu.matmul %75, %77, %cst_64 {dimension_numbers = #tpu.dot_dimension_numbers<[1], [0], [0], [1], [0, 0, 1, 1], [], []>} : vector<64x4xbf16>, vector<4x128xbf16>, vector<64x128xf32> -> vector<64x128xf32>
    %79 = arith.addf %72, %78 : vector<64x128xf32>
    %c0_65 = arith.constant 0 : index
    %c0_66 = arith.constant 0 : index
    %80 = vector.load %arg6[%c0_65, %c0_66] : memref<1x128xf32, #tpu.memory_space<vmem>>, vector<1x128xf32>
    %81 = vector.broadcast %80 : vector<1x128xf32> to vector<64x128xf32>
    %82 = arith.mulf %79, %81 : vector<64x128xf32>
    %c0_67 = arith.constant 0 : index
    %c0_68 = arith.constant 0 : index
    %83 = vector.load %arg7[%c0_67, %c0_68] : memref<1x128xf32, #tpu.memory_space<vmem>>, vector<1x128xf32>
    %84 = vector.broadcast %83 : vector<1x128xf32> to vector<64x128xf32>
    %85 = arith.addf %82, %84 : vector<64x128xf32>
    %cst_69 = arith.constant 0.000000e+00 : f32
    %86 = vector.broadcast %cst_69 : f32 to vector<64x128xf32>
    %87 = arith.maximumf %85, %86 : vector<64x128xf32>
    %cst_70 = arith.constant 0.000000e+00 : f32
    %88 = vector.broadcast %cst_70 : f32 to vector<10x10x128xf32>
    %c0_71 = arith.constant 0 : index
    %c0_72 = arith.constant 0 : index
    %c0_73 = arith.constant 0 : index
    %89 = vector.load %arg12[%c0_71, %c0_72, %c0_73] : memref<10x10x128xf32, #tpu.memory_space<vmem>>, vector<10x10x128xf32>
    tpu.vector_store %arg12[%c0_71, %c0_72, %c0_73], %88 {strides = array<i32>} : memref<10x10x128xf32, #tpu.memory_space<vmem>>, vector<10x10x128xf32>,
    %90 = vector.shape_cast %87 : vector<64x128xf32> to vector<8x8x128xf32>
    %c1_74 = arith.constant 1 : index
    %c1_75 = arith.constant 1 : index
    %c0_76 = arith.constant 0 : index
    %91 = vector.load %arg12[%c1_74, %c1_75, %c0_76] : memref<10x10x128xf32, #tpu.memory_space<vmem>>, vector<8x8x128xf32>
    tpu.vector_store %arg12[%c1_74, %c1_75, %c0_76], %90 {strides = array<i32>} : memref<10x10x128xf32, #tpu.memory_space<vmem>>, vector<8x8x128xf32>,
    %c27_77 = arith.constant 27 : index
    %c0_78 = arith.constant 0 : index
    %c0_79 = arith.constant 0 : index
    %92 = vector.load %arg11[%c27_77, %c0_78, %c0_79] : memref<36x9x4xf32, #tpu.memory_space<vmem>>, vector<8x8x4xf32>
    %93 = vector.shape_cast %92 : vector<8x8x4xf32> to vector<64x4xf32>
    %94 = arith.truncf %93 : vector<64x4xf32> to vector<64x4xbf16>
    %c0_80 = arith.constant 0 : index
    %c0_81 = arith.constant 0 : index
    %95 = vector.load %arg9[%c0_80, %c0_81] : memref<4x128xbf16, #tpu.memory_space<vmem>>, vector<4x128xbf16>
    %cst_82 = arith.constant dense<0.000000e+00> : vector<64x128xf32>
    %96 = tpu.matmul %94, %95, %cst_82 {dimension_numbers = #tpu.dot_dimension_numbers<[1], [0], [0], [1], [0, 0, 1, 1], [], []>} : vector<64x4xbf16>, vector<4x128xbf16>, vector<64x128xf32> -> vector<64x128xf32>
    %c0_83 = arith.constant 0 : index
    %c0_84 = arith.constant 0 : index
    %c0_85 = arith.constant 0 : index
    %97 = vector.load %arg12[%c0_83, %c0_84, %c0_85] : memref<10x10x128xf32, #tpu.memory_space<vmem>>, vector<8x8x128xf32>
    %98 = vector.shape_cast %97 : vector<8x8x128xf32> to vector<64x128xf32>
    %99 = arith.truncf %98 : vector<64x128xf32> to vector<64x128xbf16>
    %c0_86 = arith.constant 0 : index
    %c0_87 = arith.constant 0 : index
    %c0_88 = arith.constant 0 : index
    %100 = vector.load %arg8[%c0_86, %c0_87, %c0_88] : memref<9x128x128xbf16, #tpu.memory_space<vmem>>, vector<1x128x128xbf16>
    %101 = vector.shape_cast %100 : vector<1x128x128xbf16> to vector<128x128xbf16>
    %cst_89 = arith.constant dense<0.000000e+00> : vector<64x128xf32>
    %102 = tpu.matmul %99, %101, %cst_89 {dimension_numbers = #tpu.dot_dimension_numbers<[1], [0], [0], [1], [0, 0, 1, 1], [], []>} : vector<64x128xbf16>, vector<128x128xbf16>, vector<64x128xf32> -> vector<64x128xf32>
    %103 = arith.addf %96, %102 : vector<64x128xf32>
    %c0_90 = arith.constant 0 : index
    %c1_91 = arith.constant 1 : index
    %c0_92 = arith.constant 0 : index
    %104 = vector.load %arg12[%c0_90, %c1_91, %c0_92] : memref<10x10x128xf32, #tpu.memory_space<vmem>>, vector<8x8x128xf32>
    %105 = vector.shape_cast %104 : vector<8x8x128xf32> to vector<64x128xf32>
    %106 = arith.truncf %105 : vector<64x128xf32> to vector<64x128xbf16>
    %c1_93 = arith.constant 1 : index
    %c0_94 = arith.constant 0 : index
    %c0_95 = arith.constant 0 : index
    %107 = vector.load %arg8[%c1_93, %c0_94, %c0_95] : memref<9x128x128xbf16, #tpu.memory_space<vmem>>, vector<1x128x128xbf16>
    %108 = vector.shape_cast %107 : vector<1x128x128xbf16> to vector<128x128xbf16>
    %cst_96 = arith.constant dense<0.000000e+00> : vector<64x128xf32>
    %109 = tpu.matmul %106, %108, %cst_96 {dimension_numbers = #tpu.dot_dimension_numbers<[1], [0], [0], [1], [0, 0, 1, 1], [], []>} : vector<64x128xbf16>, vector<128x128xbf16>, vector<64x128xf32> -> vector<64x128xf32>
    %110 = arith.addf %103, %109 : vector<64x128xf32>
    %c0_97 = arith.constant 0 : index
    %c2_98 = arith.constant 2 : index
    %c0_99 = arith.constant 0 : index
    %111 = vector.load %arg12[%c0_97, %c2_98, %c0_99] : memref<10x10x128xf32, #tpu.memory_space<vmem>>, vector<8x8x128xf32>
    %112 = vector.shape_cast %111 : vector<8x8x128xf32> to vector<64x128xf32>
    %113 = arith.truncf %112 : vector<64x128xf32> to vector<64x128xbf16>
    %c2_100 = arith.constant 2 : index
    %c0_101 = arith.constant 0 : index
    %c0_102 = arith.constant 0 : index
    %114 = vector.load %arg8[%c2_100, %c0_101, %c0_102] : memref<9x128x128xbf16, #tpu.memory_space<vmem>>, vector<1x128x128xbf16>
    %115 = vector.shape_cast %114 : vector<1x128x128xbf16> to vector<128x128xbf16>
    %cst_103 = arith.constant dense<0.000000e+00> : vector<64x128xf32>
    %116 = tpu.matmul %113, %115, %cst_103 {dimension_numbers = #tpu.dot_dimension_numbers<[1], [0], [0], [1], [0, 0, 1, 1], [], []>} : vector<64x128xbf16>, vector<128x128xbf16>, vector<64x128xf32> -> vector<64x128xf32>
    %117 = arith.addf %110, %116 : vector<64x128xf32>
    %c1_104 = arith.constant 1 : index
    %c0_105 = arith.constant 0 : index
    %c0_106 = arith.constant 0 : index
    %118 = vector.load %arg12[%c1_104, %c0_105, %c0_106] : memref<10x10x128xf32, #tpu.memory_space<vmem>>, vector<8x8x128xf32>
    %119 = vector.shape_cast %118 : vector<8x8x128xf32> to vector<64x128xf32>
    %120 = arith.truncf %119 : vector<64x128xf32> to vector<64x128xbf16>
    %c3_107 = arith.constant 3 : index
    %c0_108 = arith.constant 0 : index
    %c0_109 = arith.constant 0 : index
    %121 = vector.load %arg8[%c3_107, %c0_108, %c0_109] : memref<9x128x128xbf16, #tpu.memory_space<vmem>>, vector<1x128x128xbf16>
    %122 = vector.shape_cast %121 : vector<1x128x128xbf16> to vector<128x128xbf16>
    %cst_110 = arith.constant dense<0.000000e+00> : vector<64x128xf32>
    %123 = tpu.matmul %120, %122, %cst_110 {dimension_numbers = #tpu.dot_dimension_numbers<[1], [0], [0], [1], [0, 0, 1, 1], [], []>} : vector<64x128xbf16>, vector<128x128xbf16>, vector<64x128xf32> -> vector<64x128xf32>
    %124 = arith.addf %117, %123 : vector<64x128xf32>
    %c1_111 = arith.constant 1 : index
    %c1_112 = arith.constant 1 : index
    %c0_113 = arith.constant 0 : index
    %125 = vector.load %arg12[%c1_111, %c1_112, %c0_113] : memref<10x10x128xf32, #tpu.memory_space<vmem>>, vector<8x8x128xf32>
    %126 = vector.shape_cast %125 : vector<8x8x128xf32> to vector<64x128xf32>
    %127 = arith.truncf %126 : vector<64x128xf32> to vector<64x128xbf16>
    %c4_114 = arith.constant 4 : index
    %c0_115 = arith.constant 0 : index
    %c0_116 = arith.constant 0 : index
    %128 = vector.load %arg8[%c4_114, %c0_115, %c0_116] : memref<9x128x128xbf16, #tpu.memory_space<vmem>>, vector<1x128x128xbf16>
    %129 = vector.shape_cast %128 : vector<1x128x128xbf16> to vector<128x128xbf16>
    %cst_117 = arith.constant dense<0.000000e+00> : vector<64x128xf32>
    %130 = tpu.matmul %127, %129, %cst_117 {dimension_numbers = #tpu.dot_dimension_numbers<[1], [0], [0], [1], [0, 0, 1, 1], [], []>} : vector<64x128xbf16>, vector<128x128xbf16>, vector<64x128xf32> -> vector<64x128xf32>
    %131 = arith.addf %124, %130 : vector<64x128xf32>
    %c1_118 = arith.constant 1 : index
    %c2_119 = arith.constant 2 : index
    %c0_120 = arith.constant 0 : index
    %132 = vector.load %arg12[%c1_118, %c2_119, %c0_120] : memref<10x10x128xf32, #tpu.memory_space<vmem>>, vector<8x8x128xf32>
    %133 = vector.shape_cast %132 : vector<8x8x128xf32> to vector<64x128xf32>
    %134 = arith.truncf %133 : vector<64x128xf32> to vector<64x128xbf16>
    %c5_121 = arith.constant 5 : index
    %c0_122 = arith.constant 0 : index
    %c0_123 = arith.constant 0 : index
    %135 = vector.load %arg8[%c5_121, %c0_122, %c0_123] : memref<9x128x128xbf16, #tpu.memory_space<vmem>>, vector<1x128x128xbf16>
    %136 = vector.shape_cast %135 : vector<1x128x128xbf16> to vector<128x128xbf16>
    %cst_124 = arith.constant dense<0.000000e+00> : vector<64x128xf32>
    %137 = tpu.matmul %134, %136, %cst_124 {dimension_numbers = #tpu.dot_dimension_numbers<[1], [0], [0], [1], [0, 0, 1, 1], [], []>} : vector<64x128xbf16>, vector<128x128xbf16>, vector<64x128xf32> -> vector<64x128xf32>
    %138 = arith.addf %131, %137 : vector<64x128xf32>
    %c2_125 = arith.constant 2 : index
    %c0_126 = arith.constant 0 : index
    %c0_127 = arith.constant 0 : index
    %139 = vector.load %arg12[%c2_125, %c0_126, %c0_127] : memref<10x10x128xf32, #tpu.memory_space<vmem>>, vector<8x8x128xf32>
    %140 = vector.shape_cast %139 : vector<8x8x128xf32> to vector<64x128xf32>
    %141 = arith.truncf %140 : vector<64x128xf32> to vector<64x128xbf16>
    %c6_128 = arith.constant 6 : index
    %c0_129 = arith.constant 0 : index
    %c0_130 = arith.constant 0 : index
    %142 = vector.load %arg8[%c6_128, %c0_129, %c0_130] : memref<9x128x128xbf16, #tpu.memory_space<vmem>>, vector<1x128x128xbf16>
    %143 = vector.shape_cast %142 : vector<1x128x128xbf16> to vector<128x128xbf16>
    %cst_131 = arith.constant dense<0.000000e+00> : vector<64x128xf32>
    %144 = tpu.matmul %141, %143, %cst_131 {dimension_numbers = #tpu.dot_dimension_numbers<[1], [0], [0], [1], [0, 0, 1, 1], [], []>} : vector<64x128xbf16>, vector<128x128xbf16>, vector<64x128xf32> -> vector<64x128xf32>
    %145 = arith.addf %138, %144 : vector<64x128xf32>
    %c2_132 = arith.constant 2 : index
    %c1_133 = arith.constant 1 : index
    %c0_134 = arith.constant 0 : index
    %146 = vector.load %arg12[%c2_132, %c1_133, %c0_134] : memref<10x10x128xf32, #tpu.memory_space<vmem>>, vector<8x8x128xf32>
    %147 = vector.shape_cast %146 : vector<8x8x128xf32> to vector<64x128xf32>
    %148 = arith.truncf %147 : vector<64x128xf32> to vector<64x128xbf16>
    %c7_135 = arith.constant 7 : index
    %c0_136 = arith.constant 0 : index
    %c0_137 = arith.constant 0 : index
    %149 = vector.load %arg8[%c7_135, %c0_136, %c0_137] : memref<9x128x128xbf16, #tpu.memory_space<vmem>>, vector<1x128x128xbf16>
    %150 = vector.shape_cast %149 : vector<1x128x128xbf16> to vector<128x128xbf16>
    %cst_138 = arith.constant dense<0.000000e+00> : vector<64x128xf32>
    %151 = tpu.matmul %148, %150, %cst_138 {dimension_numbers = #tpu.dot_dimension_numbers<[1], [0], [0], [1], [0, 0, 1, 1], [], []>} : vector<64x128xbf16>, vector<128x128xbf16>, vector<64x128xf32> -> vector<64x128xf32>
    %152 = arith.addf %145, %151 : vector<64x128xf32>
    %c2_139 = arith.constant 2 : index
    %c2_140 = arith.constant 2 : index
    %c0_141 = arith.constant 0 : index
    %153 = vector.load %arg12[%c2_139, %c2_140, %c0_141] : memref<10x10x128xf32, #tpu.memory_space<vmem>>, vector<8x8x128xf32>
    %154 = vector.shape_cast %153 : vector<8x8x128xf32> to vector<64x128xf32>
    %155 = arith.truncf %154 : vector<64x128xf32> to vector<64x128xbf16>
    %c8_142 = arith.constant 8 : index
    %c0_143 = arith.constant 0 : index
    %c0_144 = arith.constant 0 : index
    %156 = vector.load %arg8[%c8_142, %c0_143, %c0_144] : memref<9x128x128xbf16, #tpu.memory_space<vmem>>, vector<1x128x128xbf16>
    %157 = vector.shape_cast %156 : vector<1x128x128xbf16> to vector<128x128xbf16>
    %cst_145 = arith.constant dense<0.000000e+00> : vector<64x128xf32>
    %158 = tpu.matmul %155, %157, %cst_145 {dimension_numbers = #tpu.dot_dimension_numbers<[1], [0], [0], [1], [0, 0, 1, 1], [], []>} : vector<64x128xbf16>, vector<128x128xbf16>, vector<64x128xf32> -> vector<64x128xf32>
    %159 = arith.addf %152, %158 : vector<64x128xf32>
    %160 = vector.shape_cast %159 : vector<64x128xf32> to vector<1x64x128xf32>
    %c0_146 = arith.constant 0 : index
    %c0_147 = arith.constant 0 : index
    %c0_148 = arith.constant 0 : index
    %161 = vector.load %arg10[%c0_146, %c0_147, %c0_148] : memref<1x64x128xf32, #tpu.memory_space<vmem>>, vector<1x64x128xf32>
    tpu.vector_store %arg10[%c0_146, %c0_147, %c0_148], %160 {strides = array<i32>} : memref<1x64x128xf32, #tpu.memory_space<vmem>>, vector<1x64x128xf32>,
    return
  }
  func.func @transform_0(%arg0: i32) -> (i32, i32, i32, i32) {
    %c0_i32 = arith.constant 0 : i32
    %c0_i32_0 = arith.constant 0 : i32
    %c0_i32_1 = arith.constant 0 : i32
    %c0_i32_2 = arith.constant 0 : i32
    return %arg0, %c0_i32, %c0_i32_0, %c0_i32_1 : i32, i32, i32, i32
  }
  func.func @transform_1(%arg0: i32) -> (i32, i32, i32) {
    %c0_i32 = arith.constant 0 : i32
    %c0_i32_0 = arith.constant 0 : i32
    %c0_i32_1 = arith.constant 0 : i32
    %c0_i32_2 = arith.constant 0 : i32
    return %c0_i32, %c0_i32_0, %c0_i32_1 : i32, i32, i32
  }
  func.func @transform_2(%arg0: i32) -> (i32, i32) {
    %c0_i32 = arith.constant 0 : i32
    %c0_i32_0 = arith.constant 0 : i32
    %c0_i32_1 = arith.constant 0 : i32
    return %c0_i32, %c0_i32_0 : i32, i32
  }
  func.func @transform_3(%arg0: i32) -> (i32, i32) {
    %c0_i32 = arith.constant 0 : i32
    %c0_i32_0 = arith.constant 0 : i32
    %c0_i32_1 = arith.constant 0 : i32
    return %c0_i32, %c0_i32_0 : i32, i32
  }
  func.func @transform_4(%arg0: i32) -> (i32, i32, i32) {
    %c0_i32 = arith.constant 0 : i32
    %c0_i32_0 = arith.constant 0 : i32
    %c0_i32_1 = arith.constant 0 : i32
    %c0_i32_2 = arith.constant 0 : i32
    return %c0_i32, %c0_i32_0, %c0_i32_1 : i32, i32, i32
  }
  func.func @transform_5(%arg0: i32) -> (i32, i32) {
    %c0_i32 = arith.constant 0 : i32
    %c0_i32_0 = arith.constant 0 : i32
    %c0_i32_1 = arith.constant 0 : i32
    return %c0_i32, %c0_i32_0 : i32, i32
  }
  func.func @transform_6(%arg0: i32) -> (i32, i32) {
    %c0_i32 = arith.constant 0 : i32
    %c0_i32_0 = arith.constant 0 : i32
    %c0_i32_1 = arith.constant 0 : i32
    return %c0_i32, %c0_i32_0 : i32, i32
  }
  func.func @transform_7(%arg0: i32) -> (i32, i32, i32) {
    %c0_i32 = arith.constant 0 : i32
    %c0_i32_0 = arith.constant 0 : i32
    %c0_i32_1 = arith.constant 0 : i32
    %c0_i32_2 = arith.constant 0 : i32
    return %c0_i32, %c0_i32_0, %c0_i32_1 : i32, i32, i32
  }
  func.func @transform_8(%arg0: i32) -> (i32, i32) {
    %c0_i32 = arith.constant 0 : i32
    %c0_i32_0 = arith.constant 0 : i32
    %c0_i32_1 = arith.constant 0 : i32
    return %c0_i32, %c0_i32_0 : i32, i32
  }
  func.func @transform_9(%arg0: i32) -> (i32, i32, i32) {
    %c0_i32 = arith.constant 0 : i32
    %c0_i32_0 = arith.constant 0 : i32
    %c0_i32_1 = arith.constant 0 : i32
    return %arg0, %c0_i32, %c0_i32_0 : i32, i32, i32
  }
}

</mosaic_0001>

<llo_original>
// kernel: basic_block_forward.1
$region0: #{basic_block_forward.1}
  #allocation0 [shape = 'u32[]', space=smem, size = 0x4, offset = 0x4, fixed_abs, tag = 'smem constant byte address 0x4 - core index']
  #allocation1 [shape = 'u32[144,128]{1,0:T(1,128)}', space=vmem, size = 0x12000, scoped, tag = 'internal scratch']
  #allocation2 [shape = 'f32[36,9,4]{2,1,0:T(8,128)}', space=vmem, size = 0x48000, scoped, tag = 'scratch operand']
  #allocation3 [shape = 'f32[10,10,128]{2,1,0:T(8,128)}', space=vmem, size = 0x14000, scoped, tag = 'scratch operand']
  %s0 = inlined_call_operand.vmem [shape: f32[2,36,9,4], index: 0, kind: input, shape index: {}]
  %s1 = inlined_call_operand.vmem [shape: f32[36,9,1], index: 1, kind: input, shape index: {}]
  %s2 = inlined_call_operand.vmem [shape: f32[1,4], index: 2, kind: input, shape index: {}]
  %s3 = inlined_call_operand.vmem [shape: f32[1,4], index: 3, kind: input, shape index: {}]
  %s4 = inlined_call_operand.vmem [shape: bf16[9,4,128], index: 4, kind: input, shape index: {}]
  %s5 = inlined_call_operand.vmem [shape: f32[1,128], index: 5, kind: input, shape index: {}]
  %s6 = inlined_call_operand.vmem [shape: f32[1,128], index: 6, kind: input, shape index: {}]
  %s7 = inlined_call_operand.vmem [shape: bf16[9,128,128], index: 7, kind: input, shape index: {}]
  %s8 = inlined_call_operand.vmem [shape: bf16[4,128], index: 8, kind: input, shape index: {}]
  %s9 = inlined_call_operand.vmem [shape: f32[2,64,128], index: 9, kind: output, shape index: {}]
  %s10 = sld [smem:[#allocation0]]
  $region69: #{basic_block_forward.1} parent=0
    _
  %s12 = ssub.s32 1, %s10
  %s13 = scalar_select 0, %s12, %s10
  loop: start=0, step=1, limit=4
  $region2: #{basic_block_forward.1} parent=0 // loop_pre_header
    _
  $region3: #{basic_block_forward.1} parent=0 // loop_header
    %s15 = sphi 0, %s19
    %p16 = scmp.ge.s32.totalorder %s15, 4
    %s25 = sphi 0, %s27
    %s28 = sphi 0, %s25
    %s29 = sphi 0, %s28
    %s45 = sphi 0, %s29
    %s49 = sphi 0, %s49
    %s51 = sphi 0, %s49
    %s52 = sphi 0, %s51
    %s66 = sphi 0, %s52
    %s70 = sphi 0, %s70
    %s72 = sphi 0, %s70
    %s73 = sphi 0, %s72
    %s87 = sphi 0, %s73
    %s91 = sphi 0, %s91
    %s93 = sphi 0, %s91
    %s94 = sphi 0, %s93
    %s108 = sphi 0, %s94
    %s112 = sphi 0, %s112
    %s114 = sphi 0, %s112
    %s115 = sphi 0, %s114
    %s129 = sphi 0, %s115
    %s133 = sphi 0, %s133
    %s135 = sphi 0, %s133
    %s136 = sphi 0, %s135
    %s150 = sphi 0, %s136
    %s154 = sphi 0, %s154
    %s156 = sphi 0, %s154
    %s157 = sphi 0, %s156
    %s171 = sphi 0, %s157
    %s175 = sphi 0, %s175
    %s177 = sphi 0, %s175
    %s178 = sphi 0, %s177
    %s192 = sphi 0, %s178
    %s196 = sphi 0, %s196
    %s198 = sphi 0, %s196
    %s199 = sphi 0, %s198
    %s213 = sphi 0, %s199
    %s219 = sphi 0, %s221
    %s222 = sphi 0, %s219
    %s223 = sphi 0, %s222
    %s239 = sphi 0, %s223
  $region4: #{basic_block_forward.1} parent=0 // loop_header_branch
    %18 = sbr.rel (%p16) target = $region8
  $region5: #{basic_block_forward.1} parent=0 // loop_body
    %s20 = ssub.s32 %s15, 1
    %s21 = ssub.s32 %s15, 2
    %s22 = sadd.s32 %s15, 1
    %s23 = ssub.s32 %s15, %s22
    %p24 = scmp.eq.s32.totalorder %s23, 0
    %s26 = sadd.s32 %s25, 1
    %s27 = scalar_select %p24, %s25, %s26
    %p30 = pneg %p24
    %p31 = scmp.eq.s32.totalorder %s15, 1
    %p32 = por %p30, %p31
    %p33 = scmp.ne.s32.totalorder %s25, %s28
    %p34 = scmp.eq.s32.totalorder %s15, 0
    %p35 = por %p33, %p34
    %p36 = scmp.ne.s32.totalorder %s25, %s28
    %p37 = scmp.eq.s32.totalorder %s20, 1
    %p38 = por %p36, %p37
    %p39 = scmp.ne.s32.totalorder %s28, %s29
    %p40 = scmp.eq.s32.totalorder %s20, 0
    %p41 = por %p39, %p40
    %p42 = scmp.ne.s32.totalorder %s28, %s29
    %p43 = scmp.eq.s32.totalorder %s21, 1
    %p44 = por %p42, %p43
    %p46 = scmp.ne.s32.totalorder %s29, %s45
    %p47 = scmp.eq.s32.totalorder %s21, 0
    %p48 = por %p46, %p47
    %s50 = sadd.s32 %s49, 1
    %p53 = scmp.eq.s32.totalorder %s15, 1
    %p54 = scmp.ne.s32.totalorder %s49, %s51
    %p55 = scmp.eq.s32.totalorder %s15, 0
    %p56 = por %p54, %p55
    %p57 = scmp.ne.s32.totalorder %s49, %s51
    %p58 = scmp.eq.s32.totalorder %s20, 1
    %p59 = por %p57, %p58
    %p60 = scmp.ne.s32.totalorder %s51, %s52
    %p61 = scmp.eq.s32.totalorder %s20, 0
    %p62 = por %p60, %p61
    %p63 = scmp.ne.s32.totalorder %s51, %s52
    %p64 = scmp.eq.s32.totalorder %s21, 1
    %p65 = por %p63, %p64
    %p67 = scmp.ne.s32.totalorder %s52, %s66
    %p68 = scmp.eq.s32.totalorder %s21, 0
    %p69 = por %p67, %p68
    %s71 = sadd.s32 %s70, 1
    %p74 = scmp.eq.s32.totalorder %s15, 1
    %p75 = scmp.ne.s32.totalorder %s70, %s72
    %p76 = scmp.eq.s32.totalorder %s15, 0
    %p77 = por %p75, %p76
    %p78 = scmp.ne.s32.totalorder %s70, %s72
    %p79 = scmp.eq.s32.totalorder %s20, 1
    %p80 = por %p78, %p79
    %p81 = scmp.ne.s32.totalorder %s72, %s73
    %p82 = scmp.eq.s32.totalorder %s20, 0
    %p83 = por %p81, %p82
    %p84 = scmp.ne.s32.totalorder %s72, %s73
    %p85 = scmp.eq.s32.totalorder %s21, 1
    %p86 = por %p84, %p85
    %p88 = scmp.ne.s32.totalorder %s73, %s87
    %p89 = scmp.eq.s32.totalorder %s21, 0
    %p90 = por %p88, %p89
    %s92 = sadd.s32 %s91, 1
    %p95 = scmp.eq.s32.totalorder %s15, 1
    %p96 = scmp.ne.s32.totalorder %s91, %s93
    %p97 = scmp.eq.s32.totalorder %s15, 0
    %p98 = por %p96, %p97
    %p99 = scmp.ne.s32.totalorder %s91, %s93
    %p100 = scmp.eq.s32.totalorder %s20, 1
    %p101 = por %p99, %p100
    %p102 = scmp.ne.s32.totalorder %s93, %s94
    %p103 = scmp.eq.s32.totalorder %s20, 0
    %p104 = por %p102, %p103
    %p105 = scmp.ne.s32.totalorder %s93, %s94
    %p106 = scmp.eq.s32.totalorder %s21, 1
    %p107 = por %p105, %p106
    %p109 = scmp.ne.s32.totalorder %s94, %s108
    %p110 = scmp.eq.s32.totalorder %s21, 0
    %p111 = por %p109, %p110
    %s113 = sadd.s32 %s112, 1
    %p116 = scmp.eq.s32.totalorder %s15, 1
    %p117 = scmp.ne.s32.totalorder %s112, %s114
    %p118 = scmp.eq.s32.totalorder %s15, 0
    %p119 = por %p117, %p118
    %p120 = scmp.ne.s32.totalorder %s112, %s114
    %p121 = scmp.eq.s32.totalorder %s20, 1
    %p122 = por %p120, %p121
    %p123 = scmp.ne.s32.totalorder %s114, %s115
    %p124 = scmp.eq.s32.totalorder %s20, 0
    %p125 = por %p123, %p124
    %p126 = scmp.ne.s32.totalorder %s114, %s115
    %p127 = scmp.eq.s32.totalorder %s21, 1
    %p128 = por %p126, %p127
    %p130 = scmp.ne.s32.totalorder %s115, %s129
    %p131 = scmp.eq.s32.totalorder %s21, 0
    %p132 = por %p130, %p131
    %s134 = sadd.s32 %s133, 1
    %p137 = scmp.eq.s32.totalorder %s15, 1
    %p138 = scmp.ne.s32.totalorder %s133, %s135
    %p139 = scmp.eq.s32.totalorder %s15, 0
    %p140 = por %p138, %p139
    %p141 = scmp.ne.s32.totalorder %s133, %s135
    %p142 = scmp.eq.s32.totalorder %s20, 1
    %p143 = por %p141, %p142
    %p144 = scmp.ne.s32.totalorder %s135, %s136
    %p145 = scmp.eq.s32.totalorder %s20, 0
    %p146 = por %p144, %p145
    %p147 = scmp.ne.s32.totalorder %s135, %s136
    %p148 = scmp.eq.s32.totalorder %s21, 1
    %p149 = por %p147, %p148
    %p151 = scmp.ne.s32.totalorder %s136, %s150
    %p152 = scmp.eq.s32.totalorder %s21, 0
    %p153 = por %p151, %p152
    %s155 = sadd.s32 %s154, 1
    %p158 = scmp.eq.s32.totalorder %s15, 1
    %p159 = scmp.ne.s32.totalorder %s154, %s156
    %p160 = scmp.eq.s32.totalorder %s15, 0
    %p161 = por %p159, %p160
    %p162 = scmp.ne.s32.totalorder %s154, %s156
    %p163 = scmp.eq.s32.totalorder %s20, 1
    %p164 = por %p162, %p163
    %p165 = scmp.ne.s32.totalorder %s156, %s157
    %p166 = scmp.eq.s32.totalorder %s20, 0
    %p167 = por %p165, %p166
    %p168 = scmp.ne.s32.totalorder %s156, %s157
    %p169 = scmp.eq.s32.totalorder %s21, 1
    %p170 = por %p168, %p169
    %p172 = scmp.ne.s32.totalorder %s157, %s171
    %p173 = scmp.eq.s32.totalorder %s21, 0
    %p174 = por %p172, %p173
    %s176 = sadd.s32 %s175, 1
    %p179 = scmp.eq.s32.totalorder %s15, 1
    %p180 = scmp.ne.s32.totalorder %s175, %s177
    %p181 = scmp.eq.s32.totalorder %s15, 0
    %p182 = por %p180, %p181
    %p183 = scmp.ne.s32.totalorder %s175, %s177
    %p184 = scmp.eq.s32.totalorder %s20, 1
    %p185 = por %p183, %p184
    %p186 = scmp.ne.s32.totalorder %s177, %s178
    %p187 = scmp.eq.s32.totalorder %s20, 0
    %p188 = por %p186, %p187
    %p189 = scmp.ne.s32.totalorder %s177, %s178
    %p190 = scmp.eq.s32.totalorder %s21, 1
    %p191 = por %p189, %p190
    %p193 = scmp.ne.s32.totalorder %s178, %s192
    %p194 = scmp.eq.s32.totalorder %s21, 0
    %p195 = por %p193, %p194
    %s197 = sadd.s32 %s196, 1
    %p200 = scmp.eq.s32.totalorder %s15, 1
    %p201 = scmp.ne.s32.totalorder %s196, %s198
    %p202 = scmp.eq.s32.totalorder %s15, 0
    %p203 = por %p201, %p202
    %p204 = scmp.ne.s32.totalorder %s196, %s198
    %p205 = scmp.eq.s32.totalorder %s20, 1
    %p206 = por %p204, %p205
    %p207 = scmp.ne.s32.totalorder %s198, %s199
    %p208 = scmp.eq.s32.totalorder %s20, 0
    %p209 = por %p207, %p208
    %p210 = scmp.ne.s32.totalorder %s198, %s199
    %p211 = scmp.eq.s32.totalorder %s21, 1
    %p212 = por %p210, %p211
    %p214 = scmp.ne.s32.totalorder %s199, %s213
    %p215 = scmp.eq.s32.totalorder %s21, 0
    %p216 = por %p214, %p215
    %s217 = ssub.s32 %s15, %s22
    %p218 = scmp.eq.s32.totalorder %s217, 0
    %s220 = sadd.s32 %s219, 1
    %s221 = scalar_select %p218, %s219, %s220
    %p224 = pneg %p218
    %p225 = scmp.eq.s32.totalorder %s15, 1
    %p226 = por %p224, %p225
    %p227 = scmp.ne.s32.totalorder %s219, %s222
    %p228 = scmp.eq.s32.totalorder %s15, 0
    %p229 = por %p227, %p228
    %p230 = scmp.ne.s32.totalorder %s219, %s222
    %p231 = scmp.eq.s32.totalorder %s20, 1
    %p232 = por %p230, %p231
    %p233 = scmp.ne.s32.totalorder %s222, %s223
    %p234 = scmp.eq.s32.totalorder %s20, 0
    %p235 = por %p233, %p234
    %p236 = scmp.ne.s32.totalorder %s222, %s223
    %p237 = scmp.eq.s32.totalorder %s21, 1
    %p238 = por %p236, %p237
    %p240 = scmp.ne.s32.totalorder %s223, %s239
    %p241 = scmp.eq.s32.totalorder %s21, 0
    %p242 = por %p240, %p241
    %p243 = scmp.le.s32.totalorder 1, %s15
    %p244 = scmp.lt.s32.totalorder %s15, 3
    %p245 = pnand %p243, %p244
    %p246 = pneg %p245
    // Predicated region
    $region9: #{basic_block_forward.1} parent=5 // pred_check
      _
    $region10: #{basic_block_forward.1} parent=5 // pred_check_branch
      %248 = sbr.rel (%p245) target = $region12
    $region11: #{basic_block_forward.1} parent=5 // pred_region
      %s249 = ssub.s32 %s15, 1
      // Predicated region
      $region13: #{basic_block_forward.1} parent=11 // pred_check
        %p250 = pneg %p62
      $region14: #{basic_block_forward.1} parent=11 // pred_check_branch
        %252 = sbr.rel (%p250) target = $region16
      $region15: #{basic_block_forward.1} parent=11 // pred_region
        _
      $region16: #{basic_block_forward.1} parent=11 // pred_fallthru
        _
      // Predicated region
      $region17: #{basic_block_forward.1} parent=11 // pred_check
        %p253 = pneg %p83
      $region18: #{basic_block_forward.1} parent=11 // pred_check_branch
        %255 = sbr.rel (%p253) target = $region20
      $region19: #{basic_block_forward.1} parent=11 // pred_region
        _
      $region20: #{basic_block_forward.1} parent=11 // pred_fallthru
        _
      // Predicated region
      $region21: #{basic_block_forward.1} parent=11 // pred_check
        %p256 = pneg %p104
      $region22: #{basic_block_forward.1} parent=11 // pred_check_branch
        %258 = sbr.rel (%p256) target = $region24
      $region23: #{basic_block_forward.1} parent=11 // pred_region
        _
      $region24: #{basic_block_forward.1} parent=11 // pred_fallthru
        _
      // Predicated region
      $region25: #{basic_block_forward.1} parent=11 // pred_check
        %p259 = pneg %p125
      $region26: #{basic_block_forward.1} parent=11 // pred_check_branch
        %261 = sbr.rel (%p259) target = $region28
      $region27: #{basic_block_forward.1} parent=11 // pred_region
        _
      $region28: #{basic_block_forward.1} parent=11 // pred_fallthru
        _
      // Predicated region
      $region29: #{basic_block_forward.1} parent=11 // pred_check
        %p262 = pneg %p146
      $region30: #{basic_block_forward.1} parent=11 // pred_check_branch
        %264 = sbr.rel (%p262) target = $region32
      $region31: #{basic_block_forward.1} parent=11 // pred_region
        _
      $region32: #{basic_block_forward.1} parent=11 // pred_fallthru
        _
      // Predicated region
      $region33: #{basic_block_forward.1} parent=11 // pred_check
        %p265 = pneg %p167
      $region34: #{basic_block_forward.1} parent=11 // pred_check_branch
        %267 = sbr.rel (%p265) target = $region36
      $region35: #{basic_block_forward.1} parent=11 // pred_region
        _
      $region36: #{basic_block_forward.1} parent=11 // pred_fallthru
        _
      // Predicated region
      $region37: #{basic_block_forward.1} parent=11 // pred_check
        %p268 = pneg %p188
      $region38: #{basic_block_forward.1} parent=11 // pred_check_branch
        %270 = sbr.rel (%p268) target = $region40
      $region39: #{basic_block_forward.1} parent=11 // pred_region
        _
      $region40: #{basic_block_forward.1} parent=11 // pred_fallthru
        _
      // Predicated region
      $region41: #{basic_block_forward.1} parent=11 // pred_check
        %p271 = pneg %p209
      $region42: #{basic_block_forward.1} parent=11 // pred_check_branch
        %273 = sbr.rel (%p271) target = $region44
      $region43: #{basic_block_forward.1} parent=11 // pred_region
        _
      $region44: #{basic_block_forward.1} parent=11 // pred_fallthru
        _
    $region12: #{basic_block_forward.1} parent=5 // pred_fallthru
      _
    %p274 = scmp.lt.s32.totalorder %s15, 2
    // Predicated region
    $region45: #{basic_block_forward.1} parent=5 // pred_check
      %p275 = pneg %p274
    $region46: #{basic_block_forward.1} parent=5 // pred_check_branch
      %277 = sbr.rel (%p275) target = $region48
    $region47: #{basic_block_forward.1} parent=5 // pred_region
      // Predicated region
      $region49: #{basic_block_forward.1} parent=47 // pred_check
        %p278 = pneg %p35
      $region50: #{basic_block_forward.1} parent=47 // pred_check_branch
        %280 = sbr.rel (%p278) target = $region52
      $region51: #{basic_block_forward.1} parent=47 // pred_region
        %p281 = scmp.lt.s32.totalorder %s15, 1
        %s282 = scalar_select %p281, %s15, 1
        %s283 = smul.addr %s282, 72
        %s284 = smul.addr %s283, 8
        %s285 = scalar_lea.vmem %s0, %s284
      $region52: #{basic_block_forward.1} parent=47 // pred_fallthru
        _
    $region48: #{basic_block_forward.1} parent=5 // pred_fallthru
      _
    %p286 = scmp.le.s32.totalorder 1, %s15
    %p287 = scmp.lt.s32.totalorder %s15, 3
    %p288 = pnand %p286, %p287
    %p289 = pneg %p288
    // Predicated region
    $region53: #{basic_block_forward.1} parent=5 // pred_check
      _
    $region54: #{basic_block_forward.1} parent=5 // pred_check_branch
      %291 = sbr.rel (%p288) target = $region56
    $region55: #{basic_block_forward.1} parent=5 // pred_region
      %s292 = ssub.s32 %s15, 1
      %p293 = scmp.lt.s32.totalorder %s20, 1
      %s294 = scalar_select %p293, %s20, 1
      %s295 = smul.addr %s294, 72
      %s296 = smul.addr %s295, 8
      %s297 = scalar_lea.vmem %s0, %s296
      %p298 = pneg %p41
      %p299 = pneg %p38
      %p300 = pneg %p62
      %p301 = pneg %p59
      %p302 = pneg %p83
      %p303 = pneg %p80
      %p304 = pneg %p104
      %p305 = pneg %p101
      %p306 = pneg %p125
      %p307 = pneg %p122
      %p308 = pneg %p146
      %p309 = pneg %p143
      %p310 = pneg %p167
      %p311 = pneg %p164
      %p312 = pneg %p188
      %p313 = pneg %p185
      %p314 = pneg %p209
      %p315 = pneg %p206
      %p316 = pneg %p235
      %p317 = pneg %p232
      %p318 = scmp.lt.s32.totalorder %s20, 1
      %s319 = scalar_select %p318, %s20, 1
      %s320 = smul.addr %s319, 8
      %s321 = smul.addr %s320, 8
      %s322 = scalar_lea.vmem %s9, %s321
      %p323 = scmp.lt.s32.totalorder %s20, 1
      %s324 = scalar_select %p323, %s20, 1
      %s325 = smul.addr %s324, 72
      %s326 = smul.addr %s325, 8
      %s327 = scalar_lea.vmem %s0, %s326
      %p328 = scmp.lt.s32.totalorder %s20, 1
      %s329 = scalar_select %p328, %s20, 1
      %s330 = smul.addr %s329, 8
      %s331 = smul.addr %s330, 8
      %s332 = scalar_lea.vmem %s9, %s331
      %v334 = vld [vmem:[%s327] sm:$0xff]
      %v335 = vld [vmem:[%s327 + $0x8] sm:$0x1]
      %v336 = vld [vmem:[%s327 + $0x10] sm:$0xff]
      %v337 = vld [vmem:[%s327 + $0x18] sm:$0x1]
      %v338 = vld [vmem:[%s327 + $0x20] sm:$0xff]
      %v339 = vld [vmem:[%s327 + $0x28] sm:$0x1]
      %v340 = vld [vmem:[%s327 + $0x30] sm:$0xff]
      %v341 = vld [vmem:[%s327 + $0x38] sm:$0x1]
      %v342 = vld [vmem:[%s327 + $0x40] sm:$0xff]
      %v343 = vld [vmem:[%s327 + $0x48] sm:$0x1]
      %v344 = vld [vmem:[%s327 + $0x50] sm:$0xff]
      %v345 = vld [vmem:[%s327 + $0x58] sm:$0x1]
      %v346 = vld [vmem:[%s327 + $0x60] sm:$0xff]
      %v347 = vld [vmem:[%s327 + $0x68] sm:$0x1]
      %v348 = vld [vmem:[%s327 + $0x70] sm:$0xff]
      %v349 = vld [vmem:[%s327 + $0x78] sm:$0x1]
      %v350 = vld [vmem:[%s327 + $0x80] sm:$0xff]
      %v351 = vld [vmem:[%s327 + $0x88] sm:$0x1]
      %v352 = vld [vmem:[%s327 + $0x90] sm:$0xff]
      %v353 = vld [vmem:[%s327 + $0x98] sm:$0x1]
      %v354 = vld [vmem:[%s327 + $0xa0] sm:$0xff]
      %v355 = vld [vmem:[%s327 + $0xa8] sm:$0x1]
      %v356 = vld [vmem:[%s327 + $0xb0] sm:$0xff]
      %v357 = vld [vmem:[%s327 + $0xb8] sm:$0x1]
      %v358 = vld [vmem:[%s327 + $0xc0] sm:$0xff]
      %v359 = vld [vmem:[%s327 + $0xc8] sm:$0x1]
      %v360 = vld [vmem:[%s327 + $0xd0] sm:$0xff]
      %v361 = vld [vmem:[%s327 + $0xd8] sm:$0x1]
      %v362 = vld [vmem:[%s327 + $0xe0] sm:$0xff]
      %v363 = vld [vmem:[%s327 + $0xe8] sm:$0x1]
      %v364 = vld [vmem:[%s327 + $0xf0] sm:$0xff]
      %v365 = vld [vmem:[%s327 + $0xf8] sm:$0x1]
      %v366 = vld [vmem:[%s327 + $0x100] sm:$0xff]
      %v367 = vld [vmem:[%s327 + $0x108] sm:$0x1]
      %v368 = vld [vmem:[%s327 + $0x110] sm:$0xff]
      %v369 = vld [vmem:[%s327 + $0x118] sm:$0x1]
      %v370 = vld [vmem:[%s327 + $0x120] sm:$0xff]
      %v371 = vld [vmem:[%s327 + $0x128] sm:$0x1]
      %v372 = vld [vmem:[%s327 + $0x130] sm:$0xff]
      %v373 = vld [vmem:[%s327 + $0x138] sm:$0x1]
      %v374 = vld [vmem:[%s327 + $0x140] sm:$0xff]
      %v375 = vld [vmem:[%s327 + $0x148] sm:$0x1]
      %v376 = vld [vmem:[%s327 + $0x150] sm:$0xff]
      %v377 = vld [vmem:[%s327 + $0x158] sm:$0x1]
      %v378 = vld [vmem:[%s327 + $0x160] sm:$0xff]
      %v379 = vld [vmem:[%s327 + $0x168] sm:$0x1]
      %v380 = vld [vmem:[%s327 + $0x170] sm:$0xff]
      %v381 = vld [vmem:[%s327 + $0x178] sm:$0x1]
      %v382 = vld [vmem:[%s327 + $0x180] sm:$0xff]
      %v383 = vld [vmem:[%s327 + $0x188] sm:$0x1]
      %v384 = vld [vmem:[%s327 + $0x190] sm:$0xff]
      %v385 = vld [vmem:[%s327 + $0x198] sm:$0x1]
      %v386 = vld [vmem:[%s327 + $0x1a0] sm:$0xff]
      %v387 = vld [vmem:[%s327 + $0x1a8] sm:$0x1]
      %v388 = vld [vmem:[%s327 + $0x1b0] sm:$0xff]
      %v389 = vld [vmem:[%s327 + $0x1b8] sm:$0x1]
      %v390 = vld [vmem:[%s327 + $0x1c0] sm:$0xff]
      %v391 = vld [vmem:[%s327 + $0x1c8] sm:$0x1]
      %v392 = vld [vmem:[%s327 + $0x1d0] sm:$0xff]
      %v393 = vld [vmem:[%s327 + $0x1d8] sm:$0x1]
      %v394 = vld [vmem:[%s327 + $0x1e0] sm:$0xff]
      %v395 = vld [vmem:[%s327 + $0x1e8] sm:$0x1]
      %v396 = vld [vmem:[%s327 + $0x1f0] sm:$0xff]
      %v397 = vld [vmem:[%s327 + $0x1f8] sm:$0x1]
      %v398 = vld [vmem:[%s327 + $0x200] sm:$0xff]
      %v399 = vld [vmem:[%s327 + $0x208] sm:$0x1]
      %v400 = vld [vmem:[%s327 + $0x210] sm:$0xff]
      %v401 = vld [vmem:[%s327 + $0x218] sm:$0x1]
      %v402 = vld [vmem:[%s327 + $0x220] sm:$0xff]
      %v403 = vld [vmem:[%s327 + $0x228] sm:$0x1]
      %v404 = vld [vmem:[%s327 + $0x230] sm:$0xff]
      %v405 = vld [vmem:[%s327 + $0x238] sm:$0x1]
      %v406 = vld [vmem:[%s2] sm:$0x1]
      %v408 = vlaneseq
      %v409 = vshrl.u32 %v408, 7
      %v410 = vsub.s32 0, %v409
      %v411 = vrot.slane %v406, %v410
      %v413 = vmul.f32 %v334, %v411
      %v414 = vmul.f32 %v335, %v411
      %v415 = vmul.f32 %v336, %v411
      %v416 = vmul.f32 %v337, %v411
      %v417 = vmul.f32 %v338, %v411
      %v418 = vmul.f32 %v339, %v411
      %v419 = vmul.f32 %v340, %v411
      %v420 = vmul.f32 %v341, %v411
      %v421 = vmul.f32 %v342, %v411
      %v422 = vmul.f32 %v343, %v411
      %v423 = vmul.f32 %v344, %v411
      %v424 = vmul.f32 %v345, %v411
      %v425 = vmul.f32 %v346, %v411
      %v426 = vmul.f32 %v347, %v411
      %v427 = vmul.f32 %v348, %v411
      %v428 = vmul.f32 %v349, %v411
      %v429 = vmul.f32 %v350, %v411
      %v430 = vmul.f32 %v351, %v411
      %v431 = vmul.f32 %v352, %v411
      %v432 = vmul.f32 %v353, %v411
      %v433 = vmul.f32 %v354, %v411
      %v434 = vmul.f32 %v355, %v411
      %v435 = vmul.f32 %v356, %v411
      %v436 = vmul.f32 %v357, %v411
      %v437 = vmul.f32 %v358, %v411
      %v438 = vmul.f32 %v359, %v411
      %v439 = vmul.f32 %v360, %v411
      %v440 = vmul.f32 %v361, %v411
      %v441 = vmul.f32 %v362, %v411
      %v442 = vmul.f32 %v363, %v411
      %v443 = vmul.f32 %v364, %v411
      %v444 = vmul.f32 %v365, %v411
      %v445 = vmul.f32 %v366, %v411
      %v446 = vmul.f32 %v367, %v411
      %v447 = vmul.f32 %v368, %v411
      %v448 = vmul.f32 %v369, %v411
      %v449 = vmul.f32 %v370, %v411
      %v450 = vmul.f32 %v371, %v411
      %v451 = vmul.f32 %v372, %v411
      %v452 = vmul.f32 %v373, %v411
      %v453 = vmul.f32 %v374, %v411
      %v454 = vmul.f32 %v375, %v411
      %v455 = vmul.f32 %v376, %v411
      %v456 = vmul.f32 %v377, %v411
      %v457 = vmul.f32 %v378, %v411
      %v458 = vmul.f32 %v379, %v411
      %v459 = vmul.f32 %v380, %v411
      %v460 = vmul.f32 %v381, %v411
      %v461 = vmul.f32 %v382, %v411
      %v462 = vmul.f32 %v383, %v411
      %v463 = vmul.f32 %v384, %v411
      %v464 = vmul.f32 %v385, %v411
      %v465 = vmul.f32 %v386, %v411
      %v466 = vmul.f32 %v387, %v411
      %v467 = vmul.f32 %v388, %v411
      %v468 = vmul.f32 %v389, %v411
      %v469 = vmul.f32 %v390, %v411
      %v470 = vmul.f32 %v391, %v411
      %v471 = vmul.f32 %v392, %v411
      %v472 = vmul.f32 %v393, %v411
      %v473 = vmul.f32 %v394, %v411
      %v474 = vmul.f32 %v395, %v411
      %v475 = vmul.f32 %v396, %v411
      %v476 = vmul.f32 %v397, %v411
      %v477 = vmul.f32 %v398, %v411
      %v478 = vmul.f32 %v399, %v411
      %v479 = vmul.f32 %v400, %v411
      %v480 = vmul.f32 %v401, %v411
      %v481 = vmul.f32 %v402, %v411
      %v482 = vmul.f32 %v403, %v411
      %v483 = vmul.f32 %v404, %v411
      %v484 = vmul.f32 %v405, %v411
      %v485 = vld [vmem:[%s3] sm:$0x1]
      %v487 = vlaneseq
      %v488 = vshrl.u32 %v487, 7
      %v489 = vsub.s32 0, %v488
      %v490 = vrot.slane %v485, %v489
      %v492 = vadd.f32 %v413, %v490
      %v493 = vadd.f32 %v414, %v490
      %v494 = vadd.f32 %v415, %v490
      %v495 = vadd.f32 %v416, %v490
      %v496 = vadd.f32 %v417, %v490
      %v497 = vadd.f32 %v418, %v490
      %v498 = vadd.f32 %v419, %v490
      %v499 = vadd.f32 %v420, %v490
      %v500 = vadd.f32 %v421, %v490
      %v501 = vadd.f32 %v422, %v490
      %v502 = vadd.f32 %v423, %v490
      %v503 = vadd.f32 %v424, %v490
      %v504 = vadd.f32 %v425, %v490
      %v505 = vadd.f32 %v426, %v490
      %v506 = vadd.f32 %v427, %v490
      %v507 = vadd.f32 %v428, %v490
      %v508 = vadd.f32 %v429, %v490
      %v509 = vadd.f32 %v430, %v490
      %v510 = vadd.f32 %v431, %v490
      %v511 = vadd.f32 %v432, %v490
      %v512 = vadd.f32 %v433, %v490
      %v513 = vadd.f32 %v434, %v490
      %v514 = vadd.f32 %v435, %v490
      %v515 = vadd.f32 %v436, %v490
      %v516 = vadd.f32 %v437, %v490
      %v517 = vadd.f32 %v438, %v490
      %v518 = vadd.f32 %v439, %v490
      %v519 = vadd.f32 %v440, %v490
      %v520 = vadd.f32 %v441, %v490
      %v521 = vadd.f32 %v442, %v490
      %v522 = vadd.f32 %v443, %v490
      %v523 = vadd.f32 %v444, %v490
      %v524 = vadd.f32 %v445, %v490
      %v525 = vadd.f32 %v446, %v490
      %v526 = vadd.f32 %v447, %v490
      %v527 = vadd.f32 %v448, %v490
      %v528 = vadd.f32 %v449, %v490
      %v529 = vadd.f32 %v450, %v490
      %v530 = vadd.f32 %v451, %v490
      %v531 = vadd.f32 %v452, %v490
      %v532 = vadd.f32 %v453, %v490
      %v533 = vadd.f32 %v454, %v490
      %v534 = vadd.f32 %v455, %v490
      %v535 = vadd.f32 %v456, %v490
      %v536 = vadd.f32 %v457, %v490
      %v537 = vadd.f32 %v458, %v490
      %v538 = vadd.f32 %v459, %v490
      %v539 = vadd.f32 %v460, %v490
      %v540 = vadd.f32 %v461, %v490
      %v541 = vadd.f32 %v462, %v490
      %v542 = vadd.f32 %v463, %v490
      %v543 = vadd.f32 %v464, %v490
      %v544 = vadd.f32 %v465, %v490
      %v545 = vadd.f32 %v466, %v490
      %v546 = vadd.f32 %v467, %v490
      %v547 = vadd.f32 %v468, %v490
      %v548 = vadd.f32 %v469, %v490
      %v549 = vadd.f32 %v470, %v490
      %v550 = vadd.f32 %v471, %v490
      %v551 = vadd.f32 %v472, %v490
      %v552 = vadd.f32 %v473, %v490
      %v553 = vadd.f32 %v474, %v490
      %v554 = vadd.f32 %v475, %v490
      %v555 = vadd.f32 %v476, %v490
      %v556 = vadd.f32 %v477, %v490
      %v557 = vadd.f32 %v478, %v490
      %v558 = vadd.f32 %v479, %v490
      %v559 = vadd.f32 %v480, %v490
      %v560 = vadd.f32 %v481, %v490
      %v561 = vadd.f32 %v482, %v490
      %v562 = vadd.f32 %v483, %v490
      %v563 = vadd.f32 %v484, %v490
      %v564 = vmax.f32 %v492, 0.0
      %v565 = vmax.f32 %v493, 0.0
      %v566 = vmax.f32 %v494, 0.0
      %v567 = vmax.f32 %v495, 0.0
      %v568 = vmax.f32 %v496, 0.0
      %v569 = vmax.f32 %v497, 0.0
      %v570 = vmax.f32 %v498, 0.0
      %v571 = vmax.f32 %v499, 0.0
      %v572 = vmax.f32 %v500, 0.0
      %v573 = vmax.f32 %v501, 0.0
      %v574 = vmax.f32 %v502, 0.0
      %v575 = vmax.f32 %v503, 0.0
      %v576 = vmax.f32 %v504, 0.0
      %v577 = vmax.f32 %v505, 0.0
      %v578 = vmax.f32 %v506, 0.0
      %v579 = vmax.f32 %v507, 0.0
      %v580 = vmax.f32 %v508, 0.0
      %v581 = vmax.f32 %v509, 0.0
      %v582 = vmax.f32 %v510, 0.0
      %v583 = vmax.f32 %v511, 0.0
      %v584 = vmax.f32 %v512, 0.0
      %v585 = vmax.f32 %v513, 0.0
      %v586 = vmax.f32 %v514, 0.0
      %v587 = vmax.f32 %v515, 0.0
      %v588 = vmax.f32 %v516, 0.0
      %v589 = vmax.f32 %v517, 0.0
      %v590 = vmax.f32 %v518, 0.0
      %v591 = vmax.f32 %v519, 0.0
      %v592 = vmax.f32 %v520, 0.0
      %v593 = vmax.f32 %v521, 0.0
      %v594 = vmax.f32 %v522, 0.0
      %v595 = vmax.f32 %v523, 0.0
      %v596 = vmax.f32 %v524, 0.0
      %v597 = vmax.f32 %v525, 0.0
      %v598 = vmax.f32 %v526, 0.0
      %v599 = vmax.f32 %v527, 0.0
      %v600 = vmax.f32 %v528, 0.0
      %v601 = vmax.f32 %v529, 0.0
      %v602 = vmax.f32 %v530, 0.0
      %v603 = vmax.f32 %v531, 0.0
      %v604 = vmax.f32 %v532, 0.0
      %v605 = vmax.f32 %v533, 0.0
      %v606 = vmax.f32 %v534, 0.0
      %v607 = vmax.f32 %v535, 0.0
      %v608 = vmax.f32 %v536, 0.0
      %v609 = vmax.f32 %v537, 0.0
      %v610 = vmax.f32 %v538, 0.0
      %v611 = vmax.f32 %v539, 0.0
      %v612 = vmax.f32 %v540, 0.0
      %v613 = vmax.f32 %v541, 0.0
      %v614 = vmax.f32 %v542, 0.0
      %v615 = vmax.f32 %v543, 0.0
      %v616 = vmax.f32 %v544, 0.0
      %v617 = vmax.f32 %v545, 0.0
      %v618 = vmax.f32 %v546, 0.0
      %v619 = vmax.f32 %v547, 0.0
      %v620 = vmax.f32 %v548, 0.0
      %v621 = vmax.f32 %v549, 0.0
      %v622 = vmax.f32 %v550, 0.0
      %v623 = vmax.f32 %v551, 0.0
      %v624 = vmax.f32 %v552, 0.0
      %v625 = vmax.f32 %v553, 0.0
      %v626 = vmax.f32 %v554, 0.0
      %v627 = vmax.f32 %v555, 0.0
      %v628 = vmax.f32 %v556, 0.0
      %v629 = vmax.f32 %v557, 0.0
      %v630 = vmax.f32 %v558, 0.0
      %v631 = vmax.f32 %v559, 0.0
      %v632 = vmax.f32 %v560, 0.0
      %v633 = vmax.f32 %v561, 0.0
      %v634 = vmax.f32 %v562, 0.0
      %v635 = vmax.f32 %v563, 0.0
      %v636 = vld [vmem:[%s1] sm:$0xff]
      %v637 = vld [vmem:[%s1 + $0x8] sm:$0x1]
      %v638 = vld [vmem:[%s1 + $0x10] sm:$0xff]
      %v639 = vld [vmem:[%s1 + $0x18] sm:$0x1]
      %v640 = vld [vmem:[%s1 + $0x20] sm:$0xff]
      %v641 = vld [vmem:[%s1 + $0x28] sm:$0x1]
      %v642 = vld [vmem:[%s1 + $0x30] sm:$0xff]
      %v643 = vld [vmem:[%s1 + $0x38] sm:$0x1]
      %v644 = vld [vmem:[%s1 + $0x40] sm:$0xff]
      %v645 = vld [vmem:[%s1 + $0x48] sm:$0x1]
      %v646 = vld [vmem:[%s1 + $0x50] sm:$0xff]
      %v647 = vld [vmem:[%s1 + $0x58] sm:$0x1]
      %v648 = vld [vmem:[%s1 + $0x60] sm:$0xff]
      %v649 = vld [vmem:[%s1 + $0x68] sm:$0x1]
      %v650 = vld [vmem:[%s1 + $0x70] sm:$0xff]
      %v651 = vld [vmem:[%s1 + $0x78] sm:$0x1]
      %v652 = vld [vmem:[%s1 + $0x80] sm:$0xff]
      %v653 = vld [vmem:[%s1 + $0x88] sm:$0x1]
      %v654 = vld [vmem:[%s1 + $0x90] sm:$0xff]
      %v655 = vld [vmem:[%s1 + $0x98] sm:$0x1]
      %v656 = vld [vmem:[%s1 + $0xa0] sm:$0xff]
      %v657 = vld [vmem:[%s1 + $0xa8] sm:$0x1]
      %v658 = vld [vmem:[%s1 + $0xb0] sm:$0xff]
      %v659 = vld [vmem:[%s1 + $0xb8] sm:$0x1]
      %v660 = vld [vmem:[%s1 + $0xc0] sm:$0xff]
      %v661 = vld [vmem:[%s1 + $0xc8] sm:$0x1]
      %v662 = vld [vmem:[%s1 + $0xd0] sm:$0xff]
      %v663 = vld [vmem:[%s1 + $0xd8] sm:$0x1]
      %v664 = vld [vmem:[%s1 + $0xe0] sm:$0xff]
      %v665 = vld [vmem:[%s1 + $0xe8] sm:$0x1]
      %v666 = vld [vmem:[%s1 + $0xf0] sm:$0xff]
      %v667 = vld [vmem:[%s1 + $0xf8] sm:$0x1]
      %v668 = vld [vmem:[%s1 + $0x100] sm:$0xff]
      %v669 = vld [vmem:[%s1 + $0x108] sm:$0x1]
      %v670 = vld [vmem:[%s1 + $0x110] sm:$0xff]
      %v671 = vld [vmem:[%s1 + $0x118] sm:$0x1]
      %v672 = vld [vmem:[%s1 + $0x120] sm:$0xff]
      %v673 = vld [vmem:[%s1 + $0x128] sm:$0x1]
      %v674 = vld [vmem:[%s1 + $0x130] sm:$0xff]
      %v675 = vld [vmem:[%s1 + $0x138] sm:$0x1]
      %v676 = vld [vmem:[%s1 + $0x140] sm:$0xff]
      %v677 = vld [vmem:[%s1 + $0x148] sm:$0x1]
      %v678 = vld [vmem:[%s1 + $0x150] sm:$0xff]
      %v679 = vld [vmem:[%s1 + $0x158] sm:$0x1]
      %v680 = vld [vmem:[%s1 + $0x160] sm:$0xff]
      %v681 = vld [vmem:[%s1 + $0x168] sm:$0x1]
      %v682 = vld [vmem:[%s1 + $0x170] sm:$0xff]
      %v683 = vld [vmem:[%s1 + $0x178] sm:$0x1]
      %v684 = vld [vmem:[%s1 + $0x180] sm:$0xff]
      %v685 = vld [vmem:[%s1 + $0x188] sm:$0x1]
      %v686 = vld [vmem:[%s1 + $0x190] sm:$0xff]
      %v687 = vld [vmem:[%s1 + $0x198] sm:$0x1]
      %v688 = vld [vmem:[%s1 + $0x1a0] sm:$0xff]
      %v689 = vld [vmem:[%s1 + $0x1a8] sm:$0x1]
      %v690 = vld [vmem:[%s1 + $0x1b0] sm:$0xff]
      %v691 = vld [vmem:[%s1 + $0x1b8] sm:$0x1]
      %v692 = vld [vmem:[%s1 + $0x1c0] sm:$0xff]
      %v693 = vld [vmem:[%s1 + $0x1c8] sm:$0x1]
      %v694 = vld [vmem:[%s1 + $0x1d0] sm:$0xff]
      %v695 = vld [vmem:[%s1 + $0x1d8] sm:$0x1]
      %v696 = vld [vmem:[%s1 + $0x1e0] sm:$0xff]
      %v697 = vld [vmem:[%s1 + $0x1e8] sm:$0x1]
      %v698 = vld [vmem:[%s1 + $0x1f0] sm:$0xff]
      %v699 = vld [vmem:[%s1 + $0x1f8] sm:$0x1]
      %v700 = vld [vmem:[%s1 + $0x200] sm:$0xff]
      %v701 = vld [vmem:[%s1 + $0x208] sm:$0x1]
      %v702 = vld [vmem:[%s1 + $0x210] sm:$0xff]
      %v703 = vld [vmem:[%s1 + $0x218] sm:$0x1]
      %v704 = vld [vmem:[%s1 + $0x220] sm:$0xff]
      %v705 = vld [vmem:[%s1 + $0x228] sm:$0x1]
      %v706 = vld [vmem:[%s1 + $0x230] sm:$0xff]
      %v707 = vld [vmem:[%s1 + $0x238] sm:$0x1]
      %709 = vset.pattern.permute.xlu0 0
      %710 = vperm.xlu0 %709, %v636
      %v711 = vpop.permute.xlu0 %710
      %714 = vset.pattern.permute.xlu0 0
      %715 = vperm.xlu0 %714, %v637
      %v716 = vpop.permute.xlu0 %715
      %719 = vset.pattern.permute.xlu0 0
      %720 = vperm.xlu0 %719, %v638
      %v721 = vpop.permute.xlu0 %720
      %724 = vset.pattern.permute.xlu0 0
      %725 = vperm.xlu0 %724, %v639
      %v726 = vpop.permute.xlu0 %725
      %729 = vset.pattern.permute.xlu0 0
      %730 = vperm.xlu0 %729, %v640
      %v731 = vpop.permute.xlu0 %730
      %734 = vset.pattern.permute.xlu0 0
      %735 = vperm.xlu0 %734, %v641
      %v736 = vpop.permute.xlu0 %735
      %739 = vset.pattern.permute.xlu0 0
      %740 = vperm.xlu0 %739, %v642
      %v741 = vpop.permute.xlu0 %740
      %744 = vset.pattern.permute.xlu0 0
      %745 = vperm.xlu0 %744, %v643
      %v746 = vpop.permute.xlu0 %745
      %749 = vset.pattern.permute.xlu0 0
      %750 = vperm.xlu0 %749, %v644
      %v751 = vpop.permute.xlu0 %750
      %754 = vset.pattern.permute.xlu0 0
      %755 = vperm.xlu0 %754, %v645
      %v756 = vpop.permute.xlu0 %755
      %759 = vset.pattern.permute.xlu0 0
      %760 = vperm.xlu0 %759, %v646
      %v761 = vpop.permute.xlu0 %760
      %764 = vset.pattern.permute.xlu0 0
      %765 = vperm.xlu0 %764, %v647
      %v766 = vpop.permute.xlu0 %765
      %769 = vset.pattern.permute.xlu0 0
      %770 = vperm.xlu0 %769, %v648
      %v771 = vpop.permute.xlu0 %770
      %774 = vset.pattern.permute.xlu0 0
      %775 = vperm.xlu0 %774, %v649
      %v776 = vpop.permute.xlu0 %775
      %779 = vset.pattern.permute.xlu0 0
      %780 = vperm.xlu0 %779, %v650
      %v781 = vpop.permute.xlu0 %780
      %784 = vset.pattern.permute.xlu0 0
      %785 = vperm.xlu0 %784, %v651
      %v786 = vpop.permute.xlu0 %785
      %789 = vset.pattern.permute.xlu0 0
      %790 = vperm.xlu0 %789, %v652
      %v791 = vpop.permute.xlu0 %790
      %794 = vset.pattern.permute.xlu0 0
      %795 = vperm.xlu0 %794, %v653
      %v796 = vpop.permute.xlu0 %795
      %799 = vset.pattern.permute.xlu0 0
      %800 = vperm.xlu0 %799, %v654
      %v801 = vpop.permute.xlu0 %800
      %804 = vset.pattern.permute.xlu0 0
      %805 = vperm.xlu0 %804, %v655
      %v806 = vpop.permute.xlu0 %805
      %809 = vset.pattern.permute.xlu0 0
      %810 = vperm.xlu0 %809, %v656
      %v811 = vpop.permute.xlu0 %810
      %814 = vset.pattern.permute.xlu0 0
      %815 = vperm.xlu0 %814, %v657
      %v816 = vpop.permute.xlu0 %815
      %819 = vset.pattern.permute.xlu0 0
      %820 = vperm.xlu0 %819, %v658
      %v821 = vpop.permute.xlu0 %820
      %824 = vset.pattern.permute.xlu0 0
      %825 = vperm.xlu0 %824, %v659
      %v826 = vpop.permute.xlu0 %825
      %829 = vset.pattern.permute.xlu0 0
      %830 = vperm.xlu0 %829, %v660
      %v831 = vpop.permute.xlu0 %830
      %834 = vset.pattern.permute.xlu0 0
      %835 = vperm.xlu0 %834, %v661
      %v836 = vpop.permute.xlu0 %835
      %839 = vset.pattern.permute.xlu0 0
      %840 = vperm.xlu0 %839, %v662
      %v841 = vpop.permute.xlu0 %840
      %844 = vset.pattern.permute.xlu0 0
      %845 = vperm.xlu0 %844, %v663
      %v846 = vpop.permute.xlu0 %845
      %849 = vset.pattern.permute.xlu0 0
      %850 = vperm.xlu0 %849, %v664
      %v851 = vpop.permute.xlu0 %850
      %854 = vset.pattern.permute.xlu0 0
      %855 = vperm.xlu0 %854, %v665
      %v856 = vpop.permute.xlu0 %855
      %859 = vset.pattern.permute.xlu0 0
      %860 = vperm.xlu0 %859, %v666
      %v861 = vpop.permute.xlu0 %860
      %864 = vset.pattern.permute.xlu0 0
      %865 = vperm.xlu0 %864, %v667
      %v866 = vpop.permute.xlu0 %865
      %869 = vset.pattern.permute.xlu0 0
      %870 = vperm.xlu0 %869, %v668
      %v871 = vpop.permute.xlu0 %870
      %874 = vset.pattern.permute.xlu0 0
      %875 = vperm.xlu0 %874, %v669
      %v876 = vpop.permute.xlu0 %875
      %879 = vset.pattern.permute.xlu0 0
      %880 = vperm.xlu0 %879, %v670
      %v881 = vpop.permute.xlu0 %880
      %884 = vset.pattern.permute.xlu0 0
      %885 = vperm.xlu0 %884, %v671
      %v886 = vpop.permute.xlu0 %885
      %889 = vset.pattern.permute.xlu0 0
      %890 = vperm.xlu0 %889, %v672
      %v891 = vpop.permute.xlu0 %890
      %894 = vset.pattern.permute.xlu0 0
      %895 = vperm.xlu0 %894, %v673
      %v896 = vpop.permute.xlu0 %895
      %899 = vset.pattern.permute.xlu0 0
      %900 = vperm.xlu0 %899, %v674
      %v901 = vpop.permute.xlu0 %900
      %904 = vset.pattern.permute.xlu0 0
      %905 = vperm.xlu0 %904, %v675
      %v906 = vpop.permute.xlu0 %905
      %909 = vset.pattern.permute.xlu0 0
      %910 = vperm.xlu0 %909, %v676
      %v911 = vpop.permute.xlu0 %910
      %914 = vset.pattern.permute.xlu0 0
      %915 = vperm.xlu0 %914, %v677
      %v916 = vpop.permute.xlu0 %915
      %919 = vset.pattern.permute.xlu0 0
      %920 = vperm.xlu0 %919, %v678
      %v921 = vpop.permute.xlu0 %920
      %924 = vset.pattern.permute.xlu0 0
      %925 = vperm.xlu0 %924, %v679
      %v926 = vpop.permute.xlu0 %925
      %929 = vset.pattern.permute.xlu0 0
      %930 = vperm.xlu0 %929, %v680
      %v931 = vpop.permute.xlu0 %930
      %934 = vset.pattern.permute.xlu0 0
      %935 = vperm.xlu0 %934, %v681
      %v936 = vpop.permute.xlu0 %935
      %939 = vset.pattern.permute.xlu0 0
      %940 = vperm.xlu0 %939, %v682
      %v941 = vpop.permute.xlu0 %940
      %944 = vset.pattern.permute.xlu0 0
      %945 = vperm.xlu0 %944, %v683
      %v946 = vpop.permute.xlu0 %945
      %949 = vset.pattern.permute.xlu0 0
      %950 = vperm.xlu0 %949, %v684
      %v951 = vpop.permute.xlu0 %950
      %954 = vset.pattern.permute.xlu0 0
      %955 = vperm.xlu0 %954, %v685
      %v956 = vpop.permute.xlu0 %955
      %959 = vset.pattern.permute.xlu0 0
      %960 = vperm.xlu0 %959, %v686
      %v961 = vpop.permute.xlu0 %960
      %964 = vset.pattern.permute.xlu0 0
      %965 = vperm.xlu0 %964, %v687
      %v966 = vpop.permute.xlu0 %965
      %969 = vset.pattern.permute.xlu0 0
      %970 = vperm.xlu0 %969, %v688
      %v971 = vpop.permute.xlu0 %970
      %974 = vset.pattern.permute.xlu0 0
      %975 = vperm.xlu0 %974, %v689
      %v976 = vpop.permute.xlu0 %975
      %979 = vset.pattern.permute.xlu0 0
      %980 = vperm.xlu0 %979, %v690
      %v981 = vpop.permute.xlu0 %980
      %984 = vset.pattern.permute.xlu0 0
      %985 = vperm.xlu0 %984, %v691
      %v986 = vpop.permute.xlu0 %985
      %989 = vset.pattern.permute.xlu0 0
      %990 = vperm.xlu0 %989, %v692
      %v991 = vpop.permute.xlu0 %990
      %994 = vset.pattern.permute.xlu0 0
      %995 = vperm.xlu0 %994, %v693
      %v996 = vpop.permute.xlu0 %995
      %999 = vset.pattern.permute.xlu0 0
      %1000 = vperm.xlu0 %999, %v694
      %v1001 = vpop.permute.xlu0 %1000
      %1004 = vset.pattern.permute.xlu0 0
      %1005 = vperm.xlu0 %1004, %v695
      %v1006 = vpop.permute.xlu0 %1005
      %1009 = vset.pattern.permute.xlu0 0
      %1010 = vperm.xlu0 %1009, %v696
      %v1011 = vpop.permute.xlu0 %1010
      %1014 = vset.pattern.permute.xlu0 0
      %1015 = vperm.xlu0 %1014, %v697
      %v1016 = vpop.permute.xlu0 %1015
      %1019 = vset.pattern.permute.xlu0 0
      %1020 = vperm.xlu0 %1019, %v698
      %v1021 = vpop.permute.xlu0 %1020
      %1024 = vset.pattern.permute.xlu0 0
      %1025 = vperm.xlu0 %1024, %v699
      %v1026 = vpop.permute.xlu0 %1025
      %1029 = vset.pattern.permute.xlu0 0
      %1030 = vperm.xlu0 %1029, %v700
      %v1031 = vpop.permute.xlu0 %1030
      %1034 = vset.pattern.permute.xlu0 0
      %1035 = vperm.xlu0 %1034, %v701
      %v1036 = vpop.permute.xlu0 %1035
      %1039 = vset.pattern.permute.xlu0 0
      %1040 = vperm.xlu0 %1039, %v702
      %v1041 = vpop.permute.xlu0 %1040
      %1044 = vset.pattern.permute.xlu0 0
      %1045 = vperm.xlu0 %1044, %v703
      %v1046 = vpop.permute.xlu0 %1045
      %1049 = vset.pattern.permute.xlu0 0
      %1050 = vperm.xlu0 %1049, %v704
      %v1051 = vpop.permute.xlu0 %1050
      %1054 = vset.pattern.permute.xlu0 0
      %1055 = vperm.xlu0 %1054, %v705
      %v1056 = vpop.permute.xlu0 %1055
      %1059 = vset.pattern.permute.xlu0 0
      %1060 = vperm.xlu0 %1059, %v706
      %v1061 = vpop.permute.xlu0 %1060
      %1064 = vset.pattern.permute.xlu0 0
      %1065 = vperm.xlu0 %1064, %v707
      %v1066 = vpop.permute.xlu0 %1065
      %v1068 = vmul.f32 %v564, %v711
      %v1069 = vmul.f32 %v565, %v716
      %v1070 = vmul.f32 %v566, %v721
      %v1071 = vmul.f32 %v567, %v726
      %v1072 = vmul.f32 %v568, %v731
      %v1073 = vmul.f32 %v569, %v736
      %v1074 = vmul.f32 %v570, %v741
      %v1075 = vmul.f32 %v571, %v746
      %v1076 = vmul.f32 %v572, %v751
      %v1077 = vmul.f32 %v573, %v756
      %v1078 = vmul.f32 %v574, %v761
      %v1079 = vmul.f32 %v575, %v766
      %v1080 = vmul.f32 %v576, %v771
      %v1081 = vmul.f32 %v577, %v776
      %v1082 = vmul.f32 %v578, %v781
      %v1083 = vmul.f32 %v579, %v786
      %v1084 = vmul.f32 %v580, %v791
      %v1085 = vmul.f32 %v581, %v796
      %v1086 = vmul.f32 %v582, %v801
      %v1087 = vmul.f32 %v583, %v806
      %v1088 = vmul.f32 %v584, %v811
      %v1089 = vmul.f32 %v585, %v816
      %v1090 = vmul.f32 %v586, %v821
      %v1091 = vmul.f32 %v587, %v826
      %v1092 = vmul.f32 %v588, %v831
      %v1093 = vmul.f32 %v589, %v836
      %v1094 = vmul.f32 %v590, %v841
      %v1095 = vmul.f32 %v591, %v846
      %v1096 = vmul.f32 %v592, %v851
      %v1097 = vmul.f32 %v593, %v856
      %v1098 = vmul.f32 %v594, %v861
      %v1099 = vmul.f32 %v595, %v866
      %v1100 = vmul.f32 %v596, %v871
      %v1101 = vmul.f32 %v597, %v876
      %v1102 = vmul.f32 %v598, %v881
      %v1103 = vmul.f32 %v599, %v886
      %v1104 = vmul.f32 %v600, %v891
      %v1105 = vmul.f32 %v601, %v896
      %v1106 = vmul.f32 %v602, %v901
      %v1107 = vmul.f32 %v603, %v906
      %v1108 = vmul.f32 %v604, %v911
      %v1109 = vmul.f32 %v605, %v916
      %v1110 = vmul.f32 %v606, %v921
      %v1111 = vmul.f32 %v607, %v926
      %v1112 = vmul.f32 %v608, %v931
      %v1113 = vmul.f32 %v609, %v936
      %v1114 = vmul.f32 %v610, %v941
      %v1115 = vmul.f32 %v611, %v946
      %v1116 = vmul.f32 %v612, %v951
      %v1117 = vmul.f32 %v613, %v956
      %v1118 = vmul.f32 %v614, %v961
      %v1119 = vmul.f32 %v615, %v966
      %v1120 = vmul.f32 %v616, %v971
      %v1121 = vmul.f32 %v617, %v976
      %v1122 = vmul.f32 %v618, %v981
      %v1123 = vmul.f32 %v619, %v986
      %v1124 = vmul.f32 %v620, %v991
      %v1125 = vmul.f32 %v621, %v996
      %v1126 = vmul.f32 %v622, %v1001
      %v1127 = vmul.f32 %v623, %v1006
      %v1128 = vmul.f32 %v624, %v1011
      %v1129 = vmul.f32 %v625, %v1016
      %v1130 = vmul.f32 %v626, %v1021
      %v1131 = vmul.f32 %v627, %v1026
      %v1132 = vmul.f32 %v628, %v1031
      %v1133 = vmul.f32 %v629, %v1036
      %v1134 = vmul.f32 %v630, %v1041
      %v1135 = vmul.f32 %v631, %v1046
      %v1136 = vmul.f32 %v632, %v1051
      %v1137 = vmul.f32 %v633, %v1056
      %v1138 = vmul.f32 %v634, %v1061
      %v1139 = vmul.f32 %v635, %v1066
      %vm1140 = vcmask 31744
      %1141 = vst.msk [vmem:[#allocation2] sm:$0xff] %vm1140, %v1068
      %vm1142 = vcmask 24576
      %1143 = vst.msk [vmem:[#allocation2 + $0x8] sm:$0x1] %vm1142, %v1069
      %1144 = vst.msk [vmem:[#allocation2 + $0x10] sm:$0xff] %vm1140, %v1070
      %1145 = vst.msk [vmem:[#allocation2 + $0x18] sm:$0x1] %vm1142, %v1071
      %1146 = vst.msk [vmem:[#allocation2 + $0x20] sm:$0xff] %vm1140, %v1072
      %1147 = vst.msk [vmem:[#allocation2 + $0x28] sm:$0x1] %vm1142, %v1073
      %1148 = vst.msk [vmem:[#allocation2 + $0x30] sm:$0xff] %vm1140, %v1074
      %1149 = vst.msk [vmem:[#allocation2 + $0x38] sm:$0x1] %vm1142, %v1075
      %1150 = vst.msk [vmem:[#allocation2 + $0x40] sm:$0xff] %vm1140, %v1076
      %1151 = vst.msk [vmem:[#allocation2 + $0x48] sm:$0x1] %vm1142, %v1077
      %1152 = vst.msk [vmem:[#allocation2 + $0x50] sm:$0xff] %vm1140, %v1078
      %1153 = vst.msk [vmem:[#allocation2 + $0x58] sm:$0x1] %vm1142, %v1079
      %1154 = vst.msk [vmem:[#allocation2 + $0x60] sm:$0xff] %vm1140, %v1080
      %1155 = vst.msk [vmem:[#allocation2 + $0x68] sm:$0x1] %vm1142, %v1081
      %1156 = vst.msk [vmem:[#allocation2 + $0x70] sm:$0xff] %vm1140, %v1082
      %1157 = vst.msk [vmem:[#allocation2 + $0x78] sm:$0x1] %vm1142, %v1083
      %1158 = vst.msk [vmem:[#allocation2 + $0x80] sm:$0xff] %vm1140, %v1084
      %1159 = vst.msk [vmem:[#allocation2 + $0x88] sm:$0x1] %vm1142, %v1085
      %1160 = vst.msk [vmem:[#allocation2 + $0x90] sm:$0xff] %vm1140, %v1086
      %1161 = vst.msk [vmem:[#allocation2 + $0x98] sm:$0x1] %vm1142, %v1087
      %1162 = vst.msk [vmem:[#allocation2 + $0xa0] sm:$0xff] %vm1140, %v1088
      %1163 = vst.msk [vmem:[#allocation2 + $0xa8] sm:$0x1] %vm1142, %v1089
      %1164 = vst.msk [vmem:[#allocation2 + $0xb0] sm:$0xff] %vm1140, %v1090
      %1165 = vst.msk [vmem:[#allocation2 + $0xb8] sm:$0x1] %vm1142, %v1091
      %1166 = vst.msk [vmem:[#allocation2 + $0xc0] sm:$0xff] %vm1140, %v1092
      %1167 = vst.msk [vmem:[#allocation2 + $0xc8] sm:$0x1] %vm1142, %v1093
      %1168 = vst.msk [vmem:[#allocation2 + $0xd0] sm:$0xff] %vm1140, %v1094
      %1169 = vst.msk [vmem:[#allocation2 + $0xd8] sm:$0x1] %vm1142, %v1095
      %1170 = vst.msk [vmem:[#allocation2 + $0xe0] sm:$0xff] %vm1140, %v1096
      %1171 = vst.msk [vmem:[#allocation2 + $0xe8] sm:$0x1] %vm1142, %v1097
      %1172 = vst.msk [vmem:[#allocation2 + $0xf0] sm:$0xff] %vm1140, %v1098
      %1173 = vst.msk [vmem:[#allocation2 + $0xf8] sm:$0x1] %vm1142, %v1099
      %1174 = vst.msk [vmem:[#allocation2 + $0x100] sm:$0xff] %vm1140, %v1100
      %1175 = vst.msk [vmem:[#allocation2 + $0x108] sm:$0x1] %vm1142, %v1101
      %1176 = vst.msk [vmem:[#allocation2 + $0x110] sm:$0xff] %vm1140, %v1102
      %1177 = vst.msk [vmem:[#allocation2 + $0x118] sm:$0x1] %vm1142, %v1103
      %1178 = vst.msk [vmem:[#allocation2 + $0x120] sm:$0xff] %vm1140, %v1104
      %1179 = vst.msk [vmem:[#allocation2 + $0x128] sm:$0x1] %vm1142, %v1105
      %1180 = vst.msk [vmem:[#allocation2 + $0x130] sm:$0xff] %vm1140, %v1106
      %1181 = vst.msk [vmem:[#allocation2 + $0x138] sm:$0x1] %vm1142, %v1107
      %1182 = vst.msk [vmem:[#allocation2 + $0x140] sm:$0xff] %vm1140, %v1108
      %1183 = vst.msk [vmem:[#allocation2 + $0x148] sm:$0x1] %vm1142, %v1109
      %1184 = vst.msk [vmem:[#allocation2 + $0x150] sm:$0xff] %vm1140, %v1110
      %1185 = vst.msk [vmem:[#allocation2 + $0x158] sm:$0x1] %vm1142, %v1111
      %1186 = vst.msk [vmem:[#allocation2 + $0x160] sm:$0xff] %vm1140, %v1112
      %1187 = vst.msk [vmem:[#allocation2 + $0x168] sm:$0x1] %vm1142, %v1113
      %1188 = vst.msk [vmem:[#allocation2 + $0x170] sm:$0xff] %vm1140, %v1114
      %1189 = vst.msk [vmem:[#allocation2 + $0x178] sm:$0x1] %vm1142, %v1115
      %1190 = vst.msk [vmem:[#allocation2 + $0x180] sm:$0xff] %vm1140, %v1116
      %1191 = vst.msk [vmem:[#allocation2 + $0x188] sm:$0x1] %vm1142, %v1117
      %1192 = vst.msk [vmem:[#allocation2 + $0x190] sm:$0xff] %vm1140, %v1118
      %1193 = vst.msk [vmem:[#allocation2 + $0x198] sm:$0x1] %vm1142, %v1119
      %1194 = vst.msk [vmem:[#allocation2 + $0x1a0] sm:$0xff] %vm1140, %v1120
      %1195 = vst.msk [vmem:[#allocation2 + $0x1a8] sm:$0x1] %vm1142, %v1121
      %1196 = vst.msk [vmem:[#allocation2 + $0x1b0] sm:$0xff] %vm1140, %v1122
      %1197 = vst.msk [vmem:[#allocation2 + $0x1b8] sm:$0x1] %vm1142, %v1123
      %1198 = vst.msk [vmem:[#allocation2 + $0x1c0] sm:$0xff] %vm1140, %v1124
      %1199 = vst.msk [vmem:[#allocation2 + $0x1c8] sm:$0x1] %vm1142, %v1125
      %1200 = vst.msk [vmem:[#allocation2 + $0x1d0] sm:$0xff] %vm1140, %v1126
      %1201 = vst.msk [vmem:[#allocation2 + $0x1d8] sm:$0x1] %vm1142, %v1127
      %1202 = vst.msk [vmem:[#allocation2 + $0x1e0] sm:$0xff] %vm1140, %v1128
      %1203 = vst.msk [vmem:[#allocation2 + $0x1e8] sm:$0x1] %vm1142, %v1129
      %1204 = vst.msk [vmem:[#allocation2 + $0x1f0] sm:$0xff] %vm1140, %v1130
      %1205 = vst.msk [vmem:[#allocation2 + $0x1f8] sm:$0x1] %vm1142, %v1131
      %1206 = vst.msk [vmem:[#allocation2 + $0x200] sm:$0xff] %vm1140, %v1132
      %1207 = vst.msk [vmem:[#allocation2 + $0x208] sm:$0x1] %vm1142, %v1133
      %1208 = vst.msk [vmem:[#allocation2 + $0x210] sm:$0xff] %vm1140, %v1134
      %1209 = vst.msk [vmem:[#allocation2 + $0x218] sm:$0x1] %vm1142, %v1135
      %1210 = vst.msk [vmem:[#allocation2 + $0x220] sm:$0xff] %vm1140, %v1136
      %1211 = vst.msk [vmem:[#allocation2 + $0x228] sm:$0x1] %vm1142, %v1137
      %1212 = vst.msk [vmem:[#allocation2 + $0x230] sm:$0xff] %vm1140, %v1138
      %1213 = vst.msk [vmem:[#allocation2 + $0x238] sm:$0x1] %vm1142, %v1139
      %v1214 = vld [vmem:[#allocation2] sm:$0xff]
      %v1215 = vld [vmem:[#allocation2 + $0x10] sm:$0xff]
      %v1216 = vld [vmem:[#allocation2 + $0x20] sm:$0xff]
      %v1217 = vld [vmem:[#allocation2 + $0x30] sm:$0xff]
      %v1218 = vld [vmem:[#allocation2 + $0x40] sm:$0xff]
      %v1219 = vld [vmem:[#allocation2 + $0x50] sm:$0xff]
      %v1220 = vld [vmem:[#allocation2 + $0x60] sm:$0xff]
      %v1221 = vld [vmem:[#allocation2 + $0x70] sm:$0xff]
      %v1222 = vpack.c.bf16 %v1215, %v1214
      %v1223 = vpack.c.bf16 %v1217, %v1216
      %v1224 = vpack.c.bf16 %v1219, %v1218
      %v1225 = vpack.c.bf16 %v1221, %v1220
      %v1226 = vld [vmem:[%s4] sm:$0x3]
      %s1227 = scalar_lea.vmem [#allocation2], 144
      %v1228 = vld [vmem:[%s1227] sm:$0xff]
      %v1229 = vld [vmem:[%s1227 + $0x10] sm:$0xff]
      %v1230 = vld [vmem:[%s1227 + $0x20] sm:$0xff]
      %v1231 = vld [vmem:[%s1227 + $0x30] sm:$0xff]
      %v1232 = vld [vmem:[%s1227 + $0x40] sm:$0xff]
      %v1233 = vld [vmem:[%s1227 + $0x50] sm:$0xff]
      %v1234 = vld [vmem:[%s1227 + $0x60] sm:$0xff]
      %v1235 = vld [vmem:[%s1227 + $0x70] sm:$0xff]
      %v1236 = vpack.c.bf16 %v1229, %v1228
      %v1237 = vpack.c.bf16 %v1231, %v1230
      %v1238 = vpack.c.bf16 %v1233, %v1232
      %v1239 = vpack.c.bf16 %v1235, %v1234
      %s1240 = scalar_lea.vmem %s4, 2
      %v1241 = vld [vmem:[%s1240] sm:$0x3]
      %v1243 = vsel %vm1140, %v1236, 0
      %v1246 = vsel %vm1140, %v1237, 0
      %v1249 = vsel %vm1140, %v1238, 0
      %v1252 = vsel %vm1140, %v1239, 0
      %vm1254 = vcmask 1041408
      %v1256 = vsel %vm1254, %v1241, 0
      %1258 = vmatprep.subr.bf16.mxu0 0
      %1259 = vmatpush1.bf16.msra.mxu0 0
      %1260 = vmatprep.subr.bf16.mxu0 0
      %1261 = vmatpush1.bf16.msra.mxu0 0
      %1262 = vmatprep.subr.bf16.mxu0 0
      %1263 = vmatpush1.bf16.msra.mxu0 0
      %1264 = vmatprep.subr.bf16.mxu0 0
      %1265 = vmatpush1.bf16.msra.mxu0 0
      %1266 = vmatprep.subr.bf16.mxu0 0
      %1267 = vmatpush1.bf16.msra.mxu0 0
      %1268 = vmatprep.subr.bf16.mxu0 0
      %1269 = vmatpush1.bf16.msra.mxu0 0
      %1270 = vmatprep.subr.bf16.mxu0 0
      %1271 = vmatpush1.bf16.msra.mxu0 0
      %1272 = vmatprep.subr.bf16.mxu0 0
      %1273 = vmatpush1.bf16.msra.mxu0 %v1256
      %1274 = vmatprep.subr.bf16.mxu0 0
      %1275 = vmatpush2.bf16.msra.mxu0 0
      %1276 = vmatprep.subr.bf16.mxu0 0
      %1277 = vmatpush2.bf16.msra.mxu0 0
      %1278 = vmatprep.subr.bf16.mxu0 0
      %1279 = vmatpush2.bf16.msra.mxu0 0
      %1280 = vmatprep.subr.bf16.mxu0 0
      %1281 = vmatpush2.bf16.msra.mxu0 0
      %1282 = vmatprep.subr.bf16.mxu0 0
      %1283 = vmatpush2.bf16.msra.mxu0 0
      %1284 = vmatprep.subr.bf16.mxu0 0
      %1285 = vmatpush2.bf16.msra.mxu0 0
      %1286 = vmatprep.subr.bf16.mxu0 0
      %1287 = vmatpush2.bf16.msra.mxu0 0
      %1288 = vmatprep.subr.bf16.mxu0 0
      %1289 = vmatpush2.bf16.msra.mxu0 0
      %1290 = vmatprep.mubr.bf16.mxu0 0
      %1291 = vmatmul.mubr.bf16.gmra.mxu0 %v1243
      %v1292 = vpop.f32.mrf.mxu0
      %v1293 = vadd.f32 0.0, %v1292
      %v1294 = vpop.f32.mrf.mxu0
      %v1295 = vpop.f32.mrf.mxu0
      %v1296 = vadd.f32 0.0, %v1295
      %v1297 = vpop.f32.mrf.mxu0
      %1298 = vmatprep.mubr.bf16.mxu0 0
      %1299 = vmatmul.mubr.bf16.gmra.mxu0 %v1246
      %v1300 = vpop.f32.mrf.mxu0
      %v1301 = vadd.f32 0.0, %v1300
      %v1302 = vpop.f32.mrf.mxu0
      %v1303 = vpop.f32.mrf.mxu0
      %v1304 = vadd.f32 0.0, %v1303
      %v1305 = vpop.f32.mrf.mxu0
      %1306 = vmatprep.mubr.bf16.mxu0 0
      %1307 = vmatmul.mubr.bf16.gmra.mxu0 %v1249
      %v1308 = vpop.f32.mrf.mxu0
      %v1309 = vadd.f32 0.0, %v1308
      %v1310 = vpop.f32.mrf.mxu0
      %v1311 = vpop.f32.mrf.mxu0
      %v1312 = vadd.f32 0.0, %v1311
      %v1313 = vpop.f32.mrf.mxu0
      %1314 = vmatprep.mubr.bf16.mxu0 0
      %1315 = vmatmul.mubr.bf16.gmra.mxu0 %v1252
      %v1316 = vpop.f32.mrf.mxu0
      %v1317 = vadd.f32 0.0, %v1316
      %v1318 = vpop.f32.mrf.mxu0
      %v1319 = vpop.f32.mrf.mxu0
      %v1320 = vadd.f32 0.0, %v1319
      %v1321 = vpop.f32.mrf.mxu0
      %1322 = vdwg.mxu0
      %v1324 = vsel %vm1140, %v1222, 0
      %v1327 = vsel %vm1140, %v1223, 0
      %v1330 = vsel %vm1140, %v1224, 0
      %v1333 = vsel %vm1140, %v1225, 0
      %v1336 = vsel %vm1254, %v1226, 0
      %1338 = vmatprep.subr.bf16.mxu0 0
      %1339 = vmatpush1.bf16.msra.mxu0 0
      %1340 = vmatprep.subr.bf16.mxu0 0
      %1341 = vmatpush1.bf16.msra.mxu0 0
      %1342 = vmatprep.subr.bf16.mxu0 0
      %1343 = vmatpush1.bf16.msra.mxu0 0
      %1344 = vmatprep.subr.bf16.mxu0 0
      %1345 = vmatpush1.bf16.msra.mxu0 0
      %1346 = vmatprep.subr.bf16.mxu0 0
      %1347 = vmatpush1.bf16.msra.mxu0 0
      %1348 = vmatprep.subr.bf16.mxu0 0
      %1349 = vmatpush1.bf16.msra.mxu0 0
      %1350 = vmatprep.subr.bf16.mxu0 0
      %1351 = vmatpush1.bf16.msra.mxu0 0
      %1352 = vmatprep.subr.bf16.mxu0 0
      %1353 = vmatpush1.bf16.msra.mxu0 %v1336
      %1354 = vmatprep.subr.bf16.mxu0 0
      %1355 = vmatpush2.bf16.msra.mxu0 0
      %1356 = vmatprep.subr.bf16.mxu0 0
      %1357 = vmatpush2.bf16.msra.mxu0 0
      %1358 = vmatprep.subr.bf16.mxu0 0
      %1359 = vmatpush2.bf16.msra.mxu0 0
      %1360 = vmatprep.subr.bf16.mxu0 0
      %1361 = vmatpush2.bf16.msra.mxu0 0
      %1362 = vmatprep.subr.bf16.mxu0 0
      %1363 = vmatpush2.bf16.msra.mxu0 0
      %1364 = vmatprep.subr.bf16.mxu0 0
      %1365 = vmatpush2.bf16.msra.mxu0 0
      %1366 = vmatprep.subr.bf16.mxu0 0
      %1367 = vmatpush2.bf16.msra.mxu0 0
      %1368 = vmatprep.subr.bf16.mxu0 0
      %1369 = vmatpush2.bf16.msra.mxu0 0
      %1370 = vmatprep.mubr.bf16.mxu0 0
      %1371 = vmatmul.mubr.bf16.gmra.mxu0 %v1324
      %v1372 = vpop.f32.mrf.mxu0
      %v1373 = vadd.f32 %v1293, %v1372
      %v1374 = vpop.f32.mrf.mxu0
      %v1375 = vpop.f32.mrf.mxu0
      %v1376 = vadd.f32 %v1296, %v1375
      %v1377 = vpop.f32.mrf.mxu0
      %1378 = vmatprep.mubr.bf16.mxu0 0
      %1379 = vmatmul.mubr.bf16.gmra.mxu0 %v1327
      %v1380 = vpop.f32.mrf.mxu0
      %v1381 = vadd.f32 %v1301, %v1380
      %v1382 = vpop.f32.mrf.mxu0
      %v1383 = vpop.f32.mrf.mxu0
      %v1384 = vadd.f32 %v1304, %v1383
      %v1385 = vpop.f32.mrf.mxu0
      %1386 = vmatprep.mubr.bf16.mxu0 0
      %1387 = vmatmul.mubr.bf16.gmra.mxu0 %v1330
      %v1388 = vpop.f32.mrf.mxu0
      %v1389 = vadd.f32 %v1309, %v1388
      %v1390 = vpop.f32.mrf.mxu0
      %v1391 = vpop.f32.mrf.mxu0
      %v1392 = vadd.f32 %v1312, %v1391
      %v1393 = vpop.f32.mrf.mxu0
      %1394 = vmatprep.mubr.bf16.mxu0 0
      %1395 = vmatmul.mubr.bf16.gmra.mxu0 %v1333
      %v1396 = vpop.f32.mrf.mxu0
      %v1397 = vadd.f32 %v1317, %v1396
      %v1398 = vpop.f32.mrf.mxu0
      %v1399 = vpop.f32.mrf.mxu0
      %v1400 = vadd.f32 %v1320, %v1399
      %v1401 = vpop.f32.mrf.mxu0
      %1402 = vdwg.mxu0
      %v1403 = vld [vmem:[#allocation2 + $0x1] sm:$0xff]
      %v1404 = vld [vmem:[#allocation2 + $0x11] sm:$0xff]
      %v1405 = vld [vmem:[#allocation2 + $0x21] sm:$0xff]
      %v1406 = vld [vmem:[#allocation2 + $0x31] sm:$0xff]
      %v1407 = vld [vmem:[#allocation2 + $0x41] sm:$0xff]
      %v1408 = vld [vmem:[#allocation2 + $0x51] sm:$0xff]
      %v1409 = vld [vmem:[#allocation2 + $0x61] sm:$0xff]
      %v1410 = vld [vmem:[#allocation2 + $0x71] sm:$0xff]
      %v1411 = vpack.c.bf16 %v1404, %v1403
      %v1412 = vpack.c.bf16 %v1406, %v1405
      %v1413 = vpack.c.bf16 %v1408, %v1407
      %v1414 = vpack.c.bf16 %v1410, %v1409
      %s1415 = scalar_lea.vmem %s4, 4
      %v1416 = vld [vmem:[%s1415] sm:$0x3]
      %v1418 = vsel %vm1140, %v1411, 0
      %v1421 = vsel %vm1140, %v1412, 0
      %v1424 = vsel %vm1140, %v1413, 0
      %v1427 = vsel %vm1140, %v1414, 0
      %v1430 = vsel %vm1254, %v1416, 0
      %1432 = vmatprep.subr.bf16.mxu0 0
      %1433 = vmatpush1.bf16.msra.mxu0 0
      %1434 = vmatprep.subr.bf16.mxu0 0
      %1435 = vmatpush1.bf16.msra.mxu0 0
      %1436 = vmatprep.subr.bf16.mxu0 0
      %1437 = vmatpush1.bf16.msra.mxu0 0
      %1438 = vmatprep.subr.bf16.mxu0 0
      %1439 = vmatpush1.bf16.msra.mxu0 0
      %1440 = vmatprep.subr.bf16.mxu0 0
      %1441 = vmatpush1.bf16.msra.mxu0 0
      %1442 = vmatprep.subr.bf16.mxu0 0
      %1443 = vmatpush1.bf16.msra.mxu0 0
      %1444 = vmatprep.subr.bf16.mxu0 0
      %1445 = vmatpush1.bf16.msra.mxu0 0
      %1446 = vmatprep.subr.bf16.mxu0 0
      %1447 = vmatpush1.bf16.msra.mxu0 %v1430
      %1448 = vmatprep.subr.bf16.mxu0 0
      %1449 = vmatpush2.bf16.msra.mxu0 0
      %1450 = vmatprep.subr.bf16.mxu0 0
      %1451 = vmatpush2.bf16.msra.mxu0 0
      %1452 = vmatprep.subr.bf16.mxu0 0
      %1453 = vmatpush2.bf16.msra.mxu0 0
      %1454 = vmatprep.subr.bf16.mxu0 0
      %1455 = vmatpush2.bf16.msra.mxu0 0
      %1456 = vmatprep.subr.bf16.mxu0 0
      %1457 = vmatpush2.bf16.msra.mxu0 0
      %1458 = vmatprep.subr.bf16.mxu0 0
      %1459 = vmatpush2.bf16.msra.mxu0 0
      %1460 = vmatprep.subr.bf16.mxu0 0
      %1461 = vmatpush2.bf16.msra.mxu0 0
      %1462 = vmatprep.subr.bf16.mxu0 0
      %1463 = vmatpush2.bf16.msra.mxu0 0
      %1464 = vmatprep.mubr.bf16.mxu0 0
      %1465 = vmatmul.mubr.bf16.gmra.mxu0 %v1418
      %v1466 = vpop.f32.mrf.mxu0
      %v1467 = vadd.f32 0.0, %v1466
      %v1468 = vpop.f32.mrf.mxu0
      %v1469 = vpop.f32.mrf.mxu0
      %v1470 = vadd.f32 0.0, %v1469
      %v1471 = vpop.f32.mrf.mxu0
      %1472 = vmatprep.mubr.bf16.mxu0 0
      %1473 = vmatmul.mubr.bf16.gmra.mxu0 %v1421
      %v1474 = vpop.f32.mrf.mxu0
      %v1475 = vadd.f32 0.0, %v1474
      %v1476 = vpop.f32.mrf.mxu0
      %v1477 = vpop.f32.mrf.mxu0
      %v1478 = vadd.f32 0.0, %v1477
      %v1479 = vpop.f32.mrf.mxu0
      %1480 = vmatprep.mubr.bf16.mxu0 0
      %1481 = vmatmul.mubr.bf16.gmra.mxu0 %v1424
      %v1482 = vpop.f32.mrf.mxu0
      %v1483 = vadd.f32 0.0, %v1482
      %v1484 = vpop.f32.mrf.mxu0
      %v1485 = vpop.f32.mrf.mxu0
      %v1486 = vadd.f32 0.0, %v1485
      %v1487 = vpop.f32.mrf.mxu0
      %1488 = vmatprep.mubr.bf16.mxu0 0
      %1489 = vmatmul.mubr.bf16.gmra.mxu0 %v1427
      %v1490 = vpop.f32.mrf.mxu0
      %v1491 = vadd.f32 0.0, %v1490
      %v1492 = vpop.f32.mrf.mxu0
      %v1493 = vpop.f32.mrf.mxu0
      %v1494 = vadd.f32 0.0, %v1493
      %v1495 = vpop.f32.mrf.mxu0
      %1496 = vdwg.mxu0
      %v1497 = vadd.f32 %v1373, %v1467
      %v1498 = vadd.f32 %v1376, %v1470
      %v1499 = vadd.f32 %v1381, %v1475
      %v1500 = vadd.f32 %v1384, %v1478
      %v1501 = vadd.f32 %v1389, %v1483
      %v1502 = vadd.f32 %v1392, %v1486
      %v1503 = vadd.f32 %v1397, %v1491
      %v1504 = vadd.f32 %v1400, %v1494
      %s1505 = scalar_lea.vmem [#allocation2], 288
      %v1506 = vld [vmem:[%s1505] sm:$0xff]
      %v1507 = vld [vmem:[%s1505 + $0x10] sm:$0xff]
      %v1508 = vld [vmem:[%s1505 + $0x20] sm:$0xff]
      %v1509 = vld [vmem:[%s1505 + $0x30] sm:$0xff]
      %v1510 = vld [vmem:[%s1505 + $0x40] sm:$0xff]
      %v1511 = vld [vmem:[%s1505 + $0x50] sm:$0xff]
      %v1512 = vld [vmem:[%s1505 + $0x60] sm:$0xff]
      %v1513 = vld [vmem:[%s1505 + $0x70] sm:$0xff]
      %v1514 = vpack.c.bf16 %v1507, %v1506
      %v1515 = vpack.c.bf16 %v1509, %v1508
      %v1516 = vpack.c.bf16 %v1511, %v1510
      %v1517 = vpack.c.bf16 %v1513, %v1512
      %s1518 = scalar_lea.vmem %s4, 6
      %v1519 = vld [vmem:[%s1518] sm:$0x3]
      %v1521 = vsel %vm1140, %v1514, 0
      %v1524 = vsel %vm1140, %v1515, 0
      %v1527 = vsel %vm1140, %v1516, 0
      %v1530 = vsel %vm1140, %v1517, 0
      %v1533 = vsel %vm1254, %v1519, 0
      %1535 = vmatprep.subr.bf16.mxu0 0
      %1536 = vmatpush1.bf16.msra.mxu0 0
      %1537 = vmatprep.subr.bf16.mxu0 0
      %1538 = vmatpush1.bf16.msra.mxu0 0
      %1539 = vmatprep.subr.bf16.mxu0 0
      %1540 = vmatpush1.bf16.msra.mxu0 0
      %1541 = vmatprep.subr.bf16.mxu0 0
      %1542 = vmatpush1.bf16.msra.mxu0 0
      %1543 = vmatprep.subr.bf16.mxu0 0
      %1544 = vmatpush1.bf16.msra.mxu0 0
      %1545 = vmatprep.subr.bf16.mxu0 0
      %1546 = vmatpush1.bf16.msra.mxu0 0
      %1547 = vmatprep.subr.bf16.mxu0 0
      %1548 = vmatpush1.bf16.msra.mxu0 0
      %1549 = vmatprep.subr.bf16.mxu0 0
      %1550 = vmatpush1.bf16.msra.mxu0 %v1533
      %1551 = vmatprep.subr.bf16.mxu0 0
      %1552 = vmatpush2.bf16.msra.mxu0 0
      %1553 = vmatprep.subr.bf16.mxu0 0
      %1554 = vmatpush2.bf16.msra.mxu0 0
      %1555 = vmatprep.subr.bf16.mxu0 0
      %1556 = vmatpush2.bf16.msra.mxu0 0
      %1557 = vmatprep.subr.bf16.mxu0 0
      %1558 = vmatpush2.bf16.msra.mxu0 0
      %1559 = vmatprep.subr.bf16.mxu0 0
      %1560 = vmatpush2.bf16.msra.mxu0 0
      %1561 = vmatprep.subr.bf16.mxu0 0
      %1562 = vmatpush2.bf16.msra.mxu0 0
      %1563 = vmatprep.subr.bf16.mxu0 0
      %1564 = vmatpush2.bf16.msra.mxu0 0
      %1565 = vmatprep.subr.bf16.mxu0 0
      %1566 = vmatpush2.bf16.msra.mxu0 0
      %1567 = vmatprep.mubr.bf16.mxu0 0
      %1568 = vmatmul.mubr.bf16.gmra.mxu0 %v1521
      %v1569 = vpop.f32.mrf.mxu0
      %v1570 = vadd.f32 0.0, %v1569
      %v1571 = vpop.f32.mrf.mxu0
      %v1572 = vpop.f32.mrf.mxu0
      %v1573 = vadd.f32 0.0, %v1572
      %v1574 = vpop.f32.mrf.mxu0
      %1575 = vmatprep.mubr.bf16.mxu0 0
      %1576 = vmatmul.mubr.bf16.gmra.mxu0 %v1524
      %v1577 = vpop.f32.mrf.mxu0
      %v1578 = vadd.f32 0.0, %v1577
      %v1579 = vpop.f32.mrf.mxu0
      %v1580 = vpop.f32.mrf.mxu0
      %v1581 = vadd.f32 0.0, %v1580
      %v1582 = vpop.f32.mrf.mxu0
      %1583 = vmatprep.mubr.bf16.mxu0 0
      %1584 = vmatmul.mubr.bf16.gmra.mxu0 %v1527
      %v1585 = vpop.f32.mrf.mxu0
      %v1586 = vadd.f32 0.0, %v1585
      %v1587 = vpop.f32.mrf.mxu0
      %v1588 = vpop.f32.mrf.mxu0
      %v1589 = vadd.f32 0.0, %v1588
      %v1590 = vpop.f32.mrf.mxu0
      %1591 = vmatprep.mubr.bf16.mxu0 0
      %1592 = vmatmul.mubr.bf16.gmra.mxu0 %v1530
      %v1593 = vpop.f32.mrf.mxu0
      %v1594 = vadd.f32 0.0, %v1593
      %v1595 = vpop.f32.mrf.mxu0
      %v1596 = vpop.f32.mrf.mxu0
      %v1597 = vadd.f32 0.0, %v1596
      %v1598 = vpop.f32.mrf.mxu0
      %1599 = vdwg.mxu0
      %v1600 = vadd.f32 %v1497, %v1570
      %v1601 = vadd.f32 %v1498, %v1573
      %v1602 = vadd.f32 %v1499, %v1578
      %v1603 = vadd.f32 %v1500, %v1581
      %v1604 = vadd.f32 %v1501, %v1586
      %v1605 = vadd.f32 %v1502, %v1589
      %v1606 = vadd.f32 %v1503, %v1594
      %v1607 = vadd.f32 %v1504, %v1597
      %s1608 = scalar_lea.vmem [#allocation2], 432
      %v1609 = vld [vmem:[%s1608] sm:$0xff]
      %v1610 = vld [vmem:[%s1608 + $0x10] sm:$0xff]
      %v1611 = vld [vmem:[%s1608 + $0x20] sm:$0xff]
      %v1612 = vld [vmem:[%s1608 + $0x30] sm:$0xff]
      %v1613 = vld [vmem:[%s1608 + $0x40] sm:$0xff]
      %v1614 = vld [vmem:[%s1608 + $0x50] sm:$0xff]
      %v1615 = vld [vmem:[%s1608 + $0x60] sm:$0xff]
      %v1616 = vld [vmem:[%s1608 + $0x70] sm:$0xff]
      %v1617 = vpack.c.bf16 %v1610, %v1609
      %v1618 = vpack.c.bf16 %v1612, %v1611
      %v1619 = vpack.c.bf16 %v1614, %v1613
      %v1620 = vpack.c.bf16 %v1616, %v1615
      %s1621 = scalar_lea.vmem %s4, 8
      %v1622 = vld [vmem:[%s1621] sm:$0x3]
      %v1624 = vsel %vm1140, %v1617, 0
      %v1627 = vsel %vm1140, %v1618, 0
      %v1630 = vsel %vm1140, %v1619, 0
      %v1633 = vsel %vm1140, %v1620, 0
      %v1636 = vsel %vm1254, %v1622, 0
      %1638 = vmatprep.subr.bf16.mxu0 0
      %1639 = vmatpush1.bf16.msra.mxu0 0
      %1640 = vmatprep.subr.bf16.mxu0 0
      %1641 = vmatpush1.bf16.msra.mxu0 0
      %1642 = vmatprep.subr.bf16.mxu0 0
      %1643 = vmatpush1.bf16.msra.mxu0 0
      %1644 = vmatprep.subr.bf16.mxu0 0
      %1645 = vmatpush1.bf16.msra.mxu0 0
      %1646 = vmatprep.subr.bf16.mxu0 0
      %1647 = vmatpush1.bf16.msra.mxu0 0
      %1648 = vmatprep.subr.bf16.mxu0 0
      %1649 = vmatpush1.bf16.msra.mxu0 0
      %1650 = vmatprep.subr.bf16.mxu0 0
      %1651 = vmatpush1.bf16.msra.mxu0 0
      %1652 = vmatprep.subr.bf16.mxu0 0
      %1653 = vmatpush1.bf16.msra.mxu0 %v1636
      %1654 = vmatprep.subr.bf16.mxu0 0
      %1655 = vmatpush2.bf16.msra.mxu0 0
      %1656 = vmatprep.subr.bf16.mxu0 0
      %1657 = vmatpush2.bf16.msra.mxu0 0
      %1658 = vmatprep.subr.bf16.mxu0 0
      %1659 = vmatpush2.bf16.msra.mxu0 0
      %1660 = vmatprep.subr.bf16.mxu0 0
      %1661 = vmatpush2.bf16.msra.mxu0 0
      %1662 = vmatprep.subr.bf16.mxu0 0
      %1663 = vmatpush2.bf16.msra.mxu0 0
      %1664 = vmatprep.subr.bf16.mxu0 0
      %1665 = vmatpush2.bf16.msra.mxu0 0
      %1666 = vmatprep.subr.bf16.mxu0 0
      %1667 = vmatpush2.bf16.msra.mxu0 0
      %1668 = vmatprep.subr.bf16.mxu0 0
      %1669 = vmatpush2.bf16.msra.mxu0 0
      %1670 = vmatprep.mubr.bf16.mxu0 0
      %1671 = vmatmul.mubr.bf16.gmra.mxu0 %v1624
      %v1672 = vpop.f32.mrf.mxu0
      %v1673 = vadd.f32 0.0, %v1672
      %v1674 = vpop.f32.mrf.mxu0
      %v1675 = vpop.f32.mrf.mxu0
      %v1676 = vadd.f32 0.0, %v1675
      %v1677 = vpop.f32.mrf.mxu0
      %1678 = vmatprep.mubr.bf16.mxu0 0
      %1679 = vmatmul.mubr.bf16.gmra.mxu0 %v1627
      %v1680 = vpop.f32.mrf.mxu0
      %v1681 = vadd.f32 0.0, %v1680
      %v1682 = vpop.f32.mrf.mxu0
      %v1683 = vpop.f32.mrf.mxu0
      %v1684 = vadd.f32 0.0, %v1683
      %v1685 = vpop.f32.mrf.mxu0
      %1686 = vmatprep.mubr.bf16.mxu0 0
      %1687 = vmatmul.mubr.bf16.gmra.mxu0 %v1630
      %v1688 = vpop.f32.mrf.mxu0
      %v1689 = vadd.f32 0.0, %v1688
      %v1690 = vpop.f32.mrf.mxu0
      %v1691 = vpop.f32.mrf.mxu0
      %v1692 = vadd.f32 0.0, %v1691
      %v1693 = vpop.f32.mrf.mxu0
      %1694 = vmatprep.mubr.bf16.mxu0 0
      %1695 = vmatmul.mubr.bf16.gmra.mxu0 %v1633
      %v1696 = vpop.f32.mrf.mxu0
      %v1697 = vadd.f32 0.0, %v1696
      %v1698 = vpop.f32.mrf.mxu0
      %v1699 = vpop.f32.mrf.mxu0
      %v1700 = vadd.f32 0.0, %v1699
      %v1701 = vpop.f32.mrf.mxu0
      %1702 = vdwg.mxu0
      %v1703 = vadd.f32 %v1600, %v1673
      %v1704 = vadd.f32 %v1601, %v1676
      %v1705 = vadd.f32 %v1602, %v1681
      %v1706 = vadd.f32 %v1603, %v1684
      %v1707 = vadd.f32 %v1604, %v1689
      %v1708 = vadd.f32 %v1605, %v1692
      %v1709 = vadd.f32 %v1606, %v1697
      %v1710 = vadd.f32 %v1607, %v1700
      %v1711 = vld [vmem:[%s1505 + $0x1] sm:$0xff]
      %v1712 = vld [vmem:[%s1505 + $0x11] sm:$0xff]
      %v1713 = vld [vmem:[%s1505 + $0x21] sm:$0xff]
      %v1714 = vld [vmem:[%s1505 + $0x31] sm:$0xff]
      %v1715 = vld [vmem:[%s1505 + $0x41] sm:$0xff]
      %v1716 = vld [vmem:[%s1505 + $0x51] sm:$0xff]
      %v1717 = vld [vmem:[%s1505 + $0x61] sm:$0xff]
      %v1718 = vld [vmem:[%s1505 + $0x71] sm:$0xff]
      %v1719 = vpack.c.bf16 %v1712, %v1711
      %v1720 = vpack.c.bf16 %v1714, %v1713
      %v1721 = vpack.c.bf16 %v1716, %v1715
      %v1722 = vpack.c.bf16 %v1718, %v1717
      %s1723 = scalar_lea.vmem %s4, 10
      %v1724 = vld [vmem:[%s1723] sm:$0x3]
      %v1726 = vsel %vm1140, %v1719, 0
      %v1729 = vsel %vm1140, %v1720, 0
      %v1732 = vsel %vm1140, %v1721, 0
      %v1735 = vsel %vm1140, %v1722, 0
      %v1738 = vsel %vm1254, %v1724, 0
      %1740 = vmatprep.subr.bf16.mxu0 0
      %1741 = vmatpush1.bf16.msra.mxu0 0
      %1742 = vmatprep.subr.bf16.mxu0 0
      %1743 = vmatpush1.bf16.msra.mxu0 0
      %1744 = vmatprep.subr.bf16.mxu0 0
      %1745 = vmatpush1.bf16.msra.mxu0 0
      %1746 = vmatprep.subr.bf16.mxu0 0
      %1747 = vmatpush1.bf16.msra.mxu0 0
      %1748 = vmatprep.subr.bf16.mxu0 0
      %1749 = vmatpush1.bf16.msra.mxu0 0
      %1750 = vmatprep.subr.bf16.mxu0 0
      %1751 = vmatpush1.bf16.msra.mxu0 0
      %1752 = vmatprep.subr.bf16.mxu0 0
      %1753 = vmatpush1.bf16.msra.mxu0 0
      %1754 = vmatprep.subr.bf16.mxu0 0
      %1755 = vmatpush1.bf16.msra.mxu0 %v1738
      %1756 = vmatprep.subr.bf16.mxu0 0
      %1757 = vmatpush2.bf16.msra.mxu0 0
      %1758 = vmatprep.subr.bf16.mxu0 0
      %1759 = vmatpush2.bf16.msra.mxu0 0
      %1760 = vmatprep.subr.bf16.mxu0 0
      %1761 = vmatpush2.bf16.msra.mxu0 0
      %1762 = vmatprep.subr.bf16.mxu0 0
      %1763 = vmatpush2.bf16.msra.mxu0 0
      %1764 = vmatprep.subr.bf16.mxu0 0
      %1765 = vmatpush2.bf16.msra.mxu0 0
      %1766 = vmatprep.subr.bf16.mxu0 0
      %1767 = vmatpush2.bf16.msra.mxu0 0
      %1768 = vmatprep.subr.bf16.mxu0 0
      %1769 = vmatpush2.bf16.msra.mxu0 0
      %1770 = vmatprep.subr.bf16.mxu0 0
      %1771 = vmatpush2.bf16.msra.mxu0 0
      %1772 = vmatprep.mubr.bf16.mxu0 0
      %1773 = vmatmul.mubr.bf16.gmra.mxu0 %v1726
      %v1774 = vpop.f32.mrf.mxu0
      %v1775 = vadd.f32 0.0, %v1774
      %v1776 = vpop.f32.mrf.mxu0
      %v1777 = vpop.f32.mrf.mxu0
      %v1778 = vadd.f32 0.0, %v1777
      %v1779 = vpop.f32.mrf.mxu0
      %1780 = vmatprep.mubr.bf16.mxu0 0
      %1781 = vmatmul.mubr.bf16.gmra.mxu0 %v1729
      %v1782 = vpop.f32.mrf.mxu0
      %v1783 = vadd.f32 0.0, %v1782
      %v1784 = vpop.f32.mrf.mxu0
      %v1785 = vpop.f32.mrf.mxu0
      %v1786 = vadd.f32 0.0, %v1785
      %v1787 = vpop.f32.mrf.mxu0
      %1788 = vmatprep.mubr.bf16.mxu0 0
      %1789 = vmatmul.mubr.bf16.gmra.mxu0 %v1732
      %v1790 = vpop.f32.mrf.mxu0
      %v1791 = vadd.f32 0.0, %v1790
      %v1792 = vpop.f32.mrf.mxu0
      %v1793 = vpop.f32.mrf.mxu0
      %v1794 = vadd.f32 0.0, %v1793
      %v1795 = vpop.f32.mrf.mxu0
      %1796 = vmatprep.mubr.bf16.mxu0 0
      %1797 = vmatmul.mubr.bf16.gmra.mxu0 %v1735
      %v1798 = vpop.f32.mrf.mxu0
      %v1799 = vadd.f32 0.0, %v1798
      %v1800 = vpop.f32.mrf.mxu0
      %v1801 = vpop.f32.mrf.mxu0
      %v1802 = vadd.f32 0.0, %v1801
      %v1803 = vpop.f32.mrf.mxu0
      %1804 = vdwg.mxu0
      %v1805 = vadd.f32 %v1703, %v1775
      %v1806 = vadd.f32 %v1704, %v1778
      %v1807 = vadd.f32 %v1705, %v1783
      %v1808 = vadd.f32 %v1706, %v1786
      %v1809 = vadd.f32 %v1707, %v1791
      %v1810 = vadd.f32 %v1708, %v1794
      %v1811 = vadd.f32 %v1709, %v1799
      %v1812 = vadd.f32 %v1710, %v1802
      %s1813 = scalar_lea.vmem [#allocation2], 16
      %v1814 = vld [vmem:[%s1813] sm:$0xff]
      %v1815 = vld [vmem:[%s1813 + $0x10] sm:$0xff]
      %v1816 = vld [vmem:[%s1813 + $0x20] sm:$0xff]
      %v1817 = vld [vmem:[%s1813 + $0x30] sm:$0xff]
      %v1818 = vld [vmem:[%s1813 + $0x40] sm:$0xff]
      %v1819 = vld [vmem:[%s1813 + $0x50] sm:$0xff]
      %v1820 = vld [vmem:[%s1813 + $0x60] sm:$0xff]
      %v1821 = vld [vmem:[%s1813 + $0x70] sm:$0xff]
      %v1822 = vpack.c.bf16 %v1815, %v1814
      %v1823 = vpack.c.bf16 %v1817, %v1816
      %v1824 = vpack.c.bf16 %v1819, %v1818
      %v1825 = vpack.c.bf16 %v1821, %v1820
      %s1826 = scalar_lea.vmem %s4, 12
      %v1827 = vld [vmem:[%s1826] sm:$0x3]
      %v1829 = vsel %vm1140, %v1822, 0
      %v1832 = vsel %vm1140, %v1823, 0
      %v1835 = vsel %vm1140, %v1824, 0
      %v1838 = vsel %vm1140, %v1825, 0
      %v1841 = vsel %vm1254, %v1827, 0
      %1843 = vmatprep.subr.bf16.mxu0 0
      %1844 = vmatpush1.bf16.msra.mxu0 0
      %1845 = vmatprep.subr.bf16.mxu0 0
      %1846 = vmatpush1.bf16.msra.mxu0 0
      %1847 = vmatprep.subr.bf16.mxu0 0
      %1848 = vmatpush1.bf16.msra.mxu0 0
      %1849 = vmatprep.subr.bf16.mxu0 0
      %1850 = vmatpush1.bf16.msra.mxu0 0
      %1851 = vmatprep.subr.bf16.mxu0 0
      %1852 = vmatpush1.bf16.msra.mxu0 0
      %1853 = vmatprep.subr.bf16.mxu0 0
      %1854 = vmatpush1.bf16.msra.mxu0 0
      %1855 = vmatprep.subr.bf16.mxu0 0
      %1856 = vmatpush1.bf16.msra.mxu0 0
      %1857 = vmatprep.subr.bf16.mxu0 0
      %1858 = vmatpush1.bf16.msra.mxu0 %v1841
      %1859 = vmatprep.subr.bf16.mxu0 0
      %1860 = vmatpush2.bf16.msra.mxu0 0
      %1861 = vmatprep.subr.bf16.mxu0 0
      %1862 = vmatpush2.bf16.msra.mxu0 0
      %1863 = vmatprep.subr.bf16.mxu0 0
      %1864 = vmatpush2.bf16.msra.mxu0 0
      %1865 = vmatprep.subr.bf16.mxu0 0
      %1866 = vmatpush2.bf16.msra.mxu0 0
      %1867 = vmatprep.subr.bf16.mxu0 0
      %1868 = vmatpush2.bf16.msra.mxu0 0
      %1869 = vmatprep.subr.bf16.mxu0 0
      %1870 = vmatpush2.bf16.msra.mxu0 0
      %1871 = vmatprep.subr.bf16.mxu0 0
      %1872 = vmatpush2.bf16.msra.mxu0 0
      %1873 = vmatprep.subr.bf16.mxu0 0
      %1874 = vmatpush2.bf16.msra.mxu0 0
      %1875 = vmatprep.mubr.bf16.mxu0 0
      %1876 = vmatmul.mubr.bf16.gmra.mxu0 %v1829
      %v1877 = vpop.f32.mrf.mxu0
      %v1878 = vadd.f32 0.0, %v1877
      %v1879 = vpop.f32.mrf.mxu0
      %v1880 = vpop.f32.mrf.mxu0
      %v1881 = vadd.f32 0.0, %v1880
      %v1882 = vpop.f32.mrf.mxu0
      %1883 = vmatprep.mubr.bf16.mxu0 0
      %1884 = vmatmul.mubr.bf16.gmra.mxu0 %v1832
      %v1885 = vpop.f32.mrf.mxu0
      %v1886 = vadd.f32 0.0, %v1885
      %v1887 = vpop.f32.mrf.mxu0
      %v1888 = vpop.f32.mrf.mxu0
      %v1889 = vadd.f32 0.0, %v1888
      %v1890 = vpop.f32.mrf.mxu0
      %1891 = vmatprep.mubr.bf16.mxu0 0
      %1892 = vmatmul.mubr.bf16.gmra.mxu0 %v1835
      %v1893 = vpop.f32.mrf.mxu0
      %v1894 = vadd.f32 0.0, %v1893
      %v1895 = vpop.f32.mrf.mxu0
      %v1896 = vpop.f32.mrf.mxu0
      %v1897 = vadd.f32 0.0, %v1896
      %v1898 = vpop.f32.mrf.mxu0
      %1899 = vmatprep.mubr.bf16.mxu0 0
      %1900 = vmatmul.mubr.bf16.gmra.mxu0 %v1838
      %v1901 = vpop.f32.mrf.mxu0
      %v1902 = vadd.f32 0.0, %v1901
      %v1903 = vpop.f32.mrf.mxu0
      %v1904 = vpop.f32.mrf.mxu0
      %v1905 = vadd.f32 0.0, %v1904
      %v1906 = vpop.f32.mrf.mxu0
      %1907 = vdwg.mxu0
      %v1908 = vadd.f32 %v1805, %v1878
      %v1909 = vadd.f32 %v1806, %v1881
      %v1910 = vadd.f32 %v1807, %v1886
      %v1911 = vadd.f32 %v1808, %v1889
      %v1912 = vadd.f32 %v1809, %v1894
      %v1913 = vadd.f32 %v1810, %v1897
      %v1914 = vadd.f32 %v1811, %v1902
      %v1915 = vadd.f32 %v1812, %v1905
      %s1916 = scalar_lea.vmem [#allocation2], 160
      %v1917 = vld [vmem:[%s1916] sm:$0xff]
      %v1918 = vld [vmem:[%s1916 + $0x10] sm:$0xff]
      %v1919 = vld [vmem:[%s1916 + $0x20] sm:$0xff]
      %v1920 = vld [vmem:[%s1916 + $0x30] sm:$0xff]
      %v1921 = vld [vmem:[%s1916 + $0x40] sm:$0xff]
      %v1922 = vld [vmem:[%s1916 + $0x50] sm:$0xff]
      %v1923 = vld [vmem:[%s1916 + $0x60] sm:$0xff]
      %v1924 = vld [vmem:[%s1916 + $0x70] sm:$0xff]
      %v1925 = vpack.c.bf16 %v1918, %v1917
      %v1926 = vpack.c.bf16 %v1920, %v1919
      %v1927 = vpack.c.bf16 %v1922, %v1921
      %v1928 = vpack.c.bf16 %v1924, %v1923
      %s1929 = scalar_lea.vmem %s4, 14
      %v1930 = vld [vmem:[%s1929] sm:$0x3]
      %v1932 = vsel %vm1140, %v1925, 0
      %v1935 = vsel %vm1140, %v1926, 0
      %v1938 = vsel %vm1140, %v1927, 0
      %v1941 = vsel %vm1140, %v1928, 0
      %v1944 = vsel %vm1254, %v1930, 0
      %1946 = vmatprep.subr.bf16.mxu0 0
      %1947 = vmatpush1.bf16.msra.mxu0 0
      %1948 = vmatprep.subr.bf16.mxu0 0
      %1949 = vmatpush1.bf16.msra.mxu0 0
      %1950 = vmatprep.subr.bf16.mxu0 0
      %1951 = vmatpush1.bf16.msra.mxu0 0
      %1952 = vmatprep.subr.bf16.mxu0 0
      %1953 = vmatpush1.bf16.msra.mxu0 0
      %1954 = vmatprep.subr.bf16.mxu0 0
      %1955 = vmatpush1.bf16.msra.mxu0 0
      %1956 = vmatprep.subr.bf16.mxu0 0
      %1957 = vmatpush1.bf16.msra.mxu0 0
      %1958 = vmatprep.subr.bf16.mxu0 0
      %1959 = vmatpush1.bf16.msra.mxu0 0
      %1960 = vmatprep.subr.bf16.mxu0 0
      %1961 = vmatpush1.bf16.msra.mxu0 %v1944
      %1962 = vmatprep.subr.bf16.mxu0 0
      %1963 = vmatpush2.bf16.msra.mxu0 0
      %1964 = vmatprep.subr.bf16.mxu0 0
      %1965 = vmatpush2.bf16.msra.mxu0 0
      %1966 = vmatprep.subr.bf16.mxu0 0
      %1967 = vmatpush2.bf16.msra.mxu0 0
      %1968 = vmatprep.subr.bf16.mxu0 0
      %1969 = vmatpush2.bf16.msra.mxu0 0
      %1970 = vmatprep.subr.bf16.mxu0 0
      %1971 = vmatpush2.bf16.msra.mxu0 0
      %1972 = vmatprep.subr.bf16.mxu0 0
      %1973 = vmatpush2.bf16.msra.mxu0 0
      %1974 = vmatprep.subr.bf16.mxu0 0
      %1975 = vmatpush2.bf16.msra.mxu0 0
      %1976 = vmatprep.subr.bf16.mxu0 0
      %1977 = vmatpush2.bf16.msra.mxu0 0
      %1978 = vmatprep.mubr.bf16.mxu0 0
      %1979 = vmatmul.mubr.bf16.gmra.mxu0 %v1932
      %v1980 = vpop.f32.mrf.mxu0
      %v1981 = vadd.f32 0.0, %v1980
      %v1982 = vpop.f32.mrf.mxu0
      %v1983 = vpop.f32.mrf.mxu0
      %v1984 = vadd.f32 0.0, %v1983
      %v1985 = vpop.f32.mrf.mxu0
      %1986 = vmatprep.mubr.bf16.mxu0 0
      %1987 = vmatmul.mubr.bf16.gmra.mxu0 %v1935
      %v1988 = vpop.f32.mrf.mxu0
      %v1989 = vadd.f32 0.0, %v1988
      %v1990 = vpop.f32.mrf.mxu0
      %v1991 = vpop.f32.mrf.mxu0
      %v1992 = vadd.f32 0.0, %v1991
      %v1993 = vpop.f32.mrf.mxu0
      %1994 = vmatprep.mubr.bf16.mxu0 0
      %1995 = vmatmul.mubr.bf16.gmra.mxu0 %v1938
      %v1996 = vpop.f32.mrf.mxu0
      %v1997 = vadd.f32 0.0, %v1996
      %v1998 = vpop.f32.mrf.mxu0
      %v1999 = vpop.f32.mrf.mxu0
      %v2000 = vadd.f32 0.0, %v1999
      %v2001 = vpop.f32.mrf.mxu0
      %2002 = vmatprep.mubr.bf16.mxu0 0
      %2003 = vmatmul.mubr.bf16.gmra.mxu0 %v1941
      %v2004 = vpop.f32.mrf.mxu0
      %v2005 = vadd.f32 0.0, %v2004
      %v2006 = vpop.f32.mrf.mxu0
      %v2007 = vpop.f32.mrf.mxu0
      %v2008 = vadd.f32 0.0, %v2007
      %v2009 = vpop.f32.mrf.mxu0
      %2010 = vdwg.mxu0
      %v2011 = vadd.f32 %v1908, %v1981
      %v2012 = vadd.f32 %v1909, %v1984
      %v2013 = vadd.f32 %v1910, %v1989
      %v2014 = vadd.f32 %v1911, %v1992
      %v2015 = vadd.f32 %v1912, %v1997
      %v2016 = vadd.f32 %v1913, %v2000
      %v2017 = vadd.f32 %v1914, %v2005
      %v2018 = vadd.f32 %v1915, %v2008
      %v2019 = vld [vmem:[%s1813 + $0x1] sm:$0xff]
      %v2020 = vld [vmem:[%s1813 + $0x11] sm:$0xff]
      %v2021 = vld [vmem:[%s1813 + $0x21] sm:$0xff]
      %v2022 = vld [vmem:[%s1813 + $0x31] sm:$0xff]
      %v2023 = vld [vmem:[%s1813 + $0x41] sm:$0xff]
      %v2024 = vld [vmem:[%s1813 + $0x51] sm:$0xff]
      %v2025 = vld [vmem:[%s1813 + $0x61] sm:$0xff]
      %v2026 = vld [vmem:[%s1813 + $0x71] sm:$0xff]
      %v2027 = vpack.c.bf16 %v2020, %v2019
      %v2028 = vpack.c.bf16 %v2022, %v2021
      %v2029 = vpack.c.bf16 %v2024, %v2023
      %v2030 = vpack.c.bf16 %v2026, %v2025
      %s2031 = scalar_lea.vmem %s4, 16
      %v2032 = vld [vmem:[%s2031] sm:$0x3]
      %v2034 = vsel %vm1140, %v2027, 0
      %v2037 = vsel %vm1140, %v2028, 0
      %v2040 = vsel %vm1140, %v2029, 0
      %v2043 = vsel %vm1140, %v2030, 0
      %v2046 = vsel %vm1254, %v2032, 0
      %2048 = vmatprep.subr.bf16.mxu0 0
      %2049 = vmatpush1.bf16.msra.mxu0 0
      %2050 = vmatprep.subr.bf16.mxu0 0
      %2051 = vmatpush1.bf16.msra.mxu0 0
      %2052 = vmatprep.subr.bf16.mxu0 0
      %2053 = vmatpush1.bf16.msra.mxu0 0
      %2054 = vmatprep.subr.bf16.mxu0 0
      %2055 = vmatpush1.bf16.msra.mxu0 0
      %2056 = vmatprep.subr.bf16.mxu0 0
      %2057 = vmatpush1.bf16.msra.mxu0 0
      %2058 = vmatprep.subr.bf16.mxu0 0
      %2059 = vmatpush1.bf16.msra.mxu0 0
      %2060 = vmatprep.subr.bf16.mxu0 0
      %2061 = vmatpush1.bf16.msra.mxu0 0
      %2062 = vmatprep.subr.bf16.mxu0 0
      %2063 = vmatpush1.bf16.msra.mxu0 %v2046
      %2064 = vmatprep.subr.bf16.mxu0 0
      %2065 = vmatpush2.bf16.msra.mxu0 0
      %2066 = vmatprep.subr.bf16.mxu0 0
      %2067 = vmatpush2.bf16.msra.mxu0 0
      %2068 = vmatprep.subr.bf16.mxu0 0
      %2069 = vmatpush2.bf16.msra.mxu0 0
      %2070 = vmatprep.subr.bf16.mxu0 0
      %2071 = vmatpush2.bf16.msra.mxu0 0
      %2072 = vmatprep.subr.bf16.mxu0 0
      %2073 = vmatpush2.bf16.msra.mxu0 0
      %2074 = vmatprep.subr.bf16.mxu0 0
      %2075 = vmatpush2.bf16.msra.mxu0 0
      %2076 = vmatprep.subr.bf16.mxu0 0
      %2077 = vmatpush2.bf16.msra.mxu0 0
      %2078 = vmatprep.subr.bf16.mxu0 0
      %2079 = vmatpush2.bf16.msra.mxu0 0
      %2080 = vmatprep.mubr.bf16.mxu0 0
      %2081 = vmatmul.mubr.bf16.gmra.mxu0 %v2034
      %v2082 = vpop.f32.mrf.mxu0
      %v2083 = vadd.f32 0.0, %v2082
      %v2084 = vpop.f32.mrf.mxu0
      %v2085 = vpop.f32.mrf.mxu0
      %v2086 = vadd.f32 0.0, %v2085
      %v2087 = vpop.f32.mrf.mxu0
      %2088 = vmatprep.mubr.bf16.mxu0 0
      %2089 = vmatmul.mubr.bf16.gmra.mxu0 %v2037
      %v2090 = vpop.f32.mrf.mxu0
      %v2091 = vadd.f32 0.0, %v2090
      %v2092 = vpop.f32.mrf.mxu0
      %v2093 = vpop.f32.mrf.mxu0
      %v2094 = vadd.f32 0.0, %v2093
      %v2095 = vpop.f32.mrf.mxu0
      %2096 = vmatprep.mubr.bf16.mxu0 0
      %2097 = vmatmul.mubr.bf16.gmra.mxu0 %v2040
      %v2098 = vpop.f32.mrf.mxu0
      %v2099 = vadd.f32 0.0, %v2098
      %v2100 = vpop.f32.mrf.mxu0
      %v2101 = vpop.f32.mrf.mxu0
      %v2102 = vadd.f32 0.0, %v2101
      %v2103 = vpop.f32.mrf.mxu0
      %2104 = vmatprep.mubr.bf16.mxu0 0
      %2105 = vmatmul.mubr.bf16.gmra.mxu0 %v2043
      %v2106 = vpop.f32.mrf.mxu0
      %v2107 = vadd.f32 0.0, %v2106
      %v2108 = vpop.f32.mrf.mxu0
      %v2109 = vpop.f32.mrf.mxu0
      %v2110 = vadd.f32 0.0, %v2109
      %v2111 = vpop.f32.mrf.mxu0
      %2112 = vdwg.mxu0
      %v2113 = vadd.f32 %v2011, %v2083
      %v2114 = vadd.f32 %v2012, %v2086
      %v2115 = vadd.f32 %v2013, %v2091
      %v2116 = vadd.f32 %v2014, %v2094
      %v2117 = vadd.f32 %v2015, %v2099
      %v2118 = vadd.f32 %v2016, %v2102
      %v2119 = vadd.f32 %v2017, %v2107
      %v2120 = vadd.f32 %v2018, %v2110
      %v2121 = vld [vmem:[%s5] sm:$0x1]
      %v2123 = vlaneseq
      %v2124 = vshrl.u32 %v2123, 7
      %v2125 = vsub.s32 0, %v2124
      %v2126 = vrot.slane %v2121, %v2125
      %v2128 = vmul.f32 %v2113, %v2126
      %v2129 = vmul.f32 %v2114, %v2126
      %v2130 = vmul.f32 %v2115, %v2126
      %v2131 = vmul.f32 %v2116, %v2126
      %v2132 = vmul.f32 %v2117, %v2126
      %v2133 = vmul.f32 %v2118, %v2126
      %v2134 = vmul.f32 %v2119, %v2126
      %v2135 = vmul.f32 %v2120, %v2126
      %v2136 = vld [vmem:[%s6] sm:$0x1]
      %v2138 = vlaneseq
      %v2139 = vshrl.u32 %v2138, 7
      %v2140 = vsub.s32 0, %v2139
      %v2141 = vrot.slane %v2136, %v2140
      %v2143 = vadd.f32 %v2128, %v2141
      %v2144 = vadd.f32 %v2129, %v2141
      %v2145 = vadd.f32 %v2130, %v2141
      %v2146 = vadd.f32 %v2131, %v2141
      %v2147 = vadd.f32 %v2132, %v2141
      %v2148 = vadd.f32 %v2133, %v2141
      %v2149 = vadd.f32 %v2134, %v2141
      %v2150 = vadd.f32 %v2135, %v2141
      %v2151 = vmax.f32 %v2143, 0.0
      %v2152 = vmax.f32 %v2144, 0.0
      %v2153 = vmax.f32 %v2145, 0.0
      %v2154 = vmax.f32 %v2146, 0.0
      %v2155 = vmax.f32 %v2147, 0.0
      %v2156 = vmax.f32 %v2148, 0.0
      %v2157 = vmax.f32 %v2149, 0.0
      %v2158 = vmax.f32 %v2150, 0.0
      %2159 = vst [vmem:[#allocation3] sm:$0xff] 0.0
      %2160 = vst [vmem:[#allocation3 + $0x8] sm:$0x3] 0.0
      %2161 = vst [vmem:[#allocation3 + $0x10] sm:$0xff] 0.0
      %2162 = vst [vmem:[#allocation3 + $0x18] sm:$0x3] 0.0
      %2163 = vst [vmem:[#allocation3 + $0x20] sm:$0xff] 0.0
      %2164 = vst [vmem:[#allocation3 + $0x28] sm:$0x3] 0.0
      %2165 = vst [vmem:[#allocation3 + $0x30] sm:$0xff] 0.0
      %2166 = vst [vmem:[#allocation3 + $0x38] sm:$0x3] 0.0
      %2167 = vst [vmem:[#allocation3 + $0x40] sm:$0xff] 0.0
      %2168 = vst [vmem:[#allocation3 + $0x48] sm:$0x3] 0.0
      %2169 = vst [vmem:[#allocation3 + $0x50] sm:$0xff] 0.0
      %2170 = vst [vmem:[#allocation3 + $0x58] sm:$0x3] 0.0
      %2171 = vst [vmem:[#allocation3 + $0x60] sm:$0xff] 0.0
      %2172 = vst [vmem:[#allocation3 + $0x68] sm:$0x3] 0.0
      %2173 = vst [vmem:[#allocation3 + $0x70] sm:$0xff] 0.0
      %2174 = vst [vmem:[#allocation3 + $0x78] sm:$0x3] 0.0
      %2175 = vst [vmem:[#allocation3 + $0x80] sm:$0xff] 0.0
      %2176 = vst [vmem:[#allocation3 + $0x88] sm:$0x3] 0.0
      %2177 = vst [vmem:[#allocation3 + $0x90] sm:$0xff] 0.0
      %2178 = vst [vmem:[#allocation3 + $0x98] sm:$0x3] 0.0
      %s2179 = scalar_lea.vmem [#allocation3], 16
      %2180 = vst [vmem:[%s2179 + $0x1] sm:$0xff] %v2151
      %2181 = vst [vmem:[%s2179 + $0x11] sm:$0xff] %v2152
      %2182 = vst [vmem:[%s2179 + $0x21] sm:$0xff] %v2153
      %2183 = vst [vmem:[%s2179 + $0x31] sm:$0xff] %v2154
      %2184 = vst [vmem:[%s2179 + $0x41] sm:$0xff] %v2155
      %2185 = vst [vmem:[%s2179 + $0x51] sm:$0xff] %v2156
      %2186 = vst [vmem:[%s2179 + $0x61] sm:$0xff] %v2157
      %2187 = vst [vmem:[%s2179 + $0x71] sm:$0xff] %v2158
      %v2188 = vld [vmem:[%s1608] sm:$0xff]
      %v2189 = vld [vmem:[%s1608 + $0x10] sm:$0xff]
      %v2190 = vld [vmem:[%s1608 + $0x20] sm:$0xff]
      %v2191 = vld [vmem:[%s1608 + $0x30] sm:$0xff]
      %v2192 = vld [vmem:[%s1608 + $0x40] sm:$0xff]
      %v2193 = vld [vmem:[%s1608 + $0x50] sm:$0xff]
      %v2194 = vld [vmem:[%s1608 + $0x60] sm:$0xff]
      %v2195 = vld [vmem:[%s1608 + $0x70] sm:$0xff]
      %v2196 = vpack.c.bf16 %v2189, %v2188
      %v2197 = vpack.c.bf16 %v2191, %v2190
      %v2198 = vpack.c.bf16 %v2193, %v2192
      %v2199 = vpack.c.bf16 %v2195, %v2194
      %v2200 = vld [vmem:[%s8] sm:$0x3]
      %v2201 = vld [vmem:[#allocation3] sm:$0xff]
      %v2202 = vld [vmem:[#allocation3 + $0x10] sm:$0xff]
      %v2203 = vld [vmem:[#allocation3 + $0x20] sm:$0xff]
      %v2204 = vld [vmem:[#allocation3 + $0x30] sm:$0xff]
      %v2205 = vld [vmem:[#allocation3 + $0x40] sm:$0xff]
      %v2206 = vld [vmem:[#allocation3 + $0x50] sm:$0xff]
      %v2207 = vld [vmem:[#allocation3 + $0x60] sm:$0xff]
      %v2208 = vld [vmem:[#allocation3 + $0x70] sm:$0xff]
      %v2209 = vpack.c.bf16 %v2202, %v2201
      %v2210 = vpack.c.bf16 %v2204, %v2203
      %v2211 = vpack.c.bf16 %v2206, %v2205
      %v2212 = vpack.c.bf16 %v2208, %v2207
      %v2213 = vld [vmem:[%s7] sm:$0xf]
      %v2214 = vld [vmem:[%s7 + $0x4] sm:$0xf]
      %v2215 = vld [vmem:[%s7 + $0x8] sm:$0xf]
      %v2216 = vld [vmem:[%s7 + $0xc] sm:$0xf]
      %v2217 = vld [vmem:[%s7 + $0x10] sm:$0xf]
      %v2218 = vld [vmem:[%s7 + $0x14] sm:$0xf]
      %v2219 = vld [vmem:[%s7 + $0x18] sm:$0xf]
      %v2220 = vld [vmem:[%s7 + $0x1c] sm:$0xf]
      %v2221 = vld [vmem:[%s7 + $0x20] sm:$0xf]
      %v2222 = vld [vmem:[%s7 + $0x24] sm:$0xf]
      %v2223 = vld [vmem:[%s7 + $0x28] sm:$0xf]
      %v2224 = vld [vmem:[%s7 + $0x2c] sm:$0xf]
      %v2225 = vld [vmem:[%s7 + $0x30] sm:$0xf]
      %v2226 = vld [vmem:[%s7 + $0x34] sm:$0xf]
      %v2227 = vld [vmem:[%s7 + $0x38] sm:$0xf]
      %v2228 = vld [vmem:[%s7 + $0x3c] sm:$0xf]
      %v2245 = vunpack.c.l.b16 %v2213
      %v2246 = vunpack.c.l.b16 %v2214
      %v2247 = vunpack.c.l.b16 %v2215
      %v2248 = vunpack.c.l.b16 %v2216
      %v2249 = vunpack.c.l.b16 %v2217
      %v2250 = vunpack.c.l.b16 %v2218
      %v2251 = vunpack.c.l.b16 %v2219
      %v2252 = vunpack.c.l.b16 %v2220
      %v2253 = vunpack.c.l.b16 %v2221
      %v2254 = vunpack.c.l.b16 %v2222
      %v2255 = vunpack.c.l.b16 %v2223
      %v2256 = vunpack.c.l.b16 %v2224
      %v2257 = vunpack.c.l.b16 %v2225
      %v2258 = vunpack.c.l.b16 %v2226
      %v2259 = vunpack.c.l.b16 %v2227
      %v2260 = vunpack.c.l.b16 %v2228
      %v2261 = vpack.c.b16 %v2246, %v2245
      %v2262 = vpack.c.b16 %v2248, %v2247
      %v2263 = vpack.c.b16 %v2250, %v2249
      %v2264 = vpack.c.b16 %v2252, %v2251
      %v2265 = vpack.c.b16 %v2254, %v2253
      %v2266 = vpack.c.b16 %v2256, %v2255
      %v2267 = vpack.c.b16 %v2258, %v2257
      %v2268 = vpack.c.b16 %v2260, %v2259
      %2277 = vmatprep.subr.bf16.mxu0 0
      %2278 = vmatpush1.bf16.msra.mxu0 %v2268
      %2279 = vmatprep.subr.bf16.mxu0 0
      %2280 = vmatpush1.bf16.msra.mxu0 %v2267
      %2281 = vmatprep.subr.bf16.mxu0 0
      %2282 = vmatpush1.bf16.msra.mxu0 %v2266
      %2283 = vmatprep.subr.bf16.mxu0 0
      %2284 = vmatpush1.bf16.msra.mxu0 %v2265
      %2285 = vmatprep.subr.bf16.mxu0 0
      %2286 = vmatpush1.bf16.msra.mxu0 %v2264
      %2287 = vmatprep.subr.bf16.mxu0 0
      %2288 = vmatpush1.bf16.msra.mxu0 %v2263
      %2289 = vmatprep.subr.bf16.mxu0 0
      %2290 = vmatpush1.bf16.msra.mxu0 %v2262
      %2291 = vmatprep.subr.bf16.mxu0 0
      %2292 = vmatpush1.bf16.msra.mxu0 %v2261
      %2293 = vmatprep.subr.bf16.mxu0 0
      %2294 = vmatpush2.bf16.msra.mxu0 0
      %2295 = vmatprep.subr.bf16.mxu0 0
      %2296 = vmatpush2.bf16.msra.mxu0 0
      %2297 = vmatprep.subr.bf16.mxu0 0
      %2298 = vmatpush2.bf16.msra.mxu0 0
      %2299 = vmatprep.subr.bf16.mxu0 0
      %2300 = vmatpush2.bf16.msra.mxu0 0
      %2301 = vmatprep.subr.bf16.mxu0 0
      %2302 = vmatpush2.bf16.msra.mxu0 0
      %2303 = vmatprep.subr.bf16.mxu0 0
      %2304 = vmatpush2.bf16.msra.mxu0 0
      %2305 = vmatprep.subr.bf16.mxu0 0
      %2306 = vmatpush2.bf16.msra.mxu0 0
      %2307 = vmatprep.subr.bf16.mxu0 0
      %2308 = vmatpush2.bf16.msra.mxu0 0
      %2309 = vmatprep.mubr.bf16.mxu0 0
      %2310 = vmatmul.mubr.bf16.gmra.mxu0 %v2209
      %v2311 = vpop.f32.mrf.mxu0
      %v2312 = vadd.f32 0.0, %v2311
      %v2313 = vpop.f32.mrf.mxu0
      %v2314 = vpop.f32.mrf.mxu0
      %v2315 = vadd.f32 0.0, %v2314
      %v2316 = vpop.f32.mrf.mxu0
      %2317 = vmatprep.mubr.bf16.mxu0 0
      %2318 = vmatmul.mubr.bf16.gmra.mxu0 %v2210
      %v2319 = vpop.f32.mrf.mxu0
      %v2320 = vadd.f32 0.0, %v2319
      %v2321 = vpop.f32.mrf.mxu0
      %v2322 = vpop.f32.mrf.mxu0
      %v2323 = vadd.f32 0.0, %v2322
      %v2324 = vpop.f32.mrf.mxu0
      %2325 = vmatprep.mubr.bf16.mxu0 0
      %2326 = vmatmul.mubr.bf16.gmra.mxu0 %v2211
      %v2327 = vpop.f32.mrf.mxu0
      %v2328 = vadd.f32 0.0, %v2327
      %v2329 = vpop.f32.mrf.mxu0
      %v2330 = vpop.f32.mrf.mxu0
      %v2331 = vadd.f32 0.0, %v2330
      %v2332 = vpop.f32.mrf.mxu0
      %2333 = vmatprep.mubr.bf16.mxu0 0
      %2334 = vmatmul.mubr.bf16.gmra.mxu0 %v2212
      %v2335 = vpop.f32.mrf.mxu0
      %v2336 = vadd.f32 0.0, %v2335
      %v2337 = vpop.f32.mrf.mxu0
      %v2338 = vpop.f32.mrf.mxu0
      %v2339 = vadd.f32 0.0, %v2338
      %v2340 = vpop.f32.mrf.mxu0
      %2341 = vdwg.mxu0
      %v2343 = vsel %vm1140, %v2196, 0
      %v2346 = vsel %vm1140, %v2197, 0
      %v2349 = vsel %vm1140, %v2198, 0
      %v2352 = vsel %vm1140, %v2199, 0
      %v2355 = vsel %vm1254, %v2200, 0
      %2357 = vmatprep.subr.bf16.mxu0 0
      %2358 = vmatpush1.bf16.msra.mxu0 0
      %2359 = vmatprep.subr.bf16.mxu0 0
      %2360 = vmatpush1.bf16.msra.mxu0 0
      %2361 = vmatprep.subr.bf16.mxu0 0
      %2362 = vmatpush1.bf16.msra.mxu0 0
      %2363 = vmatprep.subr.bf16.mxu0 0
      %2364 = vmatpush1.bf16.msra.mxu0 0
      %2365 = vmatprep.subr.bf16.mxu0 0
      %2366 = vmatpush1.bf16.msra.mxu0 0
      %2367 = vmatprep.subr.bf16.mxu0 0
      %2368 = vmatpush1.bf16.msra.mxu0 0
      %2369 = vmatprep.subr.bf16.mxu0 0
      %2370 = vmatpush1.bf16.msra.mxu0 0
      %2371 = vmatprep.subr.bf16.mxu0 0
      %2372 = vmatpush1.bf16.msra.mxu0 %v2355
      %2373 = vmatprep.subr.bf16.mxu0 0
      %2374 = vmatpush2.bf16.msra.mxu0 0
      %2375 = vmatprep.subr.bf16.mxu0 0
      %2376 = vmatpush2.bf16.msra.mxu0 0
      %2377 = vmatprep.subr.bf16.mxu0 0
      %2378 = vmatpush2.bf16.msra.mxu0 0
      %2379 = vmatprep.subr.bf16.mxu0 0
      %2380 = vmatpush2.bf16.msra.mxu0 0
      %2381 = vmatprep.subr.bf16.mxu0 0
      %2382 = vmatpush2.bf16.msra.mxu0 0
      %2383 = vmatprep.subr.bf16.mxu0 0
      %2384 = vmatpush2.bf16.msra.mxu0 0
      %2385 = vmatprep.subr.bf16.mxu0 0
      %2386 = vmatpush2.bf16.msra.mxu0 0
      %2387 = vmatprep.subr.bf16.mxu0 0
      %2388 = vmatpush2.bf16.msra.mxu0 0
      %2389 = vmatprep.mubr.bf16.mxu0 0
      %2390 = vmatmul.mubr.bf16.gmra.mxu0 %v2343
      %v2391 = vpop.f32.mrf.mxu0
      %v2392 = vadd.f32 %v2312, %v2391
      %v2393 = vpop.f32.mrf.mxu0
      %v2394 = vpop.f32.mrf.mxu0
      %v2395 = vadd.f32 %v2315, %v2394
      %v2396 = vpop.f32.mrf.mxu0
      %2397 = vmatprep.mubr.bf16.mxu0 0
      %2398 = vmatmul.mubr.bf16.gmra.mxu0 %v2346
      %v2399 = vpop.f32.mrf.mxu0
      %v2400 = vadd.f32 %v2320, %v2399
      %v2401 = vpop.f32.mrf.mxu0
      %v2402 = vpop.f32.mrf.mxu0
      %v2403 = vadd.f32 %v2323, %v2402
      %v2404 = vpop.f32.mrf.mxu0
      %2405 = vmatprep.mubr.bf16.mxu0 0
      %2406 = vmatmul.mubr.bf16.gmra.mxu0 %v2349
      %v2407 = vpop.f32.mrf.mxu0
      %v2408 = vadd.f32 %v2328, %v2407
      %v2409 = vpop.f32.mrf.mxu0
      %v2410 = vpop.f32.mrf.mxu0
      %v2411 = vadd.f32 %v2331, %v2410
      %v2412 = vpop.f32.mrf.mxu0
      %2413 = vmatprep.mubr.bf16.mxu0 0
      %2414 = vmatmul.mubr.bf16.gmra.mxu0 %v2352
      %v2415 = vpop.f32.mrf.mxu0
      %v2416 = vadd.f32 %v2336, %v2415
      %v2417 = vpop.f32.mrf.mxu0
      %v2418 = vpop.f32.mrf.mxu0
      %v2419 = vadd.f32 %v2339, %v2418
      %v2420 = vpop.f32.mrf.mxu0
      %2421 = vdwg.mxu0
      %v2422 = vld [vmem:[#allocation3 + $0x1] sm:$0xff]
      %v2423 = vld [vmem:[#allocation3 + $0x11] sm:$0xff]
      %v2424 = vld [vmem:[#allocation3 + $0x21] sm:$0xff]
      %v2425 = vld [vmem:[#allocation3 + $0x31] sm:$0xff]
      %v2426 = vld [vmem:[#allocation3 + $0x41] sm:$0xff]
      %v2427 = vld [vmem:[#allocation3 + $0x51] sm:$0xff]
      %v2428 = vld [vmem:[#allocation3 + $0x61] sm:$0xff]
      %v2429 = vld [vmem:[#allocation3 + $0x71] sm:$0xff]
      %v2430 = vpack.c.bf16 %v2423, %v2422
      %v2431 = vpack.c.bf16 %v2425, %v2424
      %v2432 = vpack.c.bf16 %v2427, %v2426
      %v2433 = vpack.c.bf16 %v2429, %v2428
      %s2434 = scalar_lea.vmem %s7, 64
      %v2435 = vld [vmem:[%s2434] sm:$0xf]
      %v2436 = vld [vmem:[%s2434 + $0x4] sm:$0xf]
      %v2437 = vld [vmem:[%s2434 + $0x8] sm:$0xf]
      %v2438 = vld [vmem:[%s2434 + $0xc] sm:$0xf]
      %v2439 = vld [vmem:[%s2434 + $0x10] sm:$0xf]
      %v2440 = vld [vmem:[%s2434 + $0x14] sm:$0xf]
      %v2441 = vld [vmem:[%s2434 + $0x18] sm:$0xf]
      %v2442 = vld [vmem:[%s2434 + $0x1c] sm:$0xf]
      %v2443 = vld [vmem:[%s2434 + $0x20] sm:$0xf]
      %v2444 = vld [vmem:[%s2434 + $0x24] sm:$0xf]
      %v2445 = vld [vmem:[%s2434 + $0x28] sm:$0xf]
      %v2446 = vld [vmem:[%s2434 + $0x2c] sm:$0xf]
      %v2447 = vld [vmem:[%s2434 + $0x30] sm:$0xf]
      %v2448 = vld [vmem:[%s2434 + $0x34] sm:$0xf]
      %v2449 = vld [vmem:[%s2434 + $0x38] sm:$0xf]
      %v2450 = vld [vmem:[%s2434 + $0x3c] sm:$0xf]
      %v2467 = vunpack.c.l.b16 %v2435
      %v2468 = vunpack.c.l.b16 %v2436
      %v2469 = vunpack.c.l.b16 %v2437
      %v2470 = vunpack.c.l.b16 %v2438
      %v2471 = vunpack.c.l.b16 %v2439
      %v2472 = vunpack.c.l.b16 %v2440
      %v2473 = vunpack.c.l.b16 %v2441
      %v2474 = vunpack.c.l.b16 %v2442
      %v2475 = vunpack.c.l.b16 %v2443
      %v2476 = vunpack.c.l.b16 %v2444
      %v2477 = vunpack.c.l.b16 %v2445
      %v2478 = vunpack.c.l.b16 %v2446
      %v2479 = vunpack.c.l.b16 %v2447
      %v2480 = vunpack.c.l.b16 %v2448
      %v2481 = vunpack.c.l.b16 %v2449
      %v2482 = vunpack.c.l.b16 %v2450
      %v2483 = vpack.c.b16 %v2468, %v2467
      %v2484 = vpack.c.b16 %v2470, %v2469
      %v2485 = vpack.c.b16 %v2472, %v2471
      %v2486 = vpack.c.b16 %v2474, %v2473
      %v2487 = vpack.c.b16 %v2476, %v2475
      %v2488 = vpack.c.b16 %v2478, %v2477
      %v2489 = vpack.c.b16 %v2480, %v2479
      %v2490 = vpack.c.b16 %v2482, %v2481
      %2499 = vmatprep.subr.bf16.mxu0 0
      %2500 = vmatpush1.bf16.msra.mxu0 %v2490
      %2501 = vmatprep.subr.bf16.mxu0 0
      %2502 = vmatpush1.bf16.msra.mxu0 %v2489
      %2503 = vmatprep.subr.bf16.mxu0 0
      %2504 = vmatpush1.bf16.msra.mxu0 %v2488
      %2505 = vmatprep.subr.bf16.mxu0 0
      %2506 = vmatpush1.bf16.msra.mxu0 %v2487
      %2507 = vmatprep.subr.bf16.mxu0 0
      %2508 = vmatpush1.bf16.msra.mxu0 %v2486
      %2509 = vmatprep.subr.bf16.mxu0 0
      %2510 = vmatpush1.bf16.msra.mxu0 %v2485
      %2511 = vmatprep.subr.bf16.mxu0 0
      %2512 = vmatpush1.bf16.msra.mxu0 %v2484
      %2513 = vmatprep.subr.bf16.mxu0 0
      %2514 = vmatpush1.bf16.msra.mxu0 %v2483
      %2515 = vmatprep.subr.bf16.mxu0 0
      %2516 = vmatpush2.bf16.msra.mxu0 0
      %2517 = vmatprep.subr.bf16.mxu0 0
      %2518 = vmatpush2.bf16.msra.mxu0 0
      %2519 = vmatprep.subr.bf16.mxu0 0
      %2520 = vmatpush2.bf16.msra.mxu0 0
      %2521 = vmatprep.subr.bf16.mxu0 0
      %2522 = vmatpush2.bf16.msra.mxu0 0
      %2523 = vmatprep.subr.bf16.mxu0 0
      %2524 = vmatpush2.bf16.msra.mxu0 0
      %2525 = vmatprep.subr.bf16.mxu0 0
      %2526 = vmatpush2.bf16.msra.mxu0 0
      %2527 = vmatprep.subr.bf16.mxu0 0
      %2528 = vmatpush2.bf16.msra.mxu0 0
      %2529 = vmatprep.subr.bf16.mxu0 0
      %2530 = vmatpush2.bf16.msra.mxu0 0
      %2531 = vmatprep.mubr.bf16.mxu0 0
      %2532 = vmatmul.mubr.bf16.gmra.mxu0 %v2430
      %v2533 = vpop.f32.mrf.mxu0
      %v2534 = vadd.f32 0.0, %v2533
      %v2535 = vpop.f32.mrf.mxu0
      %v2536 = vpop.f32.mrf.mxu0
      %v2537 = vadd.f32 0.0, %v2536
      %v2538 = vpop.f32.mrf.mxu0
      %2539 = vmatprep.mubr.bf16.mxu0 0
      %2540 = vmatmul.mubr.bf16.gmra.mxu0 %v2431
      %v2541 = vpop.f32.mrf.mxu0
      %v2542 = vadd.f32 0.0, %v2541
      %v2543 = vpop.f32.mrf.mxu0
      %v2544 = vpop.f32.mrf.mxu0
      %v2545 = vadd.f32 0.0, %v2544
      %v2546 = vpop.f32.mrf.mxu0
      %2547 = vmatprep.mubr.bf16.mxu0 0
      %2548 = vmatmul.mubr.bf16.gmra.mxu0 %v2432
      %v2549 = vpop.f32.mrf.mxu0
      %v2550 = vadd.f32 0.0, %v2549
      %v2551 = vpop.f32.mrf.mxu0
      %v2552 = vpop.f32.mrf.mxu0
      %v2553 = vadd.f32 0.0, %v2552
      %v2554 = vpop.f32.mrf.mxu0
      %2555 = vmatprep.mubr.bf16.mxu0 0
      %2556 = vmatmul.mubr.bf16.gmra.mxu0 %v2433
      %v2557 = vpop.f32.mrf.mxu0
      %v2558 = vadd.f32 0.0, %v2557
      %v2559 = vpop.f32.mrf.mxu0
      %v2560 = vpop.f32.mrf.mxu0
      %v2561 = vadd.f32 0.0, %v2560
      %v2562 = vpop.f32.mrf.mxu0
      %2563 = vdwg.mxu0
      %v2564 = vadd.f32 %v2392, %v2534
      %v2565 = vadd.f32 %v2395, %v2537
      %v2566 = vadd.f32 %v2400, %v2542
      %v2567 = vadd.f32 %v2403, %v2545
      %v2568 = vadd.f32 %v2408, %v2550
      %v2569 = vadd.f32 %v2411, %v2553
      %v2570 = vadd.f32 %v2416, %v2558
      %v2571 = vadd.f32 %v2419, %v2561
      %v2572 = vld [vmem:[#allocation3 + $0x2] sm:$0xff]
      %v2573 = vld [vmem:[#allocation3 + $0x12] sm:$0xff]
      %v2574 = vld [vmem:[#allocation3 + $0x22] sm:$0xff]
      %v2575 = vld [vmem:[#allocation3 + $0x32] sm:$0xff]
      %v2576 = vld [vmem:[#allocation3 + $0x42] sm:$0xff]
      %v2577 = vld [vmem:[#allocation3 + $0x52] sm:$0xff]
      %v2578 = vld [vmem:[#allocation3 + $0x62] sm:$0xff]
      %v2579 = vld [vmem:[#allocation3 + $0x72] sm:$0xff]
      %v2580 = vpack.c.bf16 %v2573, %v2572
      %v2581 = vpack.c.bf16 %v2575, %v2574
      %v2582 = vpack.c.bf16 %v2577, %v2576
      %v2583 = vpack.c.bf16 %v2579, %v2578
      %s2584 = scalar_lea.vmem %s7, 128
      %v2585 = vld [vmem:[%s2584] sm:$0xf]
      %v2586 = vld [vmem:[%s2584 + $0x4] sm:$0xf]
      %v2587 = vld [vmem:[%s2584 + $0x8] sm:$0xf]
      %v2588 = vld [vmem:[%s2584 + $0xc] sm:$0xf]
      %v2589 = vld [vmem:[%s2584 + $0x10] sm:$0xf]
      %v2590 = vld [vmem:[%s2584 + $0x14] sm:$0xf]
      %v2591 = vld [vmem:[%s2584 + $0x18] sm:$0xf]
      %v2592 = vld [vmem:[%s2584 + $0x1c] sm:$0xf]
      %v2593 = vld [vmem:[%s2584 + $0x20] sm:$0xf]
      %v2594 = vld [vmem:[%s2584 + $0x24] sm:$0xf]
      %v2595 = vld [vmem:[%s2584 + $0x28] sm:$0xf]
      %v2596 = vld [vmem:[%s2584 + $0x2c] sm:$0xf]
      %v2597 = vld [vmem:[%s2584 + $0x30] sm:$0xf]
      %v2598 = vld [vmem:[%s2584 + $0x34] sm:$0xf]
      %v2599 = vld [vmem:[%s2584 + $0x38] sm:$0xf]
      %v2600 = vld [vmem:[%s2584 + $0x3c] sm:$0xf]
      %v2617 = vunpack.c.l.b16 %v2585
      %v2618 = vunpack.c.l.b16 %v2586
      %v2619 = vunpack.c.l.b16 %v2587
      %v2620 = vunpack.c.l.b16 %v2588
      %v2621 = vunpack.c.l.b16 %v2589
      %v2622 = vunpack.c.l.b16 %v2590
      %v2623 = vunpack.c.l.b16 %v2591
      %v2624 = vunpack.c.l.b16 %v2592
      %v2625 = vunpack.c.l.b16 %v2593
      %v2626 = vunpack.c.l.b16 %v2594
      %v2627 = vunpack.c.l.b16 %v2595
      %v2628 = vunpack.c.l.b16 %v2596
      %v2629 = vunpack.c.l.b16 %v2597
      %v2630 = vunpack.c.l.b16 %v2598
      %v2631 = vunpack.c.l.b16 %v2599
      %v2632 = vunpack.c.l.b16 %v2600
      %v2633 = vpack.c.b16 %v2618, %v2617
      %v2634 = vpack.c.b16 %v2620, %v2619
      %v2635 = vpack.c.b16 %v2622, %v2621
      %v2636 = vpack.c.b16 %v2624, %v2623
      %v2637 = vpack.c.b16 %v2626, %v2625
      %v2638 = vpack.c.b16 %v2628, %v2627
      %v2639 = vpack.c.b16 %v2630, %v2629
      %v2640 = vpack.c.b16 %v2632, %v2631
      %2649 = vmatprep.subr.bf16.mxu0 0
      %2650 = vmatpush1.bf16.msra.mxu0 %v2640
      %2651 = vmatprep.subr.bf16.mxu0 0
      %2652 = vmatpush1.bf16.msra.mxu0 %v2639
      %2653 = vmatprep.subr.bf16.mxu0 0
      %2654 = vmatpush1.bf16.msra.mxu0 %v2638
      %2655 = vmatprep.subr.bf16.mxu0 0
      %2656 = vmatpush1.bf16.msra.mxu0 %v2637
      %2657 = vmatprep.subr.bf16.mxu0 0
      %2658 = vmatpush1.bf16.msra.mxu0 %v2636
      %2659 = vmatprep.subr.bf16.mxu0 0
      %2660 = vmatpush1.bf16.msra.mxu0 %v2635
      %2661 = vmatprep.subr.bf16.mxu0 0
      %2662 = vmatpush1.bf16.msra.mxu0 %v2634
      %2663 = vmatprep.subr.bf16.mxu0 0
      %2664 = vmatpush1.bf16.msra.mxu0 %v2633
      %2665 = vmatprep.subr.bf16.mxu0 0
      %2666 = vmatpush2.bf16.msra.mxu0 0
      %2667 = vmatprep.subr.bf16.mxu0 0
      %2668 = vmatpush2.bf16.msra.mxu0 0
      %2669 = vmatprep.subr.bf16.mxu0 0
      %2670 = vmatpush2.bf16.msra.mxu0 0
      %2671 = vmatprep.subr.bf16.mxu0 0
      %2672 = vmatpush2.bf16.msra.mxu0 0
      %2673 = vmatprep.subr.bf16.mxu0 0
      %2674 = vmatpush2.bf16.msra.mxu0 0
      %2675 = vmatprep.subr.bf16.mxu0 0
      %2676 = vmatpush2.bf16.msra.mxu0 0
      %2677 = vmatprep.subr.bf16.mxu0 0
      %2678 = vmatpush2.bf16.msra.mxu0 0
      %2679 = vmatprep.subr.bf16.mxu0 0
      %2680 = vmatpush2.bf16.msra.mxu0 0
      %2681 = vmatprep.mubr.bf16.mxu0 0
      %2682 = vmatmul.mubr.bf16.gmra.mxu0 %v2580
      %v2683 = vpop.f32.mrf.mxu0
      %v2684 = vadd.f32 0.0, %v2683
      %v2685 = vpop.f32.mrf.mxu0
      %v2686 = vpop.f32.mrf.mxu0
      %v2687 = vadd.f32 0.0, %v2686
      %v2688 = vpop.f32.mrf.mxu0
      %2689 = vmatprep.mubr.bf16.mxu0 0
      %2690 = vmatmul.mubr.bf16.gmra.mxu0 %v2581
      %v2691 = vpop.f32.mrf.mxu0
      %v2692 = vadd.f32 0.0, %v2691
      %v2693 = vpop.f32.mrf.mxu0
      %v2694 = vpop.f32.mrf.mxu0
      %v2695 = vadd.f32 0.0, %v2694
      %v2696 = vpop.f32.mrf.mxu0
      %2697 = vmatprep.mubr.bf16.mxu0 0
      %2698 = vmatmul.mubr.bf16.gmra.mxu0 %v2582
      %v2699 = vpop.f32.mrf.mxu0
      %v2700 = vadd.f32 0.0, %v2699
      %v2701 = vpop.f32.mrf.mxu0
      %v2702 = vpop.f32.mrf.mxu0
      %v2703 = vadd.f32 0.0, %v2702
      %v2704 = vpop.f32.mrf.mxu0
      %2705 = vmatprep.mubr.bf16.mxu0 0
      %2706 = vmatmul.mubr.bf16.gmra.mxu0 %v2583
      %v2707 = vpop.f32.mrf.mxu0
      %v2708 = vadd.f32 0.0, %v2707
      %v2709 = vpop.f32.mrf.mxu0
      %v2710 = vpop.f32.mrf.mxu0
      %v2711 = vadd.f32 0.0, %v2710
      %v2712 = vpop.f32.mrf.mxu0
      %2713 = vdwg.mxu0
      %v2714 = vadd.f32 %v2564, %v2684
      %v2715 = vadd.f32 %v2565, %v2687
      %v2716 = vadd.f32 %v2566, %v2692
      %v2717 = vadd.f32 %v2567, %v2695
      %v2718 = vadd.f32 %v2568, %v2700
      %v2719 = vadd.f32 %v2569, %v2703
      %v2720 = vadd.f32 %v2570, %v2708
      %v2721 = vadd.f32 %v2571, %v2711
      %v2722 = vld [vmem:[%s2179] sm:$0xff]
      %v2723 = vld [vmem:[%s2179 + $0x10] sm:$0xff]
      %v2724 = vld [vmem:[%s2179 + $0x20] sm:$0xff]
      %v2725 = vld [vmem:[%s2179 + $0x30] sm:$0xff]
      %v2726 = vld [vmem:[%s2179 + $0x40] sm:$0xff]
      %v2727 = vld [vmem:[%s2179 + $0x50] sm:$0xff]
      %v2728 = vld [vmem:[%s2179 + $0x60] sm:$0xff]
      %v2729 = vld [vmem:[%s2179 + $0x70] sm:$0xff]
      %v2730 = vpack.c.bf16 %v2723, %v2722
      %v2731 = vpack.c.bf16 %v2725, %v2724
      %v2732 = vpack.c.bf16 %v2727, %v2726
      %v2733 = vpack.c.bf16 %v2729, %v2728
      %s2734 = scalar_lea.vmem %s7, 192
      %v2735 = vld [vmem:[%s2734] sm:$0xf]
      %v2736 = vld [vmem:[%s2734 + $0x4] sm:$0xf]
      %v2737 = vld [vmem:[%s2734 + $0x8] sm:$0xf]
      %v2738 = vld [vmem:[%s2734 + $0xc] sm:$0xf]
      %v2739 = vld [vmem:[%s2734 + $0x10] sm:$0xf]
      %v2740 = vld [vmem:[%s2734 + $0x14] sm:$0xf]
      %v2741 = vld [vmem:[%s2734 + $0x18] sm:$0xf]
      %v2742 = vld [vmem:[%s2734 + $0x1c] sm:$0xf]
      %v2743 = vld [vmem:[%s2734 + $0x20] sm:$0xf]
      %v2744 = vld [vmem:[%s2734 + $0x24] sm:$0xf]
      %v2745 = vld [vmem:[%s2734 + $0x28] sm:$0xf]
      %v2746 = vld [vmem:[%s2734 + $0x2c] sm:$0xf]
      %v2747 = vld [vmem:[%s2734 + $0x30] sm:$0xf]
      %v2748 = vld [vmem:[%s2734 + $0x34] sm:$0xf]
      %v2749 = vld [vmem:[%s2734 + $0x38] sm:$0xf]
      %v2750 = vld [vmem:[%s2734 + $0x3c] sm:$0xf]
      %v2767 = vunpack.c.l.b16 %v2735
      %v2768 = vunpack.c.l.b16 %v2736
      %v2769 = vunpack.c.l.b16 %v2737
      %v2770 = vunpack.c.l.b16 %v2738
      %v2771 = vunpack.c.l.b16 %v2739
      %v2772 = vunpack.c.l.b16 %v2740
      %v2773 = vunpack.c.l.b16 %v2741
      %v2774 = vunpack.c.l.b16 %v2742
      %v2775 = vunpack.c.l.b16 %v2743
      %v2776 = vunpack.c.l.b16 %v2744
      %v2777 = vunpack.c.l.b16 %v2745
      %v2778 = vunpack.c.l.b16 %v2746
      %v2779 = vunpack.c.l.b16 %v2747
      %v2780 = vunpack.c.l.b16 %v2748
      %v2781 = vunpack.c.l.b16 %v2749
      %v2782 = vunpack.c.l.b16 %v2750
      %v2783 = vpack.c.b16 %v2768, %v2767
      %v2784 = vpack.c.b16 %v2770, %v2769
      %v2785 = vpack.c.b16 %v2772, %v2771
      %v2786 = vpack.c.b16 %v2774, %v2773
      %v2787 = vpack.c.b16 %v2776, %v2775
      %v2788 = vpack.c.b16 %v2778, %v2777
      %v2789 = vpack.c.b16 %v2780, %v2779
      %v2790 = vpack.c.b16 %v2782, %v2781
      %2799 = vmatprep.subr.bf16.mxu0 0
      %2800 = vmatpush1.bf16.msra.mxu0 %v2790
      %2801 = vmatprep.subr.bf16.mxu0 0
      %2802 = vmatpush1.bf16.msra.mxu0 %v2789
      %2803 = vmatprep.subr.bf16.mxu0 0
      %2804 = vmatpush1.bf16.msra.mxu0 %v2788
      %2805 = vmatprep.subr.bf16.mxu0 0
      %2806 = vmatpush1.bf16.msra.mxu0 %v2787
      %2807 = vmatprep.subr.bf16.mxu0 0
      %2808 = vmatpush1.bf16.msra.mxu0 %v2786
      %2809 = vmatprep.subr.bf16.mxu0 0
      %2810 = vmatpush1.bf16.msra.mxu0 %v2785
      %2811 = vmatprep.subr.bf16.mxu0 0
      %2812 = vmatpush1.bf16.msra.mxu0 %v2784
      %2813 = vmatprep.subr.bf16.mxu0 0
      %2814 = vmatpush1.bf16.msra.mxu0 %v2783
      %2815 = vmatprep.subr.bf16.mxu0 0
      %2816 = vmatpush2.bf16.msra.mxu0 0
      %2817 = vmatprep.subr.bf16.mxu0 0
      %2818 = vmatpush2.bf16.msra.mxu0 0
      %2819 = vmatprep.subr.bf16.mxu0 0
      %2820 = vmatpush2.bf16.msra.mxu0 0
      %2821 = vmatprep.subr.bf16.mxu0 0
      %2822 = vmatpush2.bf16.msra.mxu0 0
      %2823 = vmatprep.subr.bf16.mxu0 0
      %2824 = vmatpush2.bf16.msra.mxu0 0
      %2825 = vmatprep.subr.bf16.mxu0 0
      %2826 = vmatpush2.bf16.msra.mxu0 0
      %2827 = vmatprep.subr.bf16.mxu0 0
      %2828 = vmatpush2.bf16.msra.mxu0 0
      %2829 = vmatprep.subr.bf16.mxu0 0
      %2830 = vmatpush2.bf16.msra.mxu0 0
      %2831 = vmatprep.mubr.bf16.mxu0 0
      %2832 = vmatmul.mubr.bf16.gmra.mxu0 %v2730
      %v2833 = vpop.f32.mrf.mxu0
      %v2834 = vadd.f32 0.0, %v2833
      %v2835 = vpop.f32.mrf.mxu0
      %v2836 = vpop.f32.mrf.mxu0
      %v2837 = vadd.f32 0.0, %v2836
      %v2838 = vpop.f32.mrf.mxu0
      %2839 = vmatprep.mubr.bf16.mxu0 0
      %2840 = vmatmul.mubr.bf16.gmra.mxu0 %v2731
      %v2841 = vpop.f32.mrf.mxu0
      %v2842 = vadd.f32 0.0, %v2841
      %v2843 = vpop.f32.mrf.mxu0
      %v2844 = vpop.f32.mrf.mxu0
      %v2845 = vadd.f32 0.0, %v2844
      %v2846 = vpop.f32.mrf.mxu0
      %2847 = vmatprep.mubr.bf16.mxu0 0
      %2848 = vmatmul.mubr.bf16.gmra.mxu0 %v2732
      %v2849 = vpop.f32.mrf.mxu0
      %v2850 = vadd.f32 0.0, %v2849
      %v2851 = vpop.f32.mrf.mxu0
      %v2852 = vpop.f32.mrf.mxu0
      %v2853 = vadd.f32 0.0, %v2852
      %v2854 = vpop.f32.mrf.mxu0
      %2855 = vmatprep.mubr.bf16.mxu0 0
      %2856 = vmatmul.mubr.bf16.gmra.mxu0 %v2733
      %v2857 = vpop.f32.mrf.mxu0
      %v2858 = vadd.f32 0.0, %v2857
      %v2859 = vpop.f32.mrf.mxu0
      %v2860 = vpop.f32.mrf.mxu0
      %v2861 = vadd.f32 0.0, %v2860
      %v2862 = vpop.f32.mrf.mxu0
      %2863 = vdwg.mxu0
      %v2864 = vadd.f32 %v2714, %v2834
      %v2865 = vadd.f32 %v2715, %v2837
      %v2866 = vadd.f32 %v2716, %v2842
      %v2867 = vadd.f32 %v2717, %v2845
      %v2868 = vadd.f32 %v2718, %v2850
      %v2869 = vadd.f32 %v2719, %v2853
      %v2870 = vadd.f32 %v2720, %v2858
      %v2871 = vadd.f32 %v2721, %v2861
      %v2872 = vld [vmem:[%s2179 + $0x1] sm:$0xff]
      %v2873 = vld [vmem:[%s2179 + $0x11] sm:$0xff]
      %v2874 = vld [vmem:[%s2179 + $0x21] sm:$0xff]
      %v2875 = vld [vmem:[%s2179 + $0x31] sm:$0xff]
      %v2876 = vld [vmem:[%s2179 + $0x41] sm:$0xff]
      %v2877 = vld [vmem:[%s2179 + $0x51] sm:$0xff]
      %v2878 = vld [vmem:[%s2179 + $0x61] sm:$0xff]
      %v2879 = vld [vmem:[%s2179 + $0x71] sm:$0xff]
      %v2880 = vpack.c.bf16 %v2873, %v2872
      %v2881 = vpack.c.bf16 %v2875, %v2874
      %v2882 = vpack.c.bf16 %v2877, %v2876
      %v2883 = vpack.c.bf16 %v2879, %v2878
      %s2884 = scalar_lea.vmem %s7, 256
      %v2885 = vld [vmem:[%s2884] sm:$0xf]
      %v2886 = vld [vmem:[%s2884 + $0x4] sm:$0xf]
      %v2887 = vld [vmem:[%s2884 + $0x8] sm:$0xf]
      %v2888 = vld [vmem:[%s2884 + $0xc] sm:$0xf]
      %v2889 = vld [vmem:[%s2884 + $0x10] sm:$0xf]
      %v2890 = vld [vmem:[%s2884 + $0x14] sm:$0xf]
      %v2891 = vld [vmem:[%s2884 + $0x18] sm:$0xf]
      %v2892 = vld [vmem:[%s2884 + $0x1c] sm:$0xf]
      %v2893 = vld [vmem:[%s2884 + $0x20] sm:$0xf]
      %v2894 = vld [vmem:[%s2884 + $0x24] sm:$0xf]
      %v2895 = vld [vmem:[%s2884 + $0x28] sm:$0xf]
      %v2896 = vld [vmem:[%s2884 + $0x2c] sm:$0xf]
      %v2897 = vld [vmem:[%s2884 + $0x30] sm:$0xf]
      %v2898 = vld [vmem:[%s2884 + $0x34] sm:$0xf]
      %v2899 = vld [vmem:[%s2884 + $0x38] sm:$0xf]
      %v2900 = vld [vmem:[%s2884 + $0x3c] sm:$0xf]
      %v2917 = vunpack.c.l.b16 %v2885
      %v2918 = vunpack.c.l.b16 %v2886
      %v2919 = vunpack.c.l.b16 %v2887
      %v2920 = vunpack.c.l.b16 %v2888
      %v2921 = vunpack.c.l.b16 %v2889
      %v2922 = vunpack.c.l.b16 %v2890
      %v2923 = vunpack.c.l.b16 %v2891
      %v2924 = vunpack.c.l.b16 %v2892
      %v2925 = vunpack.c.l.b16 %v2893
      %v2926 = vunpack.c.l.b16 %v2894
      %v2927 = vunpack.c.l.b16 %v2895
      %v2928 = vunpack.c.l.b16 %v2896
      %v2929 = vunpack.c.l.b16 %v2897
      %v2930 = vunpack.c.l.b16 %v2898
      %v2931 = vunpack.c.l.b16 %v2899
      %v2932 = vunpack.c.l.b16 %v2900
      %v2933 = vpack.c.b16 %v2918, %v2917
      %v2934 = vpack.c.b16 %v2920, %v2919
      %v2935 = vpack.c.b16 %v2922, %v2921
      %v2936 = vpack.c.b16 %v2924, %v2923
      %v2937 = vpack.c.b16 %v2926, %v2925
      %v2938 = vpack.c.b16 %v2928, %v2927
      %v2939 = vpack.c.b16 %v2930, %v2929
      %v2940 = vpack.c.b16 %v2932, %v2931
      %2949 = vmatprep.subr.bf16.mxu0 0
      %2950 = vmatpush1.bf16.msra.mxu0 %v2940
      %2951 = vmatprep.subr.bf16.mxu0 0
      %2952 = vmatpush1.bf16.msra.mxu0 %v2939
      %2953 = vmatprep.subr.bf16.mxu0 0
      %2954 = vmatpush1.bf16.msra.mxu0 %v2938
      %2955 = vmatprep.subr.bf16.mxu0 0
      %2956 = vmatpush1.bf16.msra.mxu0 %v2937
      %2957 = vmatprep.subr.bf16.mxu0 0
      %2958 = vmatpush1.bf16.msra.mxu0 %v2936
      %2959 = vmatprep.subr.bf16.mxu0 0
      %2960 = vmatpush1.bf16.msra.mxu0 %v2935
      %2961 = vmatprep.subr.bf16.mxu0 0
      %2962 = vmatpush1.bf16.msra.mxu0 %v2934
      %2963 = vmatprep.subr.bf16.mxu0 0
      %2964 = vmatpush1.bf16.msra.mxu0 %v2933
      %2965 = vmatprep.subr.bf16.mxu0 0
      %2966 = vmatpush2.bf16.msra.mxu0 0
      %2967 = vmatprep.subr.bf16.mxu0 0
      %2968 = vmatpush2.bf16.msra.mxu0 0
      %2969 = vmatprep.subr.bf16.mxu0 0
      %2970 = vmatpush2.bf16.msra.mxu0 0
      %2971 = vmatprep.subr.bf16.mxu0 0
      %2972 = vmatpush2.bf16.msra.mxu0 0
      %2973 = vmatprep.subr.bf16.mxu0 0
      %2974 = vmatpush2.bf16.msra.mxu0 0
      %2975 = vmatprep.subr.bf16.mxu0 0
      %2976 = vmatpush2.bf16.msra.mxu0 0
      %2977 = vmatprep.subr.bf16.mxu0 0
      %2978 = vmatpush2.bf16.msra.mxu0 0
      %2979 = vmatprep.subr.bf16.mxu0 0
      %2980 = vmatpush2.bf16.msra.mxu0 0
      %2981 = vmatprep.mubr.bf16.mxu0 0
      %2982 = vmatmul.mubr.bf16.gmra.mxu0 %v2880
      %v2983 = vpop.f32.mrf.mxu0
      %v2984 = vadd.f32 0.0, %v2983
      %v2985 = vpop.f32.mrf.mxu0
      %v2986 = vpop.f32.mrf.mxu0
      %v2987 = vadd.f32 0.0, %v2986
      %v2988 = vpop.f32.mrf.mxu0
      %2989 = vmatprep.mubr.bf16.mxu0 0
      %2990 = vmatmul.mubr.bf16.gmra.mxu0 %v2881
      %v2991 = vpop.f32.mrf.mxu0
      %v2992 = vadd.f32 0.0, %v2991
      %v2993 = vpop.f32.mrf.mxu0
      %v2994 = vpop.f32.mrf.mxu0
      %v2995 = vadd.f32 0.0, %v2994
      %v2996 = vpop.f32.mrf.mxu0
      %2997 = vmatprep.mubr.bf16.mxu0 0
      %2998 = vmatmul.mubr.bf16.gmra.mxu0 %v2882
      %v2999 = vpop.f32.mrf.mxu0
      %v3000 = vadd.f32 0.0, %v2999
      %v3001 = vpop.f32.mrf.mxu0
      %v3002 = vpop.f32.mrf.mxu0
      %v3003 = vadd.f32 0.0, %v3002
      %v3004 = vpop.f32.mrf.mxu0
      %3005 = vmatprep.mubr.bf16.mxu0 0
      %3006 = vmatmul.mubr.bf16.gmra.mxu0 %v2883
      %v3007 = vpop.f32.mrf.mxu0
      %v3008 = vadd.f32 0.0, %v3007
      %v3009 = vpop.f32.mrf.mxu0
      %v3010 = vpop.f32.mrf.mxu0
      %v3011 = vadd.f32 0.0, %v3010
      %v3012 = vpop.f32.mrf.mxu0
      %3013 = vdwg.mxu0
      %v3014 = vadd.f32 %v2864, %v2984
      %v3015 = vadd.f32 %v2865, %v2987
      %v3016 = vadd.f32 %v2866, %v2992
      %v3017 = vadd.f32 %v2867, %v2995
      %v3018 = vadd.f32 %v2868, %v3000
      %v3019 = vadd.f32 %v2869, %v3003
      %v3020 = vadd.f32 %v2870, %v3008
      %v3021 = vadd.f32 %v2871, %v3011
      %v3022 = vld [vmem:[%s2179 + $0x2] sm:$0xff]
      %v3023 = vld [vmem:[%s2179 + $0x12] sm:$0xff]
      %v3024 = vld [vmem:[%s2179 + $0x22] sm:$0xff]
      %v3025 = vld [vmem:[%s2179 + $0x32] sm:$0xff]
      %v3026 = vld [vmem:[%s2179 + $0x42] sm:$0xff]
      %v3027 = vld [vmem:[%s2179 + $0x52] sm:$0xff]
      %v3028 = vld [vmem:[%s2179 + $0x62] sm:$0xff]
      %v3029 = vld [vmem:[%s2179 + $0x72] sm:$0xff]
      %v3030 = vpack.c.bf16 %v3023, %v3022
      %v3031 = vpack.c.bf16 %v3025, %v3024
      %v3032 = vpack.c.bf16 %v3027, %v3026
      %v3033 = vpack.c.bf16 %v3029, %v3028
      %s3034 = scalar_lea.vmem %s7, 320
      %v3035 = vld [vmem:[%s3034] sm:$0xf]
      %v3036 = vld [vmem:[%s3034 + $0x4] sm:$0xf]
      %v3037 = vld [vmem:[%s3034 + $0x8] sm:$0xf]
      %v3038 = vld [vmem:[%s3034 + $0xc] sm:$0xf]
      %v3039 = vld [vmem:[%s3034 + $0x10] sm:$0xf]
      %v3040 = vld [vmem:[%s3034 + $0x14] sm:$0xf]
      %v3041 = vld [vmem:[%s3034 + $0x18] sm:$0xf]
      %v3042 = vld [vmem:[%s3034 + $0x1c] sm:$0xf]
      %v3043 = vld [vmem:[%s3034 + $0x20] sm:$0xf]
      %v3044 = vld [vmem:[%s3034 + $0x24] sm:$0xf]
      %v3045 = vld [vmem:[%s3034 + $0x28] sm:$0xf]
      %v3046 = vld [vmem:[%s3034 + $0x2c] sm:$0xf]
      %v3047 = vld [vmem:[%s3034 + $0x30] sm:$0xf]
      %v3048 = vld [vmem:[%s3034 + $0x34] sm:$0xf]
      %v3049 = vld [vmem:[%s3034 + $0x38] sm:$0xf]
      %v3050 = vld [vmem:[%s3034 + $0x3c] sm:$0xf]
      %v3067 = vunpack.c.l.b16 %v3035
      %v3068 = vunpack.c.l.b16 %v3036
      %v3069 = vunpack.c.l.b16 %v3037
      %v3070 = vunpack.c.l.b16 %v3038
      %v3071 = vunpack.c.l.b16 %v3039
      %v3072 = vunpack.c.l.b16 %v3040
      %v3073 = vunpack.c.l.b16 %v3041
      %v3074 = vunpack.c.l.b16 %v3042
      %v3075 = vunpack.c.l.b16 %v3043
      %v3076 = vunpack.c.l.b16 %v3044
      %v3077 = vunpack.c.l.b16 %v3045
      %v3078 = vunpack.c.l.b16 %v3046
      %v3079 = vunpack.c.l.b16 %v3047
      %v3080 = vunpack.c.l.b16 %v3048
      %v3081 = vunpack.c.l.b16 %v3049
      %v3082 = vunpack.c.l.b16 %v3050
      %v3083 = vpack.c.b16 %v3068, %v3067
      %v3084 = vpack.c.b16 %v3070, %v3069
      %v3085 = vpack.c.b16 %v3072, %v3071
      %v3086 = vpack.c.b16 %v3074, %v3073
      %v3087 = vpack.c.b16 %v3076, %v3075
      %v3088 = vpack.c.b16 %v3078, %v3077
      %v3089 = vpack.c.b16 %v3080, %v3079
      %v3090 = vpack.c.b16 %v3082, %v3081
      %3099 = vmatprep.subr.bf16.mxu0 0
      %3100 = vmatpush1.bf16.msra.mxu0 %v3090
      %3101 = vmatprep.subr.bf16.mxu0 0
      %3102 = vmatpush1.bf16.msra.mxu0 %v3089
      %3103 = vmatprep.subr.bf16.mxu0 0
      %3104 = vmatpush1.bf16.msra.mxu0 %v3088
      %3105 = vmatprep.subr.bf16.mxu0 0
      %3106 = vmatpush1.bf16.msra.mxu0 %v3087
      %3107 = vmatprep.subr.bf16.mxu0 0
      %3108 = vmatpush1.bf16.msra.mxu0 %v3086
      %3109 = vmatprep.subr.bf16.mxu0 0
      %3110 = vmatpush1.bf16.msra.mxu0 %v3085
      %3111 = vmatprep.subr.bf16.mxu0 0
      %3112 = vmatpush1.bf16.msra.mxu0 %v3084
      %3113 = vmatprep.subr.bf16.mxu0 0
      %3114 = vmatpush1.bf16.msra.mxu0 %v3083
      %3115 = vmatprep.subr.bf16.mxu0 0
      %3116 = vmatpush2.bf16.msra.mxu0 0
      %3117 = vmatprep.subr.bf16.mxu0 0
      %3118 = vmatpush2.bf16.msra.mxu0 0
      %3119 = vmatprep.subr.bf16.mxu0 0
      %3120 = vmatpush2.bf16.msra.mxu0 0
      %3121 = vmatprep.subr.bf16.mxu0 0
      %3122 = vmatpush2.bf16.msra.mxu0 0
      %3123 = vmatprep.subr.bf16.mxu0 0
      %3124 = vmatpush2.bf16.msra.mxu0 0
      %3125 = vmatprep.subr.bf16.mxu0 0
      %3126 = vmatpush2.bf16.msra.mxu0 0
      %3127 = vmatprep.subr.bf16.mxu0 0
      %3128 = vmatpush2.bf16.msra.mxu0 0
      %3129 = vmatprep.subr.bf16.mxu0 0
      %3130 = vmatpush2.bf16.msra.mxu0 0
      %3131 = vmatprep.mubr.bf16.mxu0 0
      %3132 = vmatmul.mubr.bf16.gmra.mxu0 %v3030
      %v3133 = vpop.f32.mrf.mxu0
      %v3134 = vadd.f32 0.0, %v3133
      %v3135 = vpop.f32.mrf.mxu0
      %v3136 = vpop.f32.mrf.mxu0
      %v3137 = vadd.f32 0.0, %v3136
      %v3138 = vpop.f32.mrf.mxu0
      %3139 = vmatprep.mubr.bf16.mxu0 0
      %3140 = vmatmul.mubr.bf16.gmra.mxu0 %v3031
      %v3141 = vpop.f32.mrf.mxu0
      %v3142 = vadd.f32 0.0, %v3141
      %v3143 = vpop.f32.mrf.mxu0
      %v3144 = vpop.f32.mrf.mxu0
      %v3145 = vadd.f32 0.0, %v3144
      %v3146 = vpop.f32.mrf.mxu0
      %3147 = vmatprep.mubr.bf16.mxu0 0
      %3148 = vmatmul.mubr.bf16.gmra.mxu0 %v3032
      %v3149 = vpop.f32.mrf.mxu0
      %v3150 = vadd.f32 0.0, %v3149
      %v3151 = vpop.f32.mrf.mxu0
      %v3152 = vpop.f32.mrf.mxu0
      %v3153 = vadd.f32 0.0, %v3152
      %v3154 = vpop.f32.mrf.mxu0
      %3155 = vmatprep.mubr.bf16.mxu0 0
      %3156 = vmatmul.mubr.bf16.gmra.mxu0 %v3033
      %v3157 = vpop.f32.mrf.mxu0
      %v3158 = vadd.f32 0.0, %v3157
      %v3159 = vpop.f32.mrf.mxu0
      %v3160 = vpop.f32.mrf.mxu0
      %v3161 = vadd.f32 0.0, %v3160
      %v3162 = vpop.f32.mrf.mxu0
      %3163 = vdwg.mxu0
      %v3164 = vadd.f32 %v3014, %v3134
      %v3165 = vadd.f32 %v3015, %v3137
      %v3166 = vadd.f32 %v3016, %v3142
      %v3167 = vadd.f32 %v3017, %v3145
      %v3168 = vadd.f32 %v3018, %v3150
      %v3169 = vadd.f32 %v3019, %v3153
      %v3170 = vadd.f32 %v3020, %v3158
      %v3171 = vadd.f32 %v3021, %v3161
      %s3172 = scalar_lea.vmem [#allocation3], 32
      %v3173 = vld [vmem:[%s3172] sm:$0xff]
      %v3174 = vld [vmem:[%s3172 + $0x10] sm:$0xff]
      %v3175 = vld [vmem:[%s3172 + $0x20] sm:$0xff]
      %v3176 = vld [vmem:[%s3172 + $0x30] sm:$0xff]
      %v3177 = vld [vmem:[%s3172 + $0x40] sm:$0xff]
      %v3178 = vld [vmem:[%s3172 + $0x50] sm:$0xff]
      %v3179 = vld [vmem:[%s3172 + $0x60] sm:$0xff]
      %v3180 = vld [vmem:[%s3172 + $0x70] sm:$0xff]
      %v3181 = vpack.c.bf16 %v3174, %v3173
      %v3182 = vpack.c.bf16 %v3176, %v3175
      %v3183 = vpack.c.bf16 %v3178, %v3177
      %v3184 = vpack.c.bf16 %v3180, %v3179
      %s3185 = scalar_lea.vmem %s7, 384
      %v3186 = vld [vmem:[%s3185] sm:$0xf]
      %v3187 = vld [vmem:[%s3185 + $0x4] sm:$0xf]
      %v3188 = vld [vmem:[%s3185 + $0x8] sm:$0xf]
      %v3189 = vld [vmem:[%s3185 + $0xc] sm:$0xf]
      %v3190 = vld [vmem:[%s3185 + $0x10] sm:$0xf]
      %v3191 = vld [vmem:[%s3185 + $0x14] sm:$0xf]
      %v3192 = vld [vmem:[%s3185 + $0x18] sm:$0xf]
      %v3193 = vld [vmem:[%s3185 + $0x1c] sm:$0xf]
      %v3194 = vld [vmem:[%s3185 + $0x20] sm:$0xf]
      %v3195 = vld [vmem:[%s3185 + $0x24] sm:$0xf]
      %v3196 = vld [vmem:[%s3185 + $0x28] sm:$0xf]
      %v3197 = vld [vmem:[%s3185 + $0x2c] sm:$0xf]
      %v3198 = vld [vmem:[%s3185 + $0x30] sm:$0xf]
      %v3199 = vld [vmem:[%s3185 + $0x34] sm:$0xf]
      %v3200 = vld [vmem:[%s3185 + $0x38] sm:$0xf]
      %v3201 = vld [vmem:[%s3185 + $0x3c] sm:$0xf]
      %v3218 = vunpack.c.l.b16 %v3186
      %v3219 = vunpack.c.l.b16 %v3187
      %v3220 = vunpack.c.l.b16 %v3188
      %v3221 = vunpack.c.l.b16 %v3189
      %v3222 = vunpack.c.l.b16 %v3190
      %v3223 = vunpack.c.l.b16 %v3191
      %v3224 = vunpack.c.l.b16 %v3192
      %v3225 = vunpack.c.l.b16 %v3193
      %v3226 = vunpack.c.l.b16 %v3194
      %v3227 = vunpack.c.l.b16 %v3195
      %v3228 = vunpack.c.l.b16 %v3196
      %v3229 = vunpack.c.l.b16 %v3197
      %v3230 = vunpack.c.l.b16 %v3198
      %v3231 = vunpack.c.l.b16 %v3199
      %v3232 = vunpack.c.l.b16 %v3200
      %v3233 = vunpack.c.l.b16 %v3201
      %v3234 = vpack.c.b16 %v3219, %v3218
      %v3235 = vpack.c.b16 %v3221, %v3220
      %v3236 = vpack.c.b16 %v3223, %v3222
      %v3237 = vpack.c.b16 %v3225, %v3224
      %v3238 = vpack.c.b16 %v3227, %v3226
      %v3239 = vpack.c.b16 %v3229, %v3228
      %v3240 = vpack.c.b16 %v3231, %v3230
      %v3241 = vpack.c.b16 %v3233, %v3232
      %3250 = vmatprep.subr.bf16.mxu0 0
      %3251 = vmatpush1.bf16.msra.mxu0 %v3241
      %3252 = vmatprep.subr.bf16.mxu0 0
      %3253 = vmatpush1.bf16.msra.mxu0 %v3240
      %3254 = vmatprep.subr.bf16.mxu0 0
      %3255 = vmatpush1.bf16.msra.mxu0 %v3239
      %3256 = vmatprep.subr.bf16.mxu0 0
      %3257 = vmatpush1.bf16.msra.mxu0 %v3238
      %3258 = vmatprep.subr.bf16.mxu0 0
      %3259 = vmatpush1.bf16.msra.mxu0 %v3237
      %3260 = vmatprep.subr.bf16.mxu0 0
      %3261 = vmatpush1.bf16.msra.mxu0 %v3236
      %3262 = vmatprep.subr.bf16.mxu0 0
      %3263 = vmatpush1.bf16.msra.mxu0 %v3235
      %3264 = vmatprep.subr.bf16.mxu0 0
      %3265 = vmatpush1.bf16.msra.mxu0 %v3234
      %3266 = vmatprep.subr.bf16.mxu0 0
      %3267 = vmatpush2.bf16.msra.mxu0 0
      %3268 = vmatprep.subr.bf16.mxu0 0
      %3269 = vmatpush2.bf16.msra.mxu0 0
      %3270 = vmatprep.subr.bf16.mxu0 0
      %3271 = vmatpush2.bf16.msra.mxu0 0
      %3272 = vmatprep.subr.bf16.mxu0 0
      %3273 = vmatpush2.bf16.msra.mxu0 0
      %3274 = vmatprep.subr.bf16.mxu0 0
      %3275 = vmatpush2.bf16.msra.mxu0 0
      %3276 = vmatprep.subr.bf16.mxu0 0
      %3277 = vmatpush2.bf16.msra.mxu0 0
      %3278 = vmatprep.subr.bf16.mxu0 0
      %3279 = vmatpush2.bf16.msra.mxu0 0
      %3280 = vmatprep.subr.bf16.mxu0 0
      %3281 = vmatpush2.bf16.msra.mxu0 0
      %3282 = vmatprep.mubr.bf16.mxu0 0
      %3283 = vmatmul.mubr.bf16.gmra.mxu0 %v3181
      %v3284 = vpop.f32.mrf.mxu0
      %v3285 = vadd.f32 0.0, %v3284
      %v3286 = vpop.f32.mrf.mxu0
      %v3287 = vpop.f32.mrf.mxu0
      %v3288 = vadd.f32 0.0, %v3287
      %v3289 = vpop.f32.mrf.mxu0
      %3290 = vmatprep.mubr.bf16.mxu0 0
      %3291 = vmatmul.mubr.bf16.gmra.mxu0 %v3182
      %v3292 = vpop.f32.mrf.mxu0
      %v3293 = vadd.f32 0.0, %v3292
      %v3294 = vpop.f32.mrf.mxu0
      %v3295 = vpop.f32.mrf.mxu0
      %v3296 = vadd.f32 0.0, %v3295
      %v3297 = vpop.f32.mrf.mxu0
      %3298 = vmatprep.mubr.bf16.mxu0 0
      %3299 = vmatmul.mubr.bf16.gmra.mxu0 %v3183
      %v3300 = vpop.f32.mrf.mxu0
      %v3301 = vadd.f32 0.0, %v3300
      %v3302 = vpop.f32.mrf.mxu0
      %v3303 = vpop.f32.mrf.mxu0
      %v3304 = vadd.f32 0.0, %v3303
      %v3305 = vpop.f32.mrf.mxu0
      %3306 = vmatprep.mubr.bf16.mxu0 0
      %3307 = vmatmul.mubr.bf16.gmra.mxu0 %v3184
      %v3308 = vpop.f32.mrf.mxu0
      %v3309 = vadd.f32 0.0, %v3308
      %v3310 = vpop.f32.mrf.mxu0
      %v3311 = vpop.f32.mrf.mxu0
      %v3312 = vadd.f32 0.0, %v3311
      %v3313 = vpop.f32.mrf.mxu0
      %3314 = vdwg.mxu0
      %v3315 = vadd.f32 %v3164, %v3285
      %v3316 = vadd.f32 %v3165, %v3288
      %v3317 = vadd.f32 %v3166, %v3293
      %v3318 = vadd.f32 %v3167, %v3296
      %v3319 = vadd.f32 %v3168, %v3301
      %v3320 = vadd.f32 %v3169, %v3304
      %v3321 = vadd.f32 %v3170, %v3309
      %v3322 = vadd.f32 %v3171, %v3312
      %v3323 = vld [vmem:[%s3172 + $0x1] sm:$0xff]
      %v3324 = vld [vmem:[%s3172 + $0x11] sm:$0xff]
      %v3325 = vld [vmem:[%s3172 + $0x21] sm:$0xff]
      %v3326 = vld [vmem:[%s3172 + $0x31] sm:$0xff]
      %v3327 = vld [vmem:[%s3172 + $0x41] sm:$0xff]
      %v3328 = vld [vmem:[%s3172 + $0x51] sm:$0xff]
      %v3329 = vld [vmem:[%s3172 + $0x61] sm:$0xff]
      %v3330 = vld [vmem:[%s3172 + $0x71] sm:$0xff]
      %v3331 = vpack.c.bf16 %v3324, %v3323
      %v3332 = vpack.c.bf16 %v3326, %v3325
      %v3333 = vpack.c.bf16 %v3328, %v3327
      %v3334 = vpack.c.bf16 %v3330, %v3329
      %s3335 = scalar_lea.vmem %s7, 448
      %v3336 = vld [vmem:[%s3335] sm:$0xf]
      %v3337 = vld [vmem:[%s3335 + $0x4] sm:$0xf]
      %v3338 = vld [vmem:[%s3335 + $0x8] sm:$0xf]
      %v3339 = vld [vmem:[%s3335 + $0xc] sm:$0xf]
      %v3340 = vld [vmem:[%s3335 + $0x10] sm:$0xf]
      %v3341 = vld [vmem:[%s3335 + $0x14] sm:$0xf]
      %v3342 = vld [vmem:[%s3335 + $0x18] sm:$0xf]
      %v3343 = vld [vmem:[%s3335 + $0x1c] sm:$0xf]
      %v3344 = vld [vmem:[%s3335 + $0x20] sm:$0xf]
      %v3345 = vld [vmem:[%s3335 + $0x24] sm:$0xf]
      %v3346 = vld [vmem:[%s3335 + $0x28] sm:$0xf]
      %v3347 = vld [vmem:[%s3335 + $0x2c] sm:$0xf]
      %v3348 = vld [vmem:[%s3335 + $0x30] sm:$0xf]
      %v3349 = vld [vmem:[%s3335 + $0x34] sm:$0xf]
      %v3350 = vld [vmem:[%s3335 + $0x38] sm:$0xf]
      %v3351 = vld [vmem:[%s3335 + $0x3c] sm:$0xf]
      %v3368 = vunpack.c.l.b16 %v3336
      %v3369 = vunpack.c.l.b16 %v3337
      %v3370 = vunpack.c.l.b16 %v3338
      %v3371 = vunpack.c.l.b16 %v3339
      %v3372 = vunpack.c.l.b16 %v3340
      %v3373 = vunpack.c.l.b16 %v3341
      %v3374 = vunpack.c.l.b16 %v3342
      %v3375 = vunpack.c.l.b16 %v3343
      %v3376 = vunpack.c.l.b16 %v3344
      %v3377 = vunpack.c.l.b16 %v3345
      %v3378 = vunpack.c.l.b16 %v3346
      %v3379 = vunpack.c.l.b16 %v3347
      %v3380 = vunpack.c.l.b16 %v3348
      %v3381 = vunpack.c.l.b16 %v3349
      %v3382 = vunpack.c.l.b16 %v3350
      %v3383 = vunpack.c.l.b16 %v3351
      %v3384 = vpack.c.b16 %v3369, %v3368
      %v3385 = vpack.c.b16 %v3371, %v3370
      %v3386 = vpack.c.b16 %v3373, %v3372
      %v3387 = vpack.c.b16 %v3375, %v3374
      %v3388 = vpack.c.b16 %v3377, %v3376
      %v3389 = vpack.c.b16 %v3379, %v3378
      %v3390 = vpack.c.b16 %v3381, %v3380
      %v3391 = vpack.c.b16 %v3383, %v3382
      %3400 = vmatprep.subr.bf16.mxu0 0
      %3401 = vmatpush1.bf16.msra.mxu0 %v3391
      %3402 = vmatprep.subr.bf16.mxu0 0
      %3403 = vmatpush1.bf16.msra.mxu0 %v3390
      %3404 = vmatprep.subr.bf16.mxu0 0
      %3405 = vmatpush1.bf16.msra.mxu0 %v3389
      %3406 = vmatprep.subr.bf16.mxu0 0
      %3407 = vmatpush1.bf16.msra.mxu0 %v3388
      %3408 = vmatprep.subr.bf16.mxu0 0
      %3409 = vmatpush1.bf16.msra.mxu0 %v3387
      %3410 = vmatprep.subr.bf16.mxu0 0
      %3411 = vmatpush1.bf16.msra.mxu0 %v3386
      %3412 = vmatprep.subr.bf16.mxu0 0
      %3413 = vmatpush1.bf16.msra.mxu0 %v3385
      %3414 = vmatprep.subr.bf16.mxu0 0
      %3415 = vmatpush1.bf16.msra.mxu0 %v3384
      %3416 = vmatprep.subr.bf16.mxu0 0
      %3417 = vmatpush2.bf16.msra.mxu0 0
      %3418 = vmatprep.subr.bf16.mxu0 0
      %3419 = vmatpush2.bf16.msra.mxu0 0
      %3420 = vmatprep.subr.bf16.mxu0 0
      %3421 = vmatpush2.bf16.msra.mxu0 0
      %3422 = vmatprep.subr.bf16.mxu0 0
      %3423 = vmatpush2.bf16.msra.mxu0 0
      %3424 = vmatprep.subr.bf16.mxu0 0
      %3425 = vmatpush2.bf16.msra.mxu0 0
      %3426 = vmatprep.subr.bf16.mxu0 0
      %3427 = vmatpush2.bf16.msra.mxu0 0
      %3428 = vmatprep.subr.bf16.mxu0 0
      %3429 = vmatpush2.bf16.msra.mxu0 0
      %3430 = vmatprep.subr.bf16.mxu0 0
      %3431 = vmatpush2.bf16.msra.mxu0 0
      %3432 = vmatprep.mubr.bf16.mxu0 0
      %3433 = vmatmul.mubr.bf16.gmra.mxu0 %v3331
      %v3434 = vpop.f32.mrf.mxu0
      %v3435 = vadd.f32 0.0, %v3434
      %v3436 = vpop.f32.mrf.mxu0
      %v3437 = vpop.f32.mrf.mxu0
      %v3438 = vadd.f32 0.0, %v3437
      %v3439 = vpop.f32.mrf.mxu0
      %3440 = vmatprep.mubr.bf16.mxu0 0
      %3441 = vmatmul.mubr.bf16.gmra.mxu0 %v3332
      %v3442 = vpop.f32.mrf.mxu0
      %v3443 = vadd.f32 0.0, %v3442
      %v3444 = vpop.f32.mrf.mxu0
      %v3445 = vpop.f32.mrf.mxu0
      %v3446 = vadd.f32 0.0, %v3445
      %v3447 = vpop.f32.mrf.mxu0
      %3448 = vmatprep.mubr.bf16.mxu0 0
      %3449 = vmatmul.mubr.bf16.gmra.mxu0 %v3333
      %v3450 = vpop.f32.mrf.mxu0
      %v3451 = vadd.f32 0.0, %v3450
      %v3452 = vpop.f32.mrf.mxu0
      %v3453 = vpop.f32.mrf.mxu0
      %v3454 = vadd.f32 0.0, %v3453
      %v3455 = vpop.f32.mrf.mxu0
      %3456 = vmatprep.mubr.bf16.mxu0 0
      %3457 = vmatmul.mubr.bf16.gmra.mxu0 %v3334
      %v3458 = vpop.f32.mrf.mxu0
      %v3459 = vadd.f32 0.0, %v3458
      %v3460 = vpop.f32.mrf.mxu0
      %v3461 = vpop.f32.mrf.mxu0
      %v3462 = vadd.f32 0.0, %v3461
      %v3463 = vpop.f32.mrf.mxu0
      %3464 = vdwg.mxu0
      %v3465 = vadd.f32 %v3315, %v3435
      %v3466 = vadd.f32 %v3316, %v3438
      %v3467 = vadd.f32 %v3317, %v3443
      %v3468 = vadd.f32 %v3318, %v3446
      %v3469 = vadd.f32 %v3319, %v3451
      %v3470 = vadd.f32 %v3320, %v3454
      %v3471 = vadd.f32 %v3321, %v3459
      %v3472 = vadd.f32 %v3322, %v3462
      %v3473 = vld [vmem:[%s3172 + $0x2] sm:$0xff]
      %v3474 = vld [vmem:[%s3172 + $0x12] sm:$0xff]
      %v3475 = vld [vmem:[%s3172 + $0x22] sm:$0xff]
      %v3476 = vld [vmem:[%s3172 + $0x32] sm:$0xff]
      %v3477 = vld [vmem:[%s3172 + $0x42] sm:$0xff]
      %v3478 = vld [vmem:[%s3172 + $0x52] sm:$0xff]
      %v3479 = vld [vmem:[%s3172 + $0x62] sm:$0xff]
      %v3480 = vld [vmem:[%s3172 + $0x72] sm:$0xff]
      %v3481 = vpack.c.bf16 %v3474, %v3473
      %v3482 = vpack.c.bf16 %v3476, %v3475
      %v3483 = vpack.c.bf16 %v3478, %v3477
      %v3484 = vpack.c.bf16 %v3480, %v3479
      %s3485 = scalar_lea.vmem %s7, 512
      %v3486 = vld [vmem:[%s3485] sm:$0xf]
      %v3487 = vld [vmem:[%s3485 + $0x4] sm:$0xf]
      %v3488 = vld [vmem:[%s3485 + $0x8] sm:$0xf]
      %v3489 = vld [vmem:[%s3485 + $0xc] sm:$0xf]
      %v3490 = vld [vmem:[%s3485 + $0x10] sm:$0xf]
      %v3491 = vld [vmem:[%s3485 + $0x14] sm:$0xf]
      %v3492 = vld [vmem:[%s3485 + $0x18] sm:$0xf]
      %v3493 = vld [vmem:[%s3485 + $0x1c] sm:$0xf]
      %v3494 = vld [vmem:[%s3485 + $0x20] sm:$0xf]
      %v3495 = vld [vmem:[%s3485 + $0x24] sm:$0xf]
      %v3496 = vld [vmem:[%s3485 + $0x28] sm:$0xf]
      %v3497 = vld [vmem:[%s3485 + $0x2c] sm:$0xf]
      %v3498 = vld [vmem:[%s3485 + $0x30] sm:$0xf]
      %v3499 = vld [vmem:[%s3485 + $0x34] sm:$0xf]
      %v3500 = vld [vmem:[%s3485 + $0x38] sm:$0xf]
      %v3501 = vld [vmem:[%s3485 + $0x3c] sm:$0xf]
      %v3518 = vunpack.c.l.b16 %v3486
      %v3519 = vunpack.c.l.b16 %v3487
      %v3520 = vunpack.c.l.b16 %v3488
      %v3521 = vunpack.c.l.b16 %v3489
      %v3522 = vunpack.c.l.b16 %v3490
      %v3523 = vunpack.c.l.b16 %v3491
      %v3524 = vunpack.c.l.b16 %v3492
      %v3525 = vunpack.c.l.b16 %v3493
      %v3526 = vunpack.c.l.b16 %v3494
      %v3527 = vunpack.c.l.b16 %v3495
      %v3528 = vunpack.c.l.b16 %v3496
      %v3529 = vunpack.c.l.b16 %v3497
      %v3530 = vunpack.c.l.b16 %v3498
      %v3531 = vunpack.c.l.b16 %v3499
      %v3532 = vunpack.c.l.b16 %v3500
      %v3533 = vunpack.c.l.b16 %v3501
      %v3534 = vpack.c.b16 %v3519, %v3518
      %v3535 = vpack.c.b16 %v3521, %v3520
      %v3536 = vpack.c.b16 %v3523, %v3522
      %v3537 = vpack.c.b16 %v3525, %v3524
      %v3538 = vpack.c.b16 %v3527, %v3526
      %v3539 = vpack.c.b16 %v3529, %v3528
      %v3540 = vpack.c.b16 %v3531, %v3530
      %v3541 = vpack.c.b16 %v3533, %v3532
      %3550 = vmatprep.subr.bf16.mxu0 0
      %3551 = vmatpush1.bf16.msra.mxu0 %v3541
      %3552 = vmatprep.subr.bf16.mxu0 0
      %3553 = vmatpush1.bf16.msra.mxu0 %v3540
      %3554 = vmatprep.subr.bf16.mxu0 0
      %3555 = vmatpush1.bf16.msra.mxu0 %v3539
      %3556 = vmatprep.subr.bf16.mxu0 0
      %3557 = vmatpush1.bf16.msra.mxu0 %v3538
      %3558 = vmatprep.subr.bf16.mxu0 0
      %3559 = vmatpush1.bf16.msra.mxu0 %v3537
      %3560 = vmatprep.subr.bf16.mxu0 0
      %3561 = vmatpush1.bf16.msra.mxu0 %v3536
      %3562 = vmatprep.subr.bf16.mxu0 0
      %3563 = vmatpush1.bf16.msra.mxu0 %v3535
      %3564 = vmatprep.subr.bf16.mxu0 0
      %3565 = vmatpush1.bf16.msra.mxu0 %v3534
      %3566 = vmatprep.subr.bf16.mxu0 0
      %3567 = vmatpush2.bf16.msra.mxu0 0
      %3568 = vmatprep.subr.bf16.mxu0 0
      %3569 = vmatpush2.bf16.msra.mxu0 0
      %3570 = vmatprep.subr.bf16.mxu0 0
      %3571 = vmatpush2.bf16.msra.mxu0 0
      %3572 = vmatprep.subr.bf16.mxu0 0
      %3573 = vmatpush2.bf16.msra.mxu0 0
      %3574 = vmatprep.subr.bf16.mxu0 0
      %3575 = vmatpush2.bf16.msra.mxu0 0
      %3576 = vmatprep.subr.bf16.mxu0 0
      %3577 = vmatpush2.bf16.msra.mxu0 0
      %3578 = vmatprep.subr.bf16.mxu0 0
      %3579 = vmatpush2.bf16.msra.mxu0 0
      %3580 = vmatprep.subr.bf16.mxu0 0
      %3581 = vmatpush2.bf16.msra.mxu0 0
      %3582 = vmatprep.mubr.bf16.mxu0 0
      %3583 = vmatmul.mubr.bf16.gmra.mxu0 %v3481
      %v3584 = vpop.f32.mrf.mxu0
      %v3585 = vadd.f32 0.0, %v3584
      %v3586 = vpop.f32.mrf.mxu0
      %v3587 = vpop.f32.mrf.mxu0
      %v3588 = vadd.f32 0.0, %v3587
      %v3589 = vpop.f32.mrf.mxu0
      %3590 = vmatprep.mubr.bf16.mxu0 0
      %3591 = vmatmul.mubr.bf16.gmra.mxu0 %v3482
      %v3592 = vpop.f32.mrf.mxu0
      %v3593 = vadd.f32 0.0, %v3592
      %v3594 = vpop.f32.mrf.mxu0
      %v3595 = vpop.f32.mrf.mxu0
      %v3596 = vadd.f32 0.0, %v3595
      %v3597 = vpop.f32.mrf.mxu0
      %3598 = vmatprep.mubr.bf16.mxu0 0
      %3599 = vmatmul.mubr.bf16.gmra.mxu0 %v3483
      %v3600 = vpop.f32.mrf.mxu0
      %v3601 = vadd.f32 0.0, %v3600
      %v3602 = vpop.f32.mrf.mxu0
      %v3603 = vpop.f32.mrf.mxu0
      %v3604 = vadd.f32 0.0, %v3603
      %v3605 = vpop.f32.mrf.mxu0
      %3606 = vmatprep.mubr.bf16.mxu0 0
      %3607 = vmatmul.mubr.bf16.gmra.mxu0 %v3484
      %v3608 = vpop.f32.mrf.mxu0
      %v3609 = vadd.f32 0.0, %v3608
      %v3610 = vpop.f32.mrf.mxu0
      %v3611 = vpop.f32.mrf.mxu0
      %v3612 = vadd.f32 0.0, %v3611
      %v3613 = vpop.f32.mrf.mxu0
      %3614 = vdwg.mxu0
      %v3615 = vadd.f32 %v3465, %v3585
      %v3616 = vadd.f32 %v3466, %v3588
      %v3617 = vadd.f32 %v3467, %v3593
      %v3618 = vadd.f32 %v3468, %v3596
      %v3619 = vadd.f32 %v3469, %v3601
      %v3620 = vadd.f32 %v3470, %v3604
      %v3621 = vadd.f32 %v3471, %v3609
      %v3622 = vadd.f32 %v3472, %v3612
      %3623 = vst [vmem:[%s332] sm:$0xff] %v3615
      %3624 = vst [vmem:[%s332 + $0x8] sm:$0xff] %v3616
      %3625 = vst [vmem:[%s332 + $0x10] sm:$0xff] %v3617
      %3626 = vst [vmem:[%s332 + $0x18] sm:$0xff] %v3618
      %3627 = vst [vmem:[%s332 + $0x20] sm:$0xff] %v3619
      %3628 = vst [vmem:[%s332 + $0x28] sm:$0xff] %v3620
      %3629 = vst [vmem:[%s332 + $0x30] sm:$0xff] %v3621
      %3630 = vst [vmem:[%s332 + $0x38] sm:$0xff] %v3622
      %p3631 = scmp.lt.s32.totalorder %s20, 1
      %s3632 = scalar_select %p3631, %s20, 1
      %s3633 = smul.addr %s3632, 8
      %s3634 = smul.addr %s3633, 8
      %s3635 = scalar_lea.vmem %s9, %s3634
      // Predicated region
      $region57: #{basic_block_forward.1} parent=55 // pred_check
        %p3636 = pneg %p232
      $region58: #{basic_block_forward.1} parent=55 // pred_check_branch
        %3638 = sbr.rel (%p3636) target = $region60
      $region59: #{basic_block_forward.1} parent=55 // pred_region
        _
      $region60: #{basic_block_forward.1} parent=55 // pred_fallthru
        _
    $region56: #{basic_block_forward.1} parent=5 // pred_fallthru
      _
    %p3639 = scmp.le.s32.totalorder 2, %s15
    // Predicated region
    $region61: #{basic_block_forward.1} parent=5 // pred_check
      %p3640 = pneg %p3639
    $region62: #{basic_block_forward.1} parent=5 // pred_check_branch
      %3642 = sbr.rel (%p3640) target = $region64
    $region63: #{basic_block_forward.1} parent=5 // pred_region
      %s3643 = ssub.s32 %s15, 2
      // Predicated region
      $region65: #{basic_block_forward.1} parent=63 // pred_check
        %p3644 = pneg %p238
      $region66: #{basic_block_forward.1} parent=63 // pred_check_branch
        %3646 = sbr.rel (%p3644) target = $region68
      $region67: #{basic_block_forward.1} parent=63 // pred_region
        %p3647 = scmp.lt.s32.totalorder %s21, 1
        %s3648 = scalar_select %p3647, %s21, 1
        %s3649 = smul.addr %s3648, 8
        %s3650 = smul.addr %s3649, 8
        %s3651 = scalar_lea.vmem %s9, %s3650
      $region68: #{basic_block_forward.1} parent=63 // pred_fallthru
        _
    $region64: #{basic_block_forward.1} parent=5 // pred_fallthru
      _
  $region6: #{basic_block_forward.1} parent=0 // loop_footer
    %s19 = sadd.s32 1, %s15
  $region7: #{basic_block_forward.1} parent=0 // loop_footer_branch
    %14 = sbr.rel target = $region3
  $region8: #{basic_block_forward.1} parent=0 // loop_exit
    _

</llo_original>
